<compile_context>
chip_gen: v5e
topology: v5e:2x2
jax: 0.10.0
libtpu: 0.0.40
codegen_flags: <defaults>
</compile_context>

<pallas_src>
import functools

import jax
import jax.numpy as jnp
from jax import lax
from jax.experimental import pallas as pl
from jax.experimental.pallas import tpu as pltpu


NEG_INF = -1e9
LN_EPS = 1e-5
LANE = 128


# -----------------------------------------------------------------------------
# Fused kernel factory (single kernel: encoder -> decoder(+cross-attn) -> regressor)
# -----------------------------------------------------------------------------
def _make_fused_kernel(dims, seqs, w_off, v_off):
    D, F, V = dims["d_model"], dims["d_ff"], dims["vocab"]
    OUTW = dims["out_lanes"]
    Se, Sd, Sr = seqs

    def kernel(enc_ids_ref, enc_mask_ref, dec_ids_ref, dec_mask_ref,
               rg_ids_ref, rg_mask_ref, causal_ref, w_ref, vec_ref,
               lm_ref, hid_ref, rg_ref):

        # ---- slab accessors (all offsets are static, 128-lane aligned) ----
        def W(name, rows, cols):
            off = w_off[name]
            return w_ref[:rows, off:off + cols]              # bf16 [rows, cols]

        def Vrow(name, cols):
            r = v_off[name]
            return vec_ref[r:r + 1, :cols]                   # f32 [1, cols]

        # ---- math helpers (bf16 operands, f32 accumulation on the MXU) ----
        def mm(a_bf, b_bf):
            return jnp.dot(a_bf, b_bf, preferred_element_type=jnp.float32)

        def mm_nt(a_bf, b_bf):                               # contract last dims of both
            return lax.dot_general(a_bf, b_bf, (((1,), (1,)), ((), ())),
                                   preferred_element_type=jnp.float32)

        def layernorm(x, g, b):
            mu = jnp.mean(x, axis=-1, keepdims=True)
            var = jnp.mean((x - mu) ** 2, axis=-1, keepdims=True)
            return (x - mu) * lax.rsqrt(var + LN_EPS) * g + b

        def softmax_attn(q, k, v, bias):
            s = mm_nt(q.astype(jnp.bfloat16), k.astype(jnp.bfloat16)) + bias
            m = jnp.max(s, axis=-1, keepdims=True)
            p = jnp.exp(s - m)
            denom = jnp.sum(p, axis=-1, keepdims=True)
            p = p * pl.reciprocal(denom, approx=True)
            return mm(p.astype(jnp.bfloat16), v.astype(jnp.bfloat16))

        def embed(ids_col, pre, S):
            # In-kernel gather: one-hot [S,V] (VPU) @ tok_emb^T [D,V] (MXU), table stays in VMEM.
            onehot = jnp.where(
                lax.broadcasted_iota(jnp.int32, (S, V), 1) == ids_col, 1.0, 0.0
            ).astype(jnp.bfloat16)
            tok = mm_nt(onehot, W(pre + "_tokt", D, V))                  # [S, D] f32
            pos = W(pre + "_pos", S, D).astype(jnp.float32)              # learned positions [:S]
            return tok + pos

        def block(pre, h, bias):
            # One bf16 copy of h reused for the Q/K/V projections (v5e: single cast/pack).
            hb = h.astype(jnp.bfloat16)
            q = mm(hb, W(pre + "_wq", D, D)) + Vrow(pre + "_bq", D)      # scale pre-folded
            k = mm(hb, W(pre + "_wk", D, D)) + Vrow(pre + "_bk", D)
            v = mm(hb, W(pre + "_wv", D, D)) + Vrow(pre + "_bv", D)
            a = softmax_attn(q, k, v, bias)
            o = mm(a.astype(jnp.bfloat16), W(pre + "_wo", D, D)) + Vrow(pre + "_bo", D)
            h = layernorm(h + o, Vrow(pre + "_ln1_g", D), Vrow(pre + "_ln1_b", D))
            hb = h.astype(jnp.bfloat16)
            # TODO(synk): PyTorch nn.GELU defaults to exact erf; tanh approximation used here.
            f = jax.nn.gelu(mm(hb, W(pre + "_wfc1", D, F)) + Vrow(pre + "_bfc1", F))
            f = mm_nt(f.astype(jnp.bfloat16), W(pre + "_wfc2t", D, F)) + Vrow(pre + "_bfc2", D)
            return layernorm(h + f, Vrow(pre + "_ln2_g", D), Vrow(pre + "_ln2_b", D))

        # ---------------- encoder ----------------
        enc_bias = (1.0 - enc_mask_ref[0]) * NEG_INF                     # [1, Se]
        h_enc = block("enc", embed(enc_ids_ref[0], "enc", Se), enc_bias)  # [Se, D], stays on-chip

        # ---------------- decoder ----------------
        self_bias = (1.0 - dec_mask_ref[0]) * NEG_INF + causal_ref[...]  # [Sd, Sd] (causal is const input)
        h = embed(dec_ids_ref[0], "dec", Sd)
        hb = h.astype(jnp.bfloat16)
        q = mm(hb, W("dec_wq", D, D)) + Vrow("dec_bq", D)
        k = mm(hb, W("dec_wk", D, D)) + Vrow("dec_bk", D)
        v = mm(hb, W("dec_wv", D, D)) + Vrow("dec_bv", D)
        a = softmax_attn(q, k, v, self_bias)
        o = mm(a.astype(jnp.bfloat16), W("dec_wo", D, D)) + Vrow("dec_bo", D)
        h = layernorm(h + o, Vrow("dec_ln1_g", D), Vrow("dec_ln1_b", D))

        # cross-attention over the (still on-chip) encoder hidden states
        hb = h.astype(jnp.bfloat16)
        eb = h_enc.astype(jnp.bfloat16)                     # one bf16 copy reused for K and V
        cq = mm(hb, W("dec_wcq", D, D)) + Vrow("dec_bcq", D)
        ck = mm(eb, W("dec_wck", D, D)) + Vrow("dec_bck", D)
        cv = mm(eb, W("dec_wcv", D, D)) + Vrow("dec_bcv", D)
        ca = softmax_attn(cq, ck, cv, enc_bias)
        co = mm(ca.astype(jnp.bfloat16), W("dec_wco", D, D)) + Vrow("dec_bco", D)
        h = layernorm(h + co, Vrow("dec_ln2_g", D), Vrow("dec_ln2_b", D))

        hb = h.astype(jnp.bfloat16)
        f = jax.nn.gelu(mm(hb, W("dec_wfc1", D, F)) + Vrow("dec_bfc1", F))
        f = mm_nt(f.astype(jnp.bfloat16), W("dec_wfc2t", D, F)) + Vrow("dec_bfc2", D)
        h = layernorm(h + f, Vrow("dec_ln3_g", D), Vrow("dec_ln3_b", D))

        # LM head: zero-padded [D,128] segment -> lane-dense [Sd,128] store (logits in lanes [:V]).
        logits = mm(h.astype(jnp.bfloat16), W("dec_wlm", D, OUTW)) + Vrow("dec_blm", OUTW)
        lm_ref[0] = logits.astype(lm_ref.dtype)
        hid_ref[0] = h.astype(hid_ref.dtype)                # tiny exact-f32 [Sd, D] store

        # ---------------- regressor ----------------
        rg_bias = (1.0 - rg_mask_ref[0]) * NEG_INF
        hr = block("rg", embed(rg_ids_ref[0], "rg", Sr), rg_bias)
        # scalar head packed into column 0 of a [D,128] segment -> lane-dense [Sr,128] store
        rg = mm(hr.astype(jnp.bfloat16), W("rg_whead", D, OUTW)) + Vrow("rg_bhead", OUTW)
        rg_ref[0] = rg.astype(rg_ref.dtype)

    return kernel


# -----------------------------------------------------------------------------
# Wrapper-level glue (mirrors the PyTorch Seq2CMDSeqModel.forward)
# -----------------------------------------------------------------------------
def shift_right(labels, decoder_start_token_id, pad_token_id):
    shifted = jnp.roll(labels, 1, axis=-1)
    shifted = shifted.at[..., 0].set(decoder_start_token_id)
    return jnp.where(shifted == -100, pad_token_id, shifted)


def seq2cmdseq_forward(packed, input_ids, attention_mask, labels,
                       decoder_attention_mask, *,
                       decoder_start_token_id=0, pad_token_id=1):
    dims = packed["dims"]
    D, V, OUTW = dims["d_model"], dims["vocab"], dims["out_lanes"]
    B, Se = input_ids.shape
    Sd = labels.shape[-1]
    Sr = Se + Sd

    # wrapper glue only on int ids / masks (labels -> decoder_input_ids, regressor concat)
    decoder_input_ids = shift_right(labels, decoder_start_token_id, pad_token_id)
    regressor_input_ids = jnp.concatenate((input_ids, labels), axis=-1)
    regressor_attention_mask = jnp.concatenate(
        (attention_mask, decoder_attention_mask), axis=-1)

    enc_ids = input_ids.astype(jnp.int32)[:, :, None]                 # [B, Se, 1]
    dec_ids = decoder_input_ids.astype(jnp.int32)[:, :, None]         # [B, Sd, 1]
    rg_ids = regressor_input_ids.astype(jnp.int32)[:, :, None]        # [B, Sr, 1]
    enc_mask = attention_mask.astype(jnp.float32)[:, None, :]         # [B, 1, Se]
    dec_mask = decoder_attention_mask.astype(jnp.float32)[:, None, :]
    rg_mask = regressor_attention_mask.astype(jnp.float32)[:, None, :]

    # loop-invariant causal bias: computed once, passed as a constant-index-map input
    rows = lax.broadcasted_iota(jnp.int32, (Sd, Sd), 0)
    cols = lax.broadcasted_iota(jnp.int32, (Sd, Sd), 1)
    causal = jnp.where(cols > rows, NEG_INF, 0.0).astype(jnp.float32)  # [Sd, Sd]

    w_slab, vec_slab = packed["w_slab"], packed["vec_slab"]
    kernel = _make_fused_kernel(dims, (Se, Sd, Sr), packed["w_off"], packed["v_off"])

    def _batch_spec(shape):
        nd = len(shape)
        return pl.BlockSpec((1,) + tuple(shape[1:]),
                            lambda b, _nd=nd: (b,) + (0,) * (_nd - 1))

    def _const_spec(arr):
        zeros = (0,) * arr.ndim
        return pl.BlockSpec(arr.shape, lambda b, _z=zeros: _z)

    lm_packed, hidden, rg_packed = pl.pallas_call(
        kernel,
        out_shape=(jax.ShapeDtypeStruct((B, Sd, OUTW), jnp.float32),   # logits (lanes [:V])
                   jax.ShapeDtypeStruct((B, Sd, D), jnp.float32),      # last_hidden_state
                   jax.ShapeDtypeStruct((B, Sr, OUTW), jnp.float32)),  # regressor (lane 0)
        grid=(B,),
        in_specs=[_batch_spec(enc_ids.shape), _batch_spec(enc_mask.shape),
                  _batch_spec(dec_ids.shape), _batch_spec(dec_mask.shape),
                  _batch_spec(rg_ids.shape), _batch_spec(rg_mask.shape),
                  _const_spec(causal), _const_spec(w_slab), _const_spec(vec_slab)],
        out_specs=(pl.BlockSpec((1, Sd, OUTW), lambda b: (b, 0, 0)),
                   pl.BlockSpec((1, Sd, D), lambda b: (b, 0, 0)),
                   pl.BlockSpec((1, Sr, OUTW), lambda b: (b, 0, 0))),
        compiler_params=pltpu.CompilerParams(dimension_semantics=("parallel",)),
    )(enc_ids, enc_mask, dec_ids, dec_mask, rg_ids, rg_mask, causal, w_slab, vec_slab)

    seq_output = {"logits": lm_packed[:, :, :V], "last_hidden_state": hidden}
    loc_output = {"logits": rg_packed[:, :, 0]}     # [B, Sr]  (== PyTorch .squeeze(-1))
    return {"lm": seq_output, "rg": loc_output}


# -----------------------------------------------------------------------------
# Deterministic logical parameters + packing into the two VMEM slabs
# -----------------------------------------------------------------------------
def make_params(key, *, vocab=64, d_model=32, d_ff=64, max_len=32):
    ks = iter(jax.random.split(key, 64))

    def w(shape, scale=0.02):
        return (scale * jax.random.normal(next(ks), shape)).astype(jnp.float32)

    def zeros(*shape):
        return jnp.zeros(shape, jnp.float32)

    def ones(*shape):
        return jnp.ones(shape, jnp.float32)

    p = {}
    for pre in ("enc", "dec", "rg"):
        p[f"{pre}_tok_emb"] = w((vocab, d_model))
        p[f"{pre}_pos_emb"] = w((max_len, d_model))
        for nm in ("wq", "wk", "wv", "wo"):
            p[f"{pre}_{nm}"] = w((d_model, d_model))
        for nm in ("bq", "bk", "bv", "bo"):
            p[f"{pre}_{nm}"] = zeros(d_model)
        p[f"{pre}_ln1_g"] = ones(d_model)
        p[f"{pre}_ln1_b"] = zeros(d_model)
        p[f"{pre}_wfc1"] = w((d_model, d_ff))
        p[f"{pre}_bfc1"] = zeros(d_ff)
        p[f"{pre}_wfc2"] = w((d_ff, d_model))
        p[f"{pre}_bfc2"] = zeros(d_model)
        p[f"{pre}_ln2_g"] = ones(d_model)
        p[f"{pre}_ln2_b"] = zeros(d_model)
    # decoder extras: cross-attention, ln3, LM head
    for nm in ("wcq", "wck", "wcv", "wco"):
        p[f"dec_{nm}"] = w((d_model, d_model))
    for nm in ("bcq", "bck", "bcv", "bco"):
        p[f"dec_{nm}"] = zeros(d_model)
    p["dec_ln3_g"] = ones(d_model)
    p["dec_ln3_b"] = zeros(d_model)
    p["dec_wlm"] = w((d_model, vocab))
    p["dec_blm"] = zeros(vocab)
    # regressor scalar head (PyTorch Linear(d_model, 1).weight.T)
    p["rg_whead"] = w((d_model, 1))
    p["rg_bhead"] = zeros(1)
    return p


def pack_params(p, *, d_model, d_ff, vocab, max_len, out_lanes=LANE):
    """Pack logical params into one bf16 weight slab + one f32 vector slab (128-aligned segments)."""
    D, F, V = d_model, d_ff, vocab
    scale = 1.0 / float(D) ** 0.5
    rows = ((max(D, max_len) + 7) // 8) * 8

    def pad_cols(mat, cols):
        return jnp.pad(mat, ((0, 0), (0, cols - mat.shape[1])))

    w_entries, v_entries = [], []
    for pre in ("enc", "dec", "rg"):
        # NOTE: 1/sqrt(D) attention scale folded into BOTH the Q weight and the Q bias.
        w_entries += [
            (f"{pre}_tokt", p[f"{pre}_tok_emb"].T),            # [D, V]
            (f"{pre}_pos", p[f"{pre}_pos_emb"]),               # [max_len, D]
            (f"{pre}_wq", p[f"{pre}_wq"] * scale),
            (f"{pre}_wk", p[f"{pre}_wk"]),
            (f"{pre}_wv", p[f"{pre}_wv"]),
            (f"{pre}_wo", p[f"{pre}_wo"]),
            (f"{pre}_wfc1", p[f"{pre}_wfc1"]),
            (f"{pre}_wfc2t", p[f"{pre}_wfc2"].T),              # [D, F] (used via dot_general NT)
        ]
        v_entries += [
            (f"{pre}_bq", p[f"{pre}_bq"] * scale),
            (f"{pre}_bk", p[f"{pre}_bk"]),
            (f"{pre}_bv", p[f"{pre}_bv"]),
            (f"{pre}_bo", p[f"{pre}_bo"]),
            (f"{pre}_ln1_g", p[f"{pre}_ln1_g"]),
            (f"{pre}_ln1_b", p[f"{pre}_ln1_b"]),
            (f"{pre}_bfc1", p[f"{pre}_bfc1"]),
            (f"{pre}_bfc2", p[f"{pre}_bfc2"]),
            (f"{pre}_ln2_g", p[f"{pre}_ln2_g"]),
            (f"{pre}_ln2_b", p[f"{pre}_ln2_b"]),
        ]
    w_entries += [
        ("dec_wcq", p["dec_wcq"] * scale),
        ("dec_wck", p["dec_wck"]),
        ("dec_wcv", p["dec_wcv"]),
        ("dec_wco", p["dec_wco"]),
        ("dec_wlm", pad_cols(p["dec_wlm"], out_lanes)),        # zero-padded -> lane-dense logits
        ("rg_whead", pad_cols(p["rg_whead"], out_lanes)),      # zero-padded -> lane-dense rg out
    ]
    v_entries += [
        ("dec_bcq", p["dec_bcq"] * scale),
        ("dec_bck", p["dec_bck"]),
        ("dec_bcv", p["dec_bcv"]),
        ("dec_bco", p["dec_bco"]),
        ("dec_ln3_g", p["dec_ln3_g"]),
        ("dec_ln3_b", p["dec_ln3_b"]),
        ("dec_blm", p["dec_blm"]),
        ("rg_bhead", p["rg_bhead"]),
    ]

    # bf16 weight slab, each segment starts at a 128-lane-aligned offset
    w_off, total = {}, 0
    for name, mat in w_entries:
        w_off[name] = total
        total += ((mat.shape[1] + LANE - 1) // LANE) * LANE
    w_slab = jnp.zeros((rows, total), jnp.bfloat16)
    for name, mat in w_entries:
        r, c = mat.shape
        w_slab = w_slab.at[:r, w_off[name]:w_off[name] + c].set(mat.astype(jnp.bfloat16))

    # f32 vector slab: one zero-padded 128-lane row per bias / LayerNorm param
    nrows = ((len(v_entries) + 7) // 8) * 8
    vec_slab = jnp.zeros((nrows, LANE), jnp.float32)
    v_off = {}
    for i, (name, vec) in enumerate(v_entries):
        vec = jnp.asarray(vec, jnp.float32).reshape(-1)
        vec_slab = vec_slab.at[i, :vec.shape[0]].set(vec)
        v_off[name] = i

    dims = dict(d_model=D, d_ff=F, vocab=V, max_len=max_len, out_lanes=out_lanes)
    return {"w_slab": w_slab, "vec_slab": vec_slab,
            "w_off": w_off, "v_off": v_off, "dims": dims}


# TODO(synk): HF-level plumbing (past_key_values caching, head_mask, use_cache,
# output_attentions/output_hidden_states, return_dict toggles) has no meaningful Pallas
# equivalent and is omitted; the numerical forward path is fully implemented.

if __name__ == "__main__":
    B, S_ENC, S_DEC = 2, 8, 8
    VOCAB, D_MODEL, D_FF, MAX_LEN = 64, 32, 64, 32

    key = jax.random.PRNGKey(0)
    k_ids, k_lab = jax.random.split(key)
    input_ids = jax.random.randint(k_ids, (B, S_ENC), 2, VOCAB, dtype=jnp.int32)
    labels = jax.random.randint(k_lab, (B, S_DEC), 2, VOCAB, dtype=jnp.int32)
    attention_mask = jnp.ones((B, S_ENC), jnp.int32).at[:, -2:].set(0)
    decoder_attention_mask = jnp.ones((B, S_DEC), jnp.int32).at[:, -1:].set(0)

    logical = make_params(jax.random.PRNGKey(42), vocab=VOCAB, d_model=D_MODEL,
                          d_ff=D_FF, max_len=MAX_LEN)
    packed = pack_params(logical, d_model=D_MODEL, d_ff=D_FF, vocab=VOCAB, max_len=MAX_LEN)

    fwd = jax.jit(functools.partial(seq2cmdseq_forward, packed,
                                    decoder_start_token_id=0, pad_token_id=1))
    out = fwd(input_ids, attention_mask, labels, decoder_attention_mask)
    jax.block_until_ready(out)

    assert out["lm"]["logits"].shape == (B, S_DEC, VOCAB)
    assert out["lm"]["last_hidden_state"].shape == (B, S_DEC, D_MODEL)
    assert out["rg"]["logits"].shape == (B, S_ENC + S_DEC)
    print("KERNEL_OK")
</pallas_src>

<mosaic_0001>
module attributes {stable_mosaic.version = 11 : i64} {
  func.func @kernel(%arg0: i32, %arg1: memref<1x8x1xi32, #tpu.memory_space<vmem>>, %arg2: memref<1x1x8xf32, #tpu.memory_space<vmem>>, %arg3: memref<1x8x1xi32, #tpu.memory_space<vmem>>, %arg4: memref<1x1x8xf32, #tpu.memory_space<vmem>>, %arg5: memref<1x16x1xi32, #tpu.memory_space<vmem>>, %arg6: memref<1x1x16xf32, #tpu.memory_space<vmem>>, %arg7: memref<8x8xf32, #tpu.memory_space<vmem>>, %arg8: memref<32x3840xbf16, #tpu.memory_space<vmem>>, %arg9: memref<40x128xf32, #tpu.memory_space<vmem>>, %arg10: memref<1x8x128xf32, #tpu.memory_space<vmem>>, %arg11: memref<1x8x32xf32, #tpu.memory_space<vmem>>, %arg12: memref<1x16x128xf32, #tpu.memory_space<vmem>>) attributes {dimension_semantics = [#tpu.dimension_semantics<parallel>], iteration_bounds = array<i64: 2>, scalar_prefetch = 0 : i64, scratch_operands = 0 : i64, tpu.core_type = #tpu.core_type<tc>, window_params = [{transform_indices = @transform_0, window_bounds = array<i64: 1, 8, 1>}, {transform_indices = @transform_1, window_bounds = array<i64: 1, 1, 8>}, {transform_indices = @transform_2, window_bounds = array<i64: 1, 8, 1>}, {transform_indices = @transform_3, window_bounds = array<i64: 1, 1, 8>}, {transform_indices = @transform_4, window_bounds = array<i64: 1, 16, 1>}, {transform_indices = @transform_5, window_bounds = array<i64: 1, 1, 16>}, {pipeline_mode = #tpu.pipeline_mode<synchronous>, transform_indices = @transform_6, window_bounds = array<i64: 8, 8>}, {pipeline_mode = #tpu.pipeline_mode<synchronous>, transform_indices = @transform_7, window_bounds = array<i64: 32, 3840>}, {pipeline_mode = #tpu.pipeline_mode<synchronous>, transform_indices = @transform_8, window_bounds = array<i64: 40, 128>}, {transform_indices = @transform_9, window_bounds = array<i64: 1, 8, 128>}, {transform_indices = @transform_10, window_bounds = array<i64: 1, 8, 32>}, {transform_indices = @transform_11, window_bounds = array<i64: 1, 16, 128>}]} {
    %c0 = arith.constant 0 : index
    %c0_0 = arith.constant 0 : index
    %c0_1 = arith.constant 0 : index
    %0 = vector.load %arg2[%c0, %c0_0, %c0_1] : memref<1x1x8xf32, #tpu.memory_space<vmem>>, vector<1x1x8xf32>
    %1 = vector.shape_cast %0 : vector<1x1x8xf32> to vector<1x8xf32>
    %cst = arith.constant 1.000000e+00 : f32
    %2 = vector.broadcast %cst : f32 to vector<1x8xf32>
    %3 = arith.subf %2, %1 : vector<1x8xf32>
    %cst_2 = arith.constant -1.000000e+09 : f32
    %4 = vector.broadcast %cst_2 : f32 to vector<1x8xf32>
    %5 = arith.mulf %3, %4 : vector<1x8xf32>
    %c0_3 = arith.constant 0 : index
    %c0_4 = arith.constant 0 : index
    %c0_5 = arith.constant 0 : index
    %6 = vector.load %arg1[%c0_3, %c0_4, %c0_5] : memref<1x8x1xi32, #tpu.memory_space<vmem>>, vector<1x8x1xi32>
    %7 = vector.shape_cast %6 : vector<1x8x1xi32> to vector<8x1xi32>
    %8 = tpu.iota {dimensions = array<i32: 1>} : vector<8x64xi32>
    %9 = vector.broadcast %7 : vector<8x1xi32> to vector<8x64xi32>
    %10 = arith.cmpi eq, %8, %9 : vector<8x64xi32>
    %cst_6 = arith.constant 1.000000e+00 : f32
    %cst_7 = arith.constant 0.000000e+00 : f32
    %11 = vector.broadcast %cst_6 : f32 to vector<8x64xf32>
    %12 = vector.broadcast %cst_7 : f32 to vector<8x64xf32>
    %13 = arith.select %10, %11, %12 : vector<8x64xi1>, vector<8x64xf32>
    %14 = arith.truncf %13 : vector<8x64xf32> to vector<8x64xbf16>
    %c0_8 = arith.constant 0 : index
    %c0_9 = arith.constant 0 : index
    %15 = vector.load %arg8[%c0_8, %c0_9] : memref<32x3840xbf16, #tpu.memory_space<vmem>>, vector<32x64xbf16>
    %cst_10 = arith.constant dense<0.000000e+00> : vector<8x32xf32>
    %16 = tpu.matmul %14, %15, %cst_10 {dimension_numbers = #tpu.dot_dimension_numbers<[1], [1], [0], [0], [0, 0, 1, 0], [], []>} : vector<8x64xbf16>, vector<32x64xbf16>, vector<8x32xf32> -> vector<8x32xf32>
    %c0_11 = arith.constant 0 : index
    %c128 = arith.constant 128 : index
    %17 = vector.load %arg8[%c0_11, %c128] : memref<32x3840xbf16, #tpu.memory_space<vmem>>, vector<8x32xbf16>
    %18 = arith.extf %17 : vector<8x32xbf16> to vector<8x32xf32>
    %19 = arith.addf %16, %18 : vector<8x32xf32>
    %20 = arith.truncf %19 : vector<8x32xf32> to vector<8x32xbf16>
    %c0_12 = arith.constant 0 : index
    %c256 = arith.constant 256 : index
    %21 = vector.load %arg8[%c0_12, %c256] : memref<32x3840xbf16, #tpu.memory_space<vmem>>, vector<32x32xbf16>
    %cst_13 = arith.constant dense<0.000000e+00> : vector<8x32xf32>
    %22 = tpu.matmul %20, %21, %cst_13 {dimension_numbers = #tpu.dot_dimension_numbers<[1], [0], [0], [1], [0, 0, 1, 1], [], []>} : vector<8x32xbf16>, vector<32x32xbf16>, vector<8x32xf32> -> vector<8x32xf32>
    %c0_14 = arith.constant 0 : index
    %c0_15 = arith.constant 0 : index
    %23 = vector.load %arg9[%c0_14, %c0_15] : memref<40x128xf32, #tpu.memory_space<vmem>>, vector<1x32xf32>
    %24 = vector.broadcast %23 : vector<1x32xf32> to vector<8x32xf32>
    %25 = arith.addf %22, %24 : vector<8x32xf32>
    %c0_16 = arith.constant 0 : index
    %c384 = arith.constant 384 : index
    %26 = vector.load %arg8[%c0_16, %c384] : memref<32x3840xbf16, #tpu.memory_space<vmem>>, vector<32x32xbf16>
    %cst_17 = arith.constant dense<0.000000e+00> : vector<8x32xf32>
    %27 = tpu.matmul %20, %26, %cst_17 {dimension_numbers = #tpu.dot_dimension_numbers<[1], [0], [0], [1], [0, 0, 1, 1], [], []>} : vector<8x32xbf16>, vector<32x32xbf16>, vector<8x32xf32> -> vector<8x32xf32>
    %c1 = arith.constant 1 : index
    %c0_18 = arith.constant 0 : index
    %28 = vector.load %arg9[%c1, %c0_18] : memref<40x128xf32, #tpu.memory_space<vmem>>, vector<1x32xf32>
    %29 = vector.broadcast %28 : vector<1x32xf32> to vector<8x32xf32>
    %30 = arith.addf %27, %29 : vector<8x32xf32>
    %c0_19 = arith.constant 0 : index
    %c512 = arith.constant 512 : index
    %31 = vector.load %arg8[%c0_19, %c512] : memref<32x3840xbf16, #tpu.memory_space<vmem>>, vector<32x32xbf16>
    %cst_20 = arith.constant dense<0.000000e+00> : vector<8x32xf32>
    %32 = tpu.matmul %20, %31, %cst_20 {dimension_numbers = #tpu.dot_dimension_numbers<[1], [0], [0], [1], [0, 0, 1, 1], [], []>} : vector<8x32xbf16>, vector<32x32xbf16>, vector<8x32xf32> -> vector<8x32xf32>
    %c2 = arith.constant 2 : index
    %c0_21 = arith.constant 0 : index
    %33 = vector.load %arg9[%c2, %c0_21] : memref<40x128xf32, #tpu.memory_space<vmem>>, vector<1x32xf32>
    %34 = vector.broadcast %33 : vector<1x32xf32> to vector<8x32xf32>
    %35 = arith.addf %32, %34 : vector<8x32xf32>
    %36 = arith.truncf %25 : vector<8x32xf32> to vector<8x32xbf16>
    %37 = arith.truncf %30 : vector<8x32xf32> to vector<8x32xbf16>
    %cst_22 = arith.constant dense<0.000000e+00> : vector<8x8xf32>
    %38 = tpu.matmul %36, %37, %cst_22 {dimension_numbers = #tpu.dot_dimension_numbers<[1], [1], [0], [0], [0, 0, 1, 0], [], []>} : vector<8x32xbf16>, vector<8x32xbf16>, vector<8x8xf32> -> vector<8x8xf32>
    %39 = vector.broadcast %5 : vector<1x8xf32> to vector<8x8xf32>
    %40 = arith.addf %38, %39 : vector<8x8xf32>
    %cst_23 = arith.constant dense<0xFF800000> : vector<8xf32>
    %41 = vector.multi_reduction <maximumf>, %40, %cst_23 [1] : vector<8x8xf32> to vector<8xf32>
    %42 = vector.shape_cast %41 : vector<8xf32> to vector<8x1xf32>
    %43 = vector.broadcast %42 : vector<8x1xf32> to vector<8x8xf32>
    %44 = arith.subf %40, %43 : vector<8x8xf32>
    %45 = math.exp %44 : vector<8x8xf32>
    %cst_24 = arith.constant dense<0.000000e+00> : vector<8xf32>
    %46 = vector.multi_reduction <add>, %45, %cst_24 [1] : vector<8x8xf32> to vector<8xf32>
    %47 = vector.shape_cast %46 : vector<8xf32> to vector<8x1xf32>
    %48 = tpu.reciprocal %47 {approx = true} : vector<8x1xf32> -> vector<8x1xf32>
    %49 = vector.broadcast %48 : vector<8x1xf32> to vector<8x8xf32>
    %50 = arith.mulf %45, %49 : vector<8x8xf32>
    %51 = arith.truncf %50 : vector<8x8xf32> to vector<8x8xbf16>
    %52 = arith.truncf %35 : vector<8x32xf32> to vector<8x32xbf16>
    %cst_25 = arith.constant dense<0.000000e+00> : vector<8x32xf32>
    %53 = tpu.matmul %51, %52, %cst_25 {dimension_numbers = #tpu.dot_dimension_numbers<[1], [0], [0], [1], [0, 0, 1, 1], [], []>} : vector<8x8xbf16>, vector<8x32xbf16>, vector<8x32xf32> -> vector<8x32xf32>
    %54 = arith.truncf %53 : vector<8x32xf32> to vector<8x32xbf16>
    %c0_26 = arith.constant 0 : index
    %c640 = arith.constant 640 : index
    %55 = vector.load %arg8[%c0_26, %c640] : memref<32x3840xbf16, #tpu.memory_space<vmem>>, vector<32x32xbf16>
    %cst_27 = arith.constant dense<0.000000e+00> : vector<8x32xf32>
    %56 = tpu.matmul %54, %55, %cst_27 {dimension_numbers = #tpu.dot_dimension_numbers<[1], [0], [0], [1], [0, 0, 1, 1], [], []>} : vector<8x32xbf16>, vector<32x32xbf16>, vector<8x32xf32> -> vector<8x32xf32>
    %c3 = arith.constant 3 : index
    %c0_28 = arith.constant 0 : index
    %57 = vector.load %arg9[%c3, %c0_28] : memref<40x128xf32, #tpu.memory_space<vmem>>, vector<1x32xf32>
    %58 = vector.broadcast %57 : vector<1x32xf32> to vector<8x32xf32>
    %59 = arith.addf %56, %58 : vector<8x32xf32>
    %60 = arith.addf %19, %59 : vector<8x32xf32>
    %c4 = arith.constant 4 : index
    %c0_29 = arith.constant 0 : index
    %61 = vector.load %arg9[%c4, %c0_29] : memref<40x128xf32, #tpu.memory_space<vmem>>, vector<1x32xf32>
    %c5 = arith.constant 5 : index
    %c0_30 = arith.constant 0 : index
    %62 = vector.load %arg9[%c5, %c0_30] : memref<40x128xf32, #tpu.memory_space<vmem>>, vector<1x32xf32>
    %cst_31 = arith.constant dense<0.000000e+00> : vector<8xf32>
    %63 = vector.multi_reduction <add>, %60, %cst_31 [1] : vector<8x32xf32> to vector<8xf32>
    %64 = vector.shape_cast %63 : vector<8xf32> to vector<8x1xf32>
    %cst_32 = arith.constant 3.200000e+01 : f32
    %65 = vector.broadcast %cst_32 : f32 to vector<8x1xf32>
    %66 = arith.divf %64, %65 : vector<8x1xf32>
    %67 = vector.broadcast %66 : vector<8x1xf32> to vector<8x32xf32>
    %68 = arith.subf %60, %67 : vector<8x32xf32>
    %69 = arith.mulf %68, %68 : vector<8x32xf32>
    %cst_33 = arith.constant dense<0.000000e+00> : vector<8xf32>
    %70 = vector.multi_reduction <add>, %69, %cst_33 [1] : vector<8x32xf32> to vector<8xf32>
    %71 = vector.shape_cast %70 : vector<8xf32> to vector<8x1xf32>
    %cst_34 = arith.constant 3.200000e+01 : f32
    %72 = vector.broadcast %cst_34 : f32 to vector<8x1xf32>
    %73 = arith.divf %71, %72 : vector<8x1xf32>
    %74 = vector.broadcast %66 : vector<8x1xf32> to vector<8x32xf32>
    %75 = arith.subf %60, %74 : vector<8x32xf32>
    %cst_35 = arith.constant 9.99999974E-6 : f32
    %76 = vector.broadcast %cst_35 : f32 to vector<8x1xf32>
    %77 = arith.addf %73, %76 : vector<8x1xf32>
    %78 = math.rsqrt %77 : vector<8x1xf32>
    %79 = vector.broadcast %78 : vector<8x1xf32> to vector<8x32xf32>
    %80 = arith.mulf %75, %79 : vector<8x32xf32>
    %81 = vector.broadcast %61 : vector<1x32xf32> to vector<8x32xf32>
    %82 = arith.mulf %80, %81 : vector<8x32xf32>
    %83 = vector.broadcast %62 : vector<1x32xf32> to vector<8x32xf32>
    %84 = arith.addf %82, %83 : vector<8x32xf32>
    %85 = arith.truncf %84 : vector<8x32xf32> to vector<8x32xbf16>
    %c0_36 = arith.constant 0 : index
    %c768 = arith.constant 768 : index
    %86 = vector.load %arg8[%c0_36, %c768] : memref<32x3840xbf16, #tpu.memory_space<vmem>>, vector<32x64xbf16>
    %cst_37 = arith.constant dense<0.000000e+00> : vector<8x64xf32>
    %87 = tpu.matmul %85, %86, %cst_37 {dimension_numbers = #tpu.dot_dimension_numbers<[1], [0], [0], [1], [0, 0, 1, 1], [], []>} : vector<8x32xbf16>, vector<32x64xbf16>, vector<8x64xf32> -> vector<8x64xf32>
    %c6 = arith.constant 6 : index
    %c0_38 = arith.constant 0 : index
    %88 = vector.load %arg9[%c6, %c0_38] : memref<40x128xf32, #tpu.memory_space<vmem>>, vector<1x64xf32>
    %89 = vector.broadcast %88 : vector<1x64xf32> to vector<8x64xf32>
    %90 = arith.addf %87, %89 : vector<8x64xf32>
    %91 = arith.mulf %90, %90 : vector<8x64xf32>
    %92 = arith.mulf %90, %91 : vector<8x64xf32>
    %cst_39 = arith.constant 4.471500e-02 : f32
    %93 = vector.broadcast %cst_39 : f32 to vector<8x64xf32>
    %94 = arith.mulf %93, %92 : vector<8x64xf32>
    %95 = arith.addf %90, %94 : vector<8x64xf32>
    %cst_40 = arith.constant 0.797884583 : f32
    %96 = vector.broadcast %cst_40 : f32 to vector<8x64xf32>
    %97 = arith.mulf %96, %95 : vector<8x64xf32>
    %98 = math.tanh %97 : vector<8x64xf32>
    %cst_41 = arith.constant 1.000000e+00 : f32
    %99 = vector.broadcast %cst_41 : f32 to vector<8x64xf32>
    %100 = arith.addf %99, %98 : vector<8x64xf32>
    %cst_42 = arith.constant 5.000000e-01 : f32
    %101 = vector.broadcast %cst_42 : f32 to vector<8x64xf32>
    %102 = arith.mulf %101, %100 : vector<8x64xf32>
    %103 = arith.mulf %90, %102 : vector<8x64xf32>
    %104 = arith.truncf %103 : vector<8x64xf32> to vector<8x64xbf16>
    %c0_43 = arith.constant 0 : index
    %c896 = arith.constant 896 : index
    %105 = vector.load %arg8[%c0_43, %c896] : memref<32x3840xbf16, #tpu.memory_space<vmem>>, vector<32x64xbf16>
    %cst_44 = arith.constant dense<0.000000e+00> : vector<8x32xf32>
    %106 = tpu.matmul %104, %105, %cst_44 {dimension_numbers = #tpu.dot_dimension_numbers<[1], [1], [0], [0], [0, 0, 1, 0], [], []>} : vector<8x64xbf16>, vector<32x64xbf16>, vector<8x32xf32> -> vector<8x32xf32>
    %c7 = arith.constant 7 : index
    %c0_45 = arith.constant 0 : index
    %107 = vector.load %arg9[%c7, %c0_45] : memref<40x128xf32, #tpu.memory_space<vmem>>, vector<1x32xf32>
    %108 = vector.broadcast %107 : vector<1x32xf32> to vector<8x32xf32>
    %109 = arith.addf %106, %108 : vector<8x32xf32>
    %110 = arith.addf %84, %109 : vector<8x32xf32>
    %c8 = arith.constant 8 : index
    %c0_46 = arith.constant 0 : index
    %111 = vector.load %arg9[%c8, %c0_46] : memref<40x128xf32, #tpu.memory_space<vmem>>, vector<1x32xf32>
    %c9 = arith.constant 9 : index
    %c0_47 = arith.constant 0 : index
    %112 = vector.load %arg9[%c9, %c0_47] : memref<40x128xf32, #tpu.memory_space<vmem>>, vector<1x32xf32>
    %cst_48 = arith.constant dense<0.000000e+00> : vector<8xf32>
    %113 = vector.multi_reduction <add>, %110, %cst_48 [1] : vector<8x32xf32> to vector<8xf32>
    %114 = vector.shape_cast %113 : vector<8xf32> to vector<8x1xf32>
    %cst_49 = arith.constant 3.200000e+01 : f32
    %115 = vector.broadcast %cst_49 : f32 to vector<8x1xf32>
    %116 = arith.divf %114, %115 : vector<8x1xf32>
    %117 = vector.broadcast %116 : vector<8x1xf32> to vector<8x32xf32>
    %118 = arith.subf %110, %117 : vector<8x32xf32>
    %119 = arith.mulf %118, %118 : vector<8x32xf32>
    %cst_50 = arith.constant dense<0.000000e+00> : vector<8xf32>
    %120 = vector.multi_reduction <add>, %119, %cst_50 [1] : vector<8x32xf32> to vector<8xf32>
    %121 = vector.shape_cast %120 : vector<8xf32> to vector<8x1xf32>
    %cst_51 = arith.constant 3.200000e+01 : f32
    %122 = vector.broadcast %cst_51 : f32 to vector<8x1xf32>
    %123 = arith.divf %121, %122 : vector<8x1xf32>
    %124 = vector.broadcast %116 : vector<8x1xf32> to vector<8x32xf32>
    %125 = arith.subf %110, %124 : vector<8x32xf32>
    %cst_52 = arith.constant 9.99999974E-6 : f32
    %126 = vector.broadcast %cst_52 : f32 to vector<8x1xf32>
    %127 = arith.addf %123, %126 : vector<8x1xf32>
    %128 = math.rsqrt %127 : vector<8x1xf32>
    %129 = vector.broadcast %128 : vector<8x1xf32> to vector<8x32xf32>
    %130 = arith.mulf %125, %129 : vector<8x32xf32>
    %131 = vector.broadcast %111 : vector<1x32xf32> to vector<8x32xf32>
    %132 = arith.mulf %130, %131 : vector<8x32xf32>
    %133 = vector.broadcast %112 : vector<1x32xf32> to vector<8x32xf32>
    %134 = arith.addf %132, %133 : vector<8x32xf32>
    %c0_53 = arith.constant 0 : index
    %c0_54 = arith.constant 0 : index
    %c0_55 = arith.constant 0 : index
    %135 = vector.load %arg4[%c0_53, %c0_54, %c0_55] : memref<1x1x8xf32, #tpu.memory_space<vmem>>, vector<1x1x8xf32>
    %136 = vector.shape_cast %135 : vector<1x1x8xf32> to vector<1x8xf32>
    %cst_56 = arith.constant 1.000000e+00 : f32
    %137 = vector.broadcast %cst_56 : f32 to vector<1x8xf32>
    %138 = arith.subf %137, %136 : vector<1x8xf32>
    %cst_57 = arith.constant -1.000000e+09 : f32
    %139 = vector.broadcast %cst_57 : f32 to vector<1x8xf32>
    %140 = arith.mulf %138, %139 : vector<1x8xf32>
    %c0_58 = arith.constant 0 : index
    %c0_59 = arith.constant 0 : index
    %141 = vector.load %arg7[%c0_58, %c0_59] : memref<8x8xf32, #tpu.memory_space<vmem>>, vector<8x8xf32>
    %142 = vector.broadcast %140 : vector<1x8xf32> to vector<8x8xf32>
    %143 = arith.addf %142, %141 : vector<8x8xf32>
    %c0_60 = arith.constant 0 : index
    %c0_61 = arith.constant 0 : index
    %c0_62 = arith.constant 0 : index
    %144 = vector.load %arg3[%c0_60, %c0_61, %c0_62] : memref<1x8x1xi32, #tpu.memory_space<vmem>>, vector<1x8x1xi32>
    %145 = vector.shape_cast %144 : vector<1x8x1xi32> to vector<8x1xi32>
    %146 = tpu.iota {dimensions = array<i32: 1>} : vector<8x64xi32>
    %147 = vector.broadcast %145 : vector<8x1xi32> to vector<8x64xi32>
    %148 = arith.cmpi eq, %146, %147 : vector<8x64xi32>
    %cst_63 = arith.constant 1.000000e+00 : f32
    %cst_64 = arith.constant 0.000000e+00 : f32
    %149 = vector.broadcast %cst_63 : f32 to vector<8x64xf32>
    %150 = vector.broadcast %cst_64 : f32 to vector<8x64xf32>
    %151 = arith.select %148, %149, %150 : vector<8x64xi1>, vector<8x64xf32>
    %152 = arith.truncf %151 : vector<8x64xf32> to vector<8x64xbf16>
    %c0_65 = arith.constant 0 : index
    %c1024 = arith.constant 1024 : index
    %153 = vector.load %arg8[%c0_65, %c1024] : memref<32x3840xbf16, #tpu.memory_space<vmem>>, vector<32x64xbf16>
    %cst_66 = arith.constant dense<0.000000e+00> : vector<8x32xf32>
    %154 = tpu.matmul %152, %153, %cst_66 {dimension_numbers = #tpu.dot_dimension_numbers<[1], [1], [0], [0], [0, 0, 1, 0], [], []>} : vector<8x64xbf16>, vector<32x64xbf16>, vector<8x32xf32> -> vector<8x32xf32>
    %c0_67 = arith.constant 0 : index
    %c1152 = arith.constant 1152 : index
    %155 = vector.load %arg8[%c0_67, %c1152] : memref<32x3840xbf16, #tpu.memory_space<vmem>>, vector<8x32xbf16>
    %156 = arith.extf %155 : vector<8x32xbf16> to vector<8x32xf32>
    %157 = arith.addf %154, %156 : vector<8x32xf32>
    %158 = arith.truncf %157 : vector<8x32xf32> to vector<8x32xbf16>
    %c0_68 = arith.constant 0 : index
    %c1280 = arith.constant 1280 : index
    %159 = vector.load %arg8[%c0_68, %c1280] : memref<32x3840xbf16, #tpu.memory_space<vmem>>, vector<32x32xbf16>
    %cst_69 = arith.constant dense<0.000000e+00> : vector<8x32xf32>
    %160 = tpu.matmul %158, %159, %cst_69 {dimension_numbers = #tpu.dot_dimension_numbers<[1], [0], [0], [1], [0, 0, 1, 1], [], []>} : vector<8x32xbf16>, vector<32x32xbf16>, vector<8x32xf32> -> vector<8x32xf32>
    %c10 = arith.constant 10 : index
    %c0_70 = arith.constant 0 : index
    %161 = vector.load %arg9[%c10, %c0_70] : memref<40x128xf32, #tpu.memory_space<vmem>>, vector<1x32xf32>
    %162 = vector.broadcast %161 : vector<1x32xf32> to vector<8x32xf32>
    %163 = arith.addf %160, %162 : vector<8x32xf32>
    %c0_71 = arith.constant 0 : index
    %c1408 = arith.constant 1408 : index
    %164 = vector.load %arg8[%c0_71, %c1408] : memref<32x3840xbf16, #tpu.memory_space<vmem>>, vector<32x32xbf16>
    %cst_72 = arith.constant dense<0.000000e+00> : vector<8x32xf32>
    %165 = tpu.matmul %158, %164, %cst_72 {dimension_numbers = #tpu.dot_dimension_numbers<[1], [0], [0], [1], [0, 0, 1, 1], [], []>} : vector<8x32xbf16>, vector<32x32xbf16>, vector<8x32xf32> -> vector<8x32xf32>
    %c11 = arith.constant 11 : index
    %c0_73 = arith.constant 0 : index
    %166 = vector.load %arg9[%c11, %c0_73] : memref<40x128xf32, #tpu.memory_space<vmem>>, vector<1x32xf32>
    %167 = vector.broadcast %166 : vector<1x32xf32> to vector<8x32xf32>
    %168 = arith.addf %165, %167 : vector<8x32xf32>
    %c0_74 = arith.constant 0 : index
    %c1536 = arith.constant 1536 : index
    %169 = vector.load %arg8[%c0_74, %c1536] : memref<32x3840xbf16, #tpu.memory_space<vmem>>, vector<32x32xbf16>
    %cst_75 = arith.constant dense<0.000000e+00> : vector<8x32xf32>
    %170 = tpu.matmul %158, %169, %cst_75 {dimension_numbers = #tpu.dot_dimension_numbers<[1], [0], [0], [1], [0, 0, 1, 1], [], []>} : vector<8x32xbf16>, vector<32x32xbf16>, vector<8x32xf32> -> vector<8x32xf32>
    %c12 = arith.constant 12 : index
    %c0_76 = arith.constant 0 : index
    %171 = vector.load %arg9[%c12, %c0_76] : memref<40x128xf32, #tpu.memory_space<vmem>>, vector<1x32xf32>
    %172 = vector.broadcast %171 : vector<1x32xf32> to vector<8x32xf32>
    %173 = arith.addf %170, %172 : vector<8x32xf32>
    %174 = arith.truncf %163 : vector<8x32xf32> to vector<8x32xbf16>
    %175 = arith.truncf %168 : vector<8x32xf32> to vector<8x32xbf16>
    %cst_77 = arith.constant dense<0.000000e+00> : vector<8x8xf32>
    %176 = tpu.matmul %174, %175, %cst_77 {dimension_numbers = #tpu.dot_dimension_numbers<[1], [1], [0], [0], [0, 0, 1, 0], [], []>} : vector<8x32xbf16>, vector<8x32xbf16>, vector<8x8xf32> -> vector<8x8xf32>
    %177 = arith.addf %176, %143 : vector<8x8xf32>
    %cst_78 = arith.constant dense<0xFF800000> : vector<8xf32>
    %178 = vector.multi_reduction <maximumf>, %177, %cst_78 [1] : vector<8x8xf32> to vector<8xf32>
    %179 = vector.shape_cast %178 : vector<8xf32> to vector<8x1xf32>
    %180 = vector.broadcast %179 : vector<8x1xf32> to vector<8x8xf32>
    %181 = arith.subf %177, %180 : vector<8x8xf32>
    %182 = math.exp %181 : vector<8x8xf32>
    %cst_79 = arith.constant dense<0.000000e+00> : vector<8xf32>
    %183 = vector.multi_reduction <add>, %182, %cst_79 [1] : vector<8x8xf32> to vector<8xf32>
    %184 = vector.shape_cast %183 : vector<8xf32> to vector<8x1xf32>
    %185 = tpu.reciprocal %184 {approx = true} : vector<8x1xf32> -> vector<8x1xf32>
    %186 = vector.broadcast %185 : vector<8x1xf32> to vector<8x8xf32>
    %187 = arith.mulf %182, %186 : vector<8x8xf32>
    %188 = arith.truncf %187 : vector<8x8xf32> to vector<8x8xbf16>
    %189 = arith.truncf %173 : vector<8x32xf32> to vector<8x32xbf16>
    %cst_80 = arith.constant dense<0.000000e+00> : vector<8x32xf32>
    %190 = tpu.matmul %188, %189, %cst_80 {dimension_numbers = #tpu.dot_dimension_numbers<[1], [0], [0], [1], [0, 0, 1, 1], [], []>} : vector<8x8xbf16>, vector<8x32xbf16>, vector<8x32xf32> -> vector<8x32xf32>
    %191 = arith.truncf %190 : vector<8x32xf32> to vector<8x32xbf16>
    %c0_81 = arith.constant 0 : index
    %c1664 = arith.constant 1664 : index
    %192 = vector.load %arg8[%c0_81, %c1664] : memref<32x3840xbf16, #tpu.memory_space<vmem>>, vector<32x32xbf16>
    %cst_82 = arith.constant dense<0.000000e+00> : vector<8x32xf32>
    %193 = tpu.matmul %191, %192, %cst_82 {dimension_numbers = #tpu.dot_dimension_numbers<[1], [0], [0], [1], [0, 0, 1, 1], [], []>} : vector<8x32xbf16>, vector<32x32xbf16>, vector<8x32xf32> -> vector<8x32xf32>
    %c13 = arith.constant 13 : index
    %c0_83 = arith.constant 0 : index
    %194 = vector.load %arg9[%c13, %c0_83] : memref<40x128xf32, #tpu.memory_space<vmem>>, vector<1x32xf32>
    %195 = vector.broadcast %194 : vector<1x32xf32> to vector<8x32xf32>
    %196 = arith.addf %193, %195 : vector<8x32xf32>
    %197 = arith.addf %157, %196 : vector<8x32xf32>
    %c14 = arith.constant 14 : index
    %c0_84 = arith.constant 0 : index
    %198 = vector.load %arg9[%c14, %c0_84] : memref<40x128xf32, #tpu.memory_space<vmem>>, vector<1x32xf32>
    %c15 = arith.constant 15 : index
    %c0_85 = arith.constant 0 : index
    %199 = vector.load %arg9[%c15, %c0_85] : memref<40x128xf32, #tpu.memory_space<vmem>>, vector<1x32xf32>
    %cst_86 = arith.constant dense<0.000000e+00> : vector<8xf32>
    %200 = vector.multi_reduction <add>, %197, %cst_86 [1] : vector<8x32xf32> to vector<8xf32>
    %201 = vector.shape_cast %200 : vector<8xf32> to vector<8x1xf32>
    %cst_87 = arith.constant 3.200000e+01 : f32
    %202 = vector.broadcast %cst_87 : f32 to vector<8x1xf32>
    %203 = arith.divf %201, %202 : vector<8x1xf32>
    %204 = vector.broadcast %203 : vector<8x1xf32> to vector<8x32xf32>
    %205 = arith.subf %197, %204 : vector<8x32xf32>
    %206 = arith.mulf %205, %205 : vector<8x32xf32>
    %cst_88 = arith.constant dense<0.000000e+00> : vector<8xf32>
    %207 = vector.multi_reduction <add>, %206, %cst_88 [1] : vector<8x32xf32> to vector<8xf32>
    %208 = vector.shape_cast %207 : vector<8xf32> to vector<8x1xf32>
    %cst_89 = arith.constant 3.200000e+01 : f32
    %209 = vector.broadcast %cst_89 : f32 to vector<8x1xf32>
    %210 = arith.divf %208, %209 : vector<8x1xf32>
    %211 = vector.broadcast %203 : vector<8x1xf32> to vector<8x32xf32>
    %212 = arith.subf %197, %211 : vector<8x32xf32>
    %cst_90 = arith.constant 9.99999974E-6 : f32
    %213 = vector.broadcast %cst_90 : f32 to vector<8x1xf32>
    %214 = arith.addf %210, %213 : vector<8x1xf32>
    %215 = math.rsqrt %214 : vector<8x1xf32>
    %216 = vector.broadcast %215 : vector<8x1xf32> to vector<8x32xf32>
    %217 = arith.mulf %212, %216 : vector<8x32xf32>
    %218 = vector.broadcast %198 : vector<1x32xf32> to vector<8x32xf32>
    %219 = arith.mulf %217, %218 : vector<8x32xf32>
    %220 = vector.broadcast %199 : vector<1x32xf32> to vector<8x32xf32>
    %221 = arith.addf %219, %220 : vector<8x32xf32>
    %222 = arith.truncf %221 : vector<8x32xf32> to vector<8x32xbf16>
    %223 = arith.truncf %134 : vector<8x32xf32> to vector<8x32xbf16>
    %c0_91 = arith.constant 0 : index
    %c3072 = arith.constant 3072 : index
    %224 = vector.load %arg8[%c0_91, %c3072] : memref<32x3840xbf16, #tpu.memory_space<vmem>>, vector<32x32xbf16>
    %cst_92 = arith.constant dense<0.000000e+00> : vector<8x32xf32>
    %225 = tpu.matmul %222, %224, %cst_92 {dimension_numbers = #tpu.dot_dimension_numbers<[1], [0], [0], [1], [0, 0, 1, 1], [], []>} : vector<8x32xbf16>, vector<32x32xbf16>, vector<8x32xf32> -> vector<8x32xf32>
    %c30 = arith.constant 30 : index
    %c0_93 = arith.constant 0 : index
    %226 = vector.load %arg9[%c30, %c0_93] : memref<40x128xf32, #tpu.memory_space<vmem>>, vector<1x32xf32>
    %227 = vector.broadcast %226 : vector<1x32xf32> to vector<8x32xf32>
    %228 = arith.addf %225, %227 : vector<8x32xf32>
    %c0_94 = arith.constant 0 : index
    %c3200 = arith.constant 3200 : index
    %229 = vector.load %arg8[%c0_94, %c3200] : memref<32x3840xbf16, #tpu.memory_space<vmem>>, vector<32x32xbf16>
    %cst_95 = arith.constant dense<0.000000e+00> : vector<8x32xf32>
    %230 = tpu.matmul %223, %229, %cst_95 {dimension_numbers = #tpu.dot_dimension_numbers<[1], [0], [0], [1], [0, 0, 1, 1], [], []>} : vector<8x32xbf16>, vector<32x32xbf16>, vector<8x32xf32> -> vector<8x32xf32>
    %c31 = arith.constant 31 : index
    %c0_96 = arith.constant 0 : index
    %231 = vector.load %arg9[%c31, %c0_96] : memref<40x128xf32, #tpu.memory_space<vmem>>, vector<1x32xf32>
    %232 = vector.broadcast %231 : vector<1x32xf32> to vector<8x32xf32>
    %233 = arith.addf %230, %232 : vector<8x32xf32>
    %c0_97 = arith.constant 0 : index
    %c3328 = arith.constant 3328 : index
    %234 = vector.load %arg8[%c0_97, %c3328] : memref<32x3840xbf16, #tpu.memory_space<vmem>>, vector<32x32xbf16>
    %cst_98 = arith.constant dense<0.000000e+00> : vector<8x32xf32>
    %235 = tpu.matmul %223, %234, %cst_98 {dimension_numbers = #tpu.dot_dimension_numbers<[1], [0], [0], [1], [0, 0, 1, 1], [], []>} : vector<8x32xbf16>, vector<32x32xbf16>, vector<8x32xf32> -> vector<8x32xf32>
    %c32 = arith.constant 32 : index
    %c0_99 = arith.constant 0 : index
    %236 = vector.load %arg9[%c32, %c0_99] : memref<40x128xf32, #tpu.memory_space<vmem>>, vector<1x32xf32>
    %237 = vector.broadcast %236 : vector<1x32xf32> to vector<8x32xf32>
    %238 = arith.addf %235, %237 : vector<8x32xf32>
    %239 = arith.truncf %228 : vector<8x32xf32> to vector<8x32xbf16>
    %240 = arith.truncf %233 : vector<8x32xf32> to vector<8x32xbf16>
    %cst_100 = arith.constant dense<0.000000e+00> : vector<8x8xf32>
    %241 = tpu.matmul %239, %240, %cst_100 {dimension_numbers = #tpu.dot_dimension_numbers<[1], [1], [0], [0], [0, 0, 1, 0], [], []>} : vector<8x32xbf16>, vector<8x32xbf16>, vector<8x8xf32> -> vector<8x8xf32>
    %242 = vector.broadcast %5 : vector<1x8xf32> to vector<8x8xf32>
    %243 = arith.addf %241, %242 : vector<8x8xf32>
    %cst_101 = arith.constant dense<0xFF800000> : vector<8xf32>
    %244 = vector.multi_reduction <maximumf>, %243, %cst_101 [1] : vector<8x8xf32> to vector<8xf32>
    %245 = vector.shape_cast %244 : vector<8xf32> to vector<8x1xf32>
    %246 = vector.broadcast %245 : vector<8x1xf32> to vector<8x8xf32>
    %247 = arith.subf %243, %246 : vector<8x8xf32>
    %248 = math.exp %247 : vector<8x8xf32>
    %cst_102 = arith.constant dense<0.000000e+00> : vector<8xf32>
    %249 = vector.multi_reduction <add>, %248, %cst_102 [1] : vector<8x8xf32> to vector<8xf32>
    %250 = vector.shape_cast %249 : vector<8xf32> to vector<8x1xf32>
    %251 = tpu.reciprocal %250 {approx = true} : vector<8x1xf32> -> vector<8x1xf32>
    %252 = vector.broadcast %251 : vector<8x1xf32> to vector<8x8xf32>
    %253 = arith.mulf %248, %252 : vector<8x8xf32>
    %254 = arith.truncf %253 : vector<8x8xf32> to vector<8x8xbf16>
    %255 = arith.truncf %238 : vector<8x32xf32> to vector<8x32xbf16>
    %cst_103 = arith.constant dense<0.000000e+00> : vector<8x32xf32>
    %256 = tpu.matmul %254, %255, %cst_103 {dimension_numbers = #tpu.dot_dimension_numbers<[1], [0], [0], [1], [0, 0, 1, 1], [], []>} : vector<8x8xbf16>, vector<8x32xbf16>, vector<8x32xf32> -> vector<8x32xf32>
    %257 = arith.truncf %256 : vector<8x32xf32> to vector<8x32xbf16>
    %c0_104 = arith.constant 0 : index
    %c3456 = arith.constant 3456 : index
    %258 = vector.load %arg8[%c0_104, %c3456] : memref<32x3840xbf16, #tpu.memory_space<vmem>>, vector<32x32xbf16>
    %cst_105 = arith.constant dense<0.000000e+00> : vector<8x32xf32>
    %259 = tpu.matmul %257, %258, %cst_105 {dimension_numbers = #tpu.dot_dimension_numbers<[1], [0], [0], [1], [0, 0, 1, 1], [], []>} : vector<8x32xbf16>, vector<32x32xbf16>, vector<8x32xf32> -> vector<8x32xf32>
    %c33 = arith.constant 33 : index
    %c0_106 = arith.constant 0 : index
    %260 = vector.load %arg9[%c33, %c0_106] : memref<40x128xf32, #tpu.memory_space<vmem>>, vector<1x32xf32>
    %261 = vector.broadcast %260 : vector<1x32xf32> to vector<8x32xf32>
    %262 = arith.addf %259, %261 : vector<8x32xf32>
    %263 = arith.addf %221, %262 : vector<8x32xf32>
    %c18 = arith.constant 18 : index
    %c0_107 = arith.constant 0 : index
    %264 = vector.load %arg9[%c18, %c0_107] : memref<40x128xf32, #tpu.memory_space<vmem>>, vector<1x32xf32>
    %c19 = arith.constant 19 : index
    %c0_108 = arith.constant 0 : index
    %265 = vector.load %arg9[%c19, %c0_108] : memref<40x128xf32, #tpu.memory_space<vmem>>, vector<1x32xf32>
    %cst_109 = arith.constant dense<0.000000e+00> : vector<8xf32>
    %266 = vector.multi_reduction <add>, %263, %cst_109 [1] : vector<8x32xf32> to vector<8xf32>
    %267 = vector.shape_cast %266 : vector<8xf32> to vector<8x1xf32>
    %cst_110 = arith.constant 3.200000e+01 : f32
    %268 = vector.broadcast %cst_110 : f32 to vector<8x1xf32>
    %269 = arith.divf %267, %268 : vector<8x1xf32>
    %270 = vector.broadcast %269 : vector<8x1xf32> to vector<8x32xf32>
    %271 = arith.subf %263, %270 : vector<8x32xf32>
    %272 = arith.mulf %271, %271 : vector<8x32xf32>
    %cst_111 = arith.constant dense<0.000000e+00> : vector<8xf32>
    %273 = vector.multi_reduction <add>, %272, %cst_111 [1] : vector<8x32xf32> to vector<8xf32>
    %274 = vector.shape_cast %273 : vector<8xf32> to vector<8x1xf32>
    %cst_112 = arith.constant 3.200000e+01 : f32
    %275 = vector.broadcast %cst_112 : f32 to vector<8x1xf32>
    %276 = arith.divf %274, %275 : vector<8x1xf32>
    %277 = vector.broadcast %269 : vector<8x1xf32> to vector<8x32xf32>
    %278 = arith.subf %263, %277 : vector<8x32xf32>
    %cst_113 = arith.constant 9.99999974E-6 : f32
    %279 = vector.broadcast %cst_113 : f32 to vector<8x1xf32>
    %280 = arith.addf %276, %279 : vector<8x1xf32>
    %281 = math.rsqrt %280 : vector<8x1xf32>
    %282 = vector.broadcast %281 : vector<8x1xf32> to vector<8x32xf32>
    %283 = arith.mulf %278, %282 : vector<8x32xf32>
    %284 = vector.broadcast %264 : vector<1x32xf32> to vector<8x32xf32>
    %285 = arith.mulf %283, %284 : vector<8x32xf32>
    %286 = vector.broadcast %265 : vector<1x32xf32> to vector<8x32xf32>
    %287 = arith.addf %285, %286 : vector<8x32xf32>
    %288 = arith.truncf %287 : vector<8x32xf32> to vector<8x32xbf16>
    %c0_114 = arith.constant 0 : index
    %c1792 = arith.constant 1792 : index
    %289 = vector.load %arg8[%c0_114, %c1792] : memref<32x3840xbf16, #tpu.memory_space<vmem>>, vector<32x64xbf16>
    %cst_115 = arith.constant dense<0.000000e+00> : vector<8x64xf32>
    %290 = tpu.matmul %288, %289, %cst_115 {dimension_numbers = #tpu.dot_dimension_numbers<[1], [0], [0], [1], [0, 0, 1, 1], [], []>} : vector<8x32xbf16>, vector<32x64xbf16>, vector<8x64xf32> -> vector<8x64xf32>
    %c16 = arith.constant 16 : index
    %c0_116 = arith.constant 0 : index
    %291 = vector.load %arg9[%c16, %c0_116] : memref<40x128xf32, #tpu.memory_space<vmem>>, vector<1x64xf32>
    %292 = vector.broadcast %291 : vector<1x64xf32> to vector<8x64xf32>
    %293 = arith.addf %290, %292 : vector<8x64xf32>
    %294 = arith.mulf %293, %293 : vector<8x64xf32>
    %295 = arith.mulf %293, %294 : vector<8x64xf32>
    %cst_117 = arith.constant 4.471500e-02 : f32
    %296 = vector.broadcast %cst_117 : f32 to vector<8x64xf32>
    %297 = arith.mulf %296, %295 : vector<8x64xf32>
    %298 = arith.addf %293, %297 : vector<8x64xf32>
    %cst_118 = arith.constant 0.797884583 : f32
    %299 = vector.broadcast %cst_118 : f32 to vector<8x64xf32>
    %300 = arith.mulf %299, %298 : vector<8x64xf32>
    %301 = math.tanh %300 : vector<8x64xf32>
    %cst_119 = arith.constant 1.000000e+00 : f32
    %302 = vector.broadcast %cst_119 : f32 to vector<8x64xf32>
    %303 = arith.addf %302, %301 : vector<8x64xf32>
    %cst_120 = arith.constant 5.000000e-01 : f32
    %304 = vector.broadcast %cst_120 : f32 to vector<8x64xf32>
    %305 = arith.mulf %304, %303 : vector<8x64xf32>
    %306 = arith.mulf %293, %305 : vector<8x64xf32>
    %307 = arith.truncf %306 : vector<8x64xf32> to vector<8x64xbf16>
    %c0_121 = arith.constant 0 : index
    %c1920 = arith.constant 1920 : index
    %308 = vector.load %arg8[%c0_121, %c1920] : memref<32x3840xbf16, #tpu.memory_space<vmem>>, vector<32x64xbf16>
    %cst_122 = arith.constant dense<0.000000e+00> : vector<8x32xf32>
    %309 = tpu.matmul %307, %308, %cst_122 {dimension_numbers = #tpu.dot_dimension_numbers<[1], [1], [0], [0], [0, 0, 1, 0], [], []>} : vector<8x64xbf16>, vector<32x64xbf16>, vector<8x32xf32> -> vector<8x32xf32>
    %c17 = arith.constant 17 : index
    %c0_123 = arith.constant 0 : index
    %310 = vector.load %arg9[%c17, %c0_123] : memref<40x128xf32, #tpu.memory_space<vmem>>, vector<1x32xf32>
    %311 = vector.broadcast %310 : vector<1x32xf32> to vector<8x32xf32>
    %312 = arith.addf %309, %311 : vector<8x32xf32>
    %313 = arith.addf %287, %312 : vector<8x32xf32>
    %c34 = arith.constant 34 : index
    %c0_124 = arith.constant 0 : index
    %314 = vector.load %arg9[%c34, %c0_124] : memref<40x128xf32, #tpu.memory_space<vmem>>, vector<1x32xf32>
    %c35 = arith.constant 35 : index
    %c0_125 = arith.constant 0 : index
    %315 = vector.load %arg9[%c35, %c0_125] : memref<40x128xf32, #tpu.memory_space<vmem>>, vector<1x32xf32>
    %cst_126 = arith.constant dense<0.000000e+00> : vector<8xf32>
    %316 = vector.multi_reduction <add>, %313, %cst_126 [1] : vector<8x32xf32> to vector<8xf32>
    %317 = vector.shape_cast %316 : vector<8xf32> to vector<8x1xf32>
    %cst_127 = arith.constant 3.200000e+01 : f32
    %318 = vector.broadcast %cst_127 : f32 to vector<8x1xf32>
    %319 = arith.divf %317, %318 : vector<8x1xf32>
    %320 = vector.broadcast %319 : vector<8x1xf32> to vector<8x32xf32>
    %321 = arith.subf %313, %320 : vector<8x32xf32>
    %322 = arith.mulf %321, %321 : vector<8x32xf32>
    %cst_128 = arith.constant dense<0.000000e+00> : vector<8xf32>
    %323 = vector.multi_reduction <add>, %322, %cst_128 [1] : vector<8x32xf32> to vector<8xf32>
    %324 = vector.shape_cast %323 : vector<8xf32> to vector<8x1xf32>
    %cst_129 = arith.constant 3.200000e+01 : f32
    %325 = vector.broadcast %cst_129 : f32 to vector<8x1xf32>
    %326 = arith.divf %324, %325 : vector<8x1xf32>
    %327 = vector.broadcast %319 : vector<8x1xf32> to vector<8x32xf32>
    %328 = arith.subf %313, %327 : vector<8x32xf32>
    %cst_130 = arith.constant 9.99999974E-6 : f32
    %329 = vector.broadcast %cst_130 : f32 to vector<8x1xf32>
    %330 = arith.addf %326, %329 : vector<8x1xf32>
    %331 = math.rsqrt %330 : vector<8x1xf32>
    %332 = vector.broadcast %331 : vector<8x1xf32> to vector<8x32xf32>
    %333 = arith.mulf %328, %332 : vector<8x32xf32>
    %334 = vector.broadcast %314 : vector<1x32xf32> to vector<8x32xf32>
    %335 = arith.mulf %333, %334 : vector<8x32xf32>
    %336 = vector.broadcast %315 : vector<1x32xf32> to vector<8x32xf32>
    %337 = arith.addf %335, %336 : vector<8x32xf32>
    %338 = arith.truncf %337 : vector<8x32xf32> to vector<8x32xbf16>
    %c0_131 = arith.constant 0 : index
    %c3584 = arith.constant 3584 : index
    %339 = vector.load %arg8[%c0_131, %c3584] : memref<32x3840xbf16, #tpu.memory_space<vmem>>, vector<32x128xbf16>
    %cst_132 = arith.constant dense<0.000000e+00> : vector<8x128xf32>
    %340 = tpu.matmul %338, %339, %cst_132 {dimension_numbers = #tpu.dot_dimension_numbers<[1], [0], [0], [1], [0, 0, 1, 1], [], []>} : vector<8x32xbf16>, vector<32x128xbf16>, vector<8x128xf32> -> vector<8x128xf32>
    %c36 = arith.constant 36 : index
    %c0_133 = arith.constant 0 : index
    %341 = vector.load %arg9[%c36, %c0_133] : memref<40x128xf32, #tpu.memory_space<vmem>>, vector<1x128xf32>
    %342 = vector.broadcast %341 : vector<1x128xf32> to vector<8x128xf32>
    %343 = arith.addf %340, %342 : vector<8x128xf32>
    %c0_134 = arith.constant 0 : index
    %c0_135 = arith.constant 0 : index
    %c0_136 = arith.constant 0 : index
    %344 = vector.load %arg10[%c0_134, %c0_135, %c0_136] : memref<1x8x128xf32, #tpu.memory_space<vmem>>, vector<1x8x128xf32>
    %345 = vector.shape_cast %344 : vector<1x8x128xf32> to vector<8x128xf32>
    %346 = vector.shape_cast %343 : vector<8x128xf32> to vector<1x8x128xf32>
    tpu.vector_store %arg10[%c0_134, %c0_135, %c0_136], %346 {strides = array<i32>} : memref<1x8x128xf32, #tpu.memory_space<vmem>>, vector<1x8x128xf32>,
    %c0_137 = arith.constant 0 : index
    %c0_138 = arith.constant 0 : index
    %c0_139 = arith.constant 0 : index
    %347 = vector.load %arg11[%c0_137, %c0_138, %c0_139] : memref<1x8x32xf32, #tpu.memory_space<vmem>>, vector<1x8x32xf32>
    %348 = vector.shape_cast %347 : vector<1x8x32xf32> to vector<8x32xf32>
    %349 = vector.shape_cast %337 : vector<8x32xf32> to vector<1x8x32xf32>
    tpu.vector_store %arg11[%c0_137, %c0_138, %c0_139], %349 {strides = array<i32>} : memref<1x8x32xf32, #tpu.memory_space<vmem>>, vector<1x8x32xf32>,
    %c0_140 = arith.constant 0 : index
    %c0_141 = arith.constant 0 : index
    %c0_142 = arith.constant 0 : index
    %350 = vector.load %arg6[%c0_140, %c0_141, %c0_142] : memref<1x1x16xf32, #tpu.memory_space<vmem>>, vector<1x1x16xf32>
    %351 = vector.shape_cast %350 : vector<1x1x16xf32> to vector<1x16xf32>
    %cst_143 = arith.constant 1.000000e+00 : f32
    %352 = vector.broadcast %cst_143 : f32 to vector<1x16xf32>
    %353 = arith.subf %352, %351 : vector<1x16xf32>
    %cst_144 = arith.constant -1.000000e+09 : f32
    %354 = vector.broadcast %cst_144 : f32 to vector<1x16xf32>
    %355 = arith.mulf %353, %354 : vector<1x16xf32>
    %c0_145 = arith.constant 0 : index
    %c0_146 = arith.constant 0 : index
    %c0_147 = arith.constant 0 : index
    %356 = vector.load %arg5[%c0_145, %c0_146, %c0_147] : memref<1x16x1xi32, #tpu.memory_space<vmem>>, vector<1x16x1xi32>
    %357 = vector.shape_cast %356 : vector<1x16x1xi32> to vector<16x1xi32>
    %358 = tpu.iota {dimensions = array<i32: 1>} : vector<16x64xi32>
    %359 = vector.broadcast %357 : vector<16x1xi32> to vector<16x64xi32>
    %360 = arith.cmpi eq, %358, %359 : vector<16x64xi32>
    %cst_148 = arith.constant 1.000000e+00 : f32
    %cst_149 = arith.constant 0.000000e+00 : f32
    %361 = vector.broadcast %cst_148 : f32 to vector<16x64xf32>
    %362 = vector.broadcast %cst_149 : f32 to vector<16x64xf32>
    %363 = arith.select %360, %361, %362 : vector<16x64xi1>, vector<16x64xf32>
    %364 = arith.truncf %363 : vector<16x64xf32> to vector<16x64xbf16>
    %c0_150 = arith.constant 0 : index
    %c2048 = arith.constant 2048 : index
    %365 = vector.load %arg8[%c0_150, %c2048] : memref<32x3840xbf16, #tpu.memory_space<vmem>>, vector<32x64xbf16>
    %cst_151 = arith.constant dense<0.000000e+00> : vector<16x32xf32>
    %366 = tpu.matmul %364, %365, %cst_151 {dimension_numbers = #tpu.dot_dimension_numbers<[1], [1], [0], [0], [0, 0, 1, 0], [], []>} : vector<16x64xbf16>, vector<32x64xbf16>, vector<16x32xf32> -> vector<16x32xf32>
    %c0_152 = arith.constant 0 : index
    %c2176 = arith.constant 2176 : index
    %367 = vector.load %arg8[%c0_152, %c2176] : memref<32x3840xbf16, #tpu.memory_space<vmem>>, vector<16x32xbf16>
    %368 = arith.extf %367 : vector<16x32xbf16> to vector<16x32xf32>
    %369 = arith.addf %366, %368 : vector<16x32xf32>
    %370 = arith.truncf %369 : vector<16x32xf32> to vector<16x32xbf16>
    %c0_153 = arith.constant 0 : index
    %c2304 = arith.constant 2304 : index
    %371 = vector.load %arg8[%c0_153, %c2304] : memref<32x3840xbf16, #tpu.memory_space<vmem>>, vector<32x32xbf16>
    %cst_154 = arith.constant dense<0.000000e+00> : vector<16x32xf32>
    %372 = tpu.matmul %370, %371, %cst_154 {dimension_numbers = #tpu.dot_dimension_numbers<[1], [0], [0], [1], [0, 0, 1, 1], [], []>} : vector<16x32xbf16>, vector<32x32xbf16>, vector<16x32xf32> -> vector<16x32xf32>
    %c20 = arith.constant 20 : index
    %c0_155 = arith.constant 0 : index
    %373 = vector.load %arg9[%c20, %c0_155] : memref<40x128xf32, #tpu.memory_space<vmem>>, vector<1x32xf32>
    %374 = vector.broadcast %373 : vector<1x32xf32> to vector<16x32xf32>
    %375 = arith.addf %372, %374 : vector<16x32xf32>
    %c0_156 = arith.constant 0 : index
    %c2432 = arith.constant 2432 : index
    %376 = vector.load %arg8[%c0_156, %c2432] : memref<32x3840xbf16, #tpu.memory_space<vmem>>, vector<32x32xbf16>
    %cst_157 = arith.constant dense<0.000000e+00> : vector<16x32xf32>
    %377 = tpu.matmul %370, %376, %cst_157 {dimension_numbers = #tpu.dot_dimension_numbers<[1], [0], [0], [1], [0, 0, 1, 1], [], []>} : vector<16x32xbf16>, vector<32x32xbf16>, vector<16x32xf32> -> vector<16x32xf32>
    %c21 = arith.constant 21 : index
    %c0_158 = arith.constant 0 : index
    %378 = vector.load %arg9[%c21, %c0_158] : memref<40x128xf32, #tpu.memory_space<vmem>>, vector<1x32xf32>
    %379 = vector.broadcast %378 : vector<1x32xf32> to vector<16x32xf32>
    %380 = arith.addf %377, %379 : vector<16x32xf32>
    %c0_159 = arith.constant 0 : index
    %c2560 = arith.constant 2560 : index
    %381 = vector.load %arg8[%c0_159, %c2560] : memref<32x3840xbf16, #tpu.memory_space<vmem>>, vector<32x32xbf16>
    %cst_160 = arith.constant dense<0.000000e+00> : vector<16x32xf32>
    %382 = tpu.matmul %370, %381, %cst_160 {dimension_numbers = #tpu.dot_dimension_numbers<[1], [0], [0], [1], [0, 0, 1, 1], [], []>} : vector<16x32xbf16>, vector<32x32xbf16>, vector<16x32xf32> -> vector<16x32xf32>
    %c22 = arith.constant 22 : index
    %c0_161 = arith.constant 0 : index
    %383 = vector.load %arg9[%c22, %c0_161] : memref<40x128xf32, #tpu.memory_space<vmem>>, vector<1x32xf32>
    %384 = vector.broadcast %383 : vector<1x32xf32> to vector<16x32xf32>
    %385 = arith.addf %382, %384 : vector<16x32xf32>
    %386 = arith.truncf %375 : vector<16x32xf32> to vector<16x32xbf16>
    %387 = arith.truncf %380 : vector<16x32xf32> to vector<16x32xbf16>
    %cst_162 = arith.constant dense<0.000000e+00> : vector<16x16xf32>
    %388 = tpu.matmul %386, %387, %cst_162 {dimension_numbers = #tpu.dot_dimension_numbers<[1], [1], [0], [0], [0, 0, 1, 0], [], []>} : vector<16x32xbf16>, vector<16x32xbf16>, vector<16x16xf32> -> vector<16x16xf32>
    %389 = vector.broadcast %355 : vector<1x16xf32> to vector<16x16xf32>
    %390 = arith.addf %388, %389 : vector<16x16xf32>
    %cst_163 = arith.constant dense<0xFF800000> : vector<16xf32>
    %391 = vector.multi_reduction <maximumf>, %390, %cst_163 [1] : vector<16x16xf32> to vector<16xf32>
    %392 = vector.shape_cast %391 : vector<16xf32> to vector<16x1xf32>
    %393 = vector.broadcast %392 : vector<16x1xf32> to vector<16x16xf32>
    %394 = arith.subf %390, %393 : vector<16x16xf32>
    %395 = math.exp %394 : vector<16x16xf32>
    %cst_164 = arith.constant dense<0.000000e+00> : vector<16xf32>
    %396 = vector.multi_reduction <add>, %395, %cst_164 [1] : vector<16x16xf32> to vector<16xf32>
    %397 = vector.shape_cast %396 : vector<16xf32> to vector<16x1xf32>
    %398 = tpu.reciprocal %397 {approx = true} : vector<16x1xf32> -> vector<16x1xf32>
    %399 = vector.broadcast %398 : vector<16x1xf32> to vector<16x16xf32>
    %400 = arith.mulf %395, %399 : vector<16x16xf32>
    %401 = arith.truncf %400 : vector<16x16xf32> to vector<16x16xbf16>
    %402 = arith.truncf %385 : vector<16x32xf32> to vector<16x32xbf16>
    %cst_165 = arith.constant dense<0.000000e+00> : vector<16x32xf32>
    %403 = tpu.matmul %401, %402, %cst_165 {dimension_numbers = #tpu.dot_dimension_numbers<[1], [0], [0], [1], [0, 0, 1, 1], [], []>} : vector<16x16xbf16>, vector<16x32xbf16>, vector<16x32xf32> -> vector<16x32xf32>
    %404 = arith.truncf %403 : vector<16x32xf32> to vector<16x32xbf16>
    %c0_166 = arith.constant 0 : index
    %c2688 = arith.constant 2688 : index
    %405 = vector.load %arg8[%c0_166, %c2688] : memref<32x3840xbf16, #tpu.memory_space<vmem>>, vector<32x32xbf16>
    %cst_167 = arith.constant dense<0.000000e+00> : vector<16x32xf32>
    %406 = tpu.matmul %404, %405, %cst_167 {dimension_numbers = #tpu.dot_dimension_numbers<[1], [0], [0], [1], [0, 0, 1, 1], [], []>} : vector<16x32xbf16>, vector<32x32xbf16>, vector<16x32xf32> -> vector<16x32xf32>
    %c23 = arith.constant 23 : index
    %c0_168 = arith.constant 0 : index
    %407 = vector.load %arg9[%c23, %c0_168] : memref<40x128xf32, #tpu.memory_space<vmem>>, vector<1x32xf32>
    %408 = vector.broadcast %407 : vector<1x32xf32> to vector<16x32xf32>
    %409 = arith.addf %406, %408 : vector<16x32xf32>
    %410 = arith.addf %369, %409 : vector<16x32xf32>
    %c24 = arith.constant 24 : index
    %c0_169 = arith.constant 0 : index
    %411 = vector.load %arg9[%c24, %c0_169] : memref<40x128xf32, #tpu.memory_space<vmem>>, vector<1x32xf32>
    %c25 = arith.constant 25 : index
    %c0_170 = arith.constant 0 : index
    %412 = vector.load %arg9[%c25, %c0_170] : memref<40x128xf32, #tpu.memory_space<vmem>>, vector<1x32xf32>
    %cst_171 = arith.constant dense<0.000000e+00> : vector<16xf32>
    %413 = vector.multi_reduction <add>, %410, %cst_171 [1] : vector<16x32xf32> to vector<16xf32>
    %414 = vector.shape_cast %413 : vector<16xf32> to vector<16x1xf32>
    %cst_172 = arith.constant 3.200000e+01 : f32
    %415 = vector.broadcast %cst_172 : f32 to vector<16x1xf32>
    %416 = arith.divf %414, %415 : vector<16x1xf32>
    %417 = vector.broadcast %416 : vector<16x1xf32> to vector<16x32xf32>
    %418 = arith.subf %410, %417 : vector<16x32xf32>
    %419 = arith.mulf %418, %418 : vector<16x32xf32>
    %cst_173 = arith.constant dense<0.000000e+00> : vector<16xf32>
    %420 = vector.multi_reduction <add>, %419, %cst_173 [1] : vector<16x32xf32> to vector<16xf32>
    %421 = vector.shape_cast %420 : vector<16xf32> to vector<16x1xf32>
    %cst_174 = arith.constant 3.200000e+01 : f32
    %422 = vector.broadcast %cst_174 : f32 to vector<16x1xf32>
    %423 = arith.divf %421, %422 : vector<16x1xf32>
    %424 = vector.broadcast %416 : vector<16x1xf32> to vector<16x32xf32>
    %425 = arith.subf %410, %424 : vector<16x32xf32>
    %cst_175 = arith.constant 9.99999974E-6 : f32
    %426 = vector.broadcast %cst_175 : f32 to vector<16x1xf32>
    %427 = arith.addf %423, %426 : vector<16x1xf32>
    %428 = math.rsqrt %427 : vector<16x1xf32>
    %429 = vector.broadcast %428 : vector<16x1xf32> to vector<16x32xf32>
    %430 = arith.mulf %425, %429 : vector<16x32xf32>
    %431 = vector.broadcast %411 : vector<1x32xf32> to vector<16x32xf32>
    %432 = arith.mulf %430, %431 : vector<16x32xf32>
    %433 = vector.broadcast %412 : vector<1x32xf32> to vector<16x32xf32>
    %434 = arith.addf %432, %433 : vector<16x32xf32>
    %435 = arith.truncf %434 : vector<16x32xf32> to vector<16x32xbf16>
    %c0_176 = arith.constant 0 : index
    %c2816 = arith.constant 2816 : index
    %436 = vector.load %arg8[%c0_176, %c2816] : memref<32x3840xbf16, #tpu.memory_space<vmem>>, vector<32x64xbf16>
    %cst_177 = arith.constant dense<0.000000e+00> : vector<16x64xf32>
    %437 = tpu.matmul %435, %436, %cst_177 {dimension_numbers = #tpu.dot_dimension_numbers<[1], [0], [0], [1], [0, 0, 1, 1], [], []>} : vector<16x32xbf16>, vector<32x64xbf16>, vector<16x64xf32> -> vector<16x64xf32>
    %c26 = arith.constant 26 : index
    %c0_178 = arith.constant 0 : index
    %438 = vector.load %arg9[%c26, %c0_178] : memref<40x128xf32, #tpu.memory_space<vmem>>, vector<1x64xf32>
    %439 = vector.broadcast %438 : vector<1x64xf32> to vector<16x64xf32>
    %440 = arith.addf %437, %439 : vector<16x64xf32>
    %441 = arith.mulf %440, %440 : vector<16x64xf32>
    %442 = arith.mulf %440, %441 : vector<16x64xf32>
    %cst_179 = arith.constant 4.471500e-02 : f32
    %443 = vector.broadcast %cst_179 : f32 to vector<16x64xf32>
    %444 = arith.mulf %443, %442 : vector<16x64xf32>
    %445 = arith.addf %440, %444 : vector<16x64xf32>
    %cst_180 = arith.constant 0.797884583 : f32
    %446 = vector.broadcast %cst_180 : f32 to vector<16x64xf32>
    %447 = arith.mulf %446, %445 : vector<16x64xf32>
    %448 = math.tanh %447 : vector<16x64xf32>
    %cst_181 = arith.constant 1.000000e+00 : f32
    %449 = vector.broadcast %cst_181 : f32 to vector<16x64xf32>
    %450 = arith.addf %449, %448 : vector<16x64xf32>
    %cst_182 = arith.constant 5.000000e-01 : f32
    %451 = vector.broadcast %cst_182 : f32 to vector<16x64xf32>
    %452 = arith.mulf %451, %450 : vector<16x64xf32>
    %453 = arith.mulf %440, %452 : vector<16x64xf32>
    %454 = arith.truncf %453 : vector<16x64xf32> to vector<16x64xbf16>
    %c0_183 = arith.constant 0 : index
    %c2944 = arith.constant 2944 : index
    %455 = vector.load %arg8[%c0_183, %c2944] : memref<32x3840xbf16, #tpu.memory_space<vmem>>, vector<32x64xbf16>
    %cst_184 = arith.constant dense<0.000000e+00> : vector<16x32xf32>
    %456 = tpu.matmul %454, %455, %cst_184 {dimension_numbers = #tpu.dot_dimension_numbers<[1], [1], [0], [0], [0, 0, 1, 0], [], []>} : vector<16x64xbf16>, vector<32x64xbf16>, vector<16x32xf32> -> vector<16x32xf32>
    %c27 = arith.constant 27 : index
    %c0_185 = arith.constant 0 : index
    %457 = vector.load %arg9[%c27, %c0_185] : memref<40x128xf32, #tpu.memory_space<vmem>>, vector<1x32xf32>
    %458 = vector.broadcast %457 : vector<1x32xf32> to vector<16x32xf32>
    %459 = arith.addf %456, %458 : vector<16x32xf32>
    %460 = arith.addf %434, %459 : vector<16x32xf32>
    %c28 = arith.constant 28 : index
    %c0_186 = arith.constant 0 : index
    %461 = vector.load %arg9[%c28, %c0_186] : memref<40x128xf32, #tpu.memory_space<vmem>>, vector<1x32xf32>
    %c29 = arith.constant 29 : index
    %c0_187 = arith.constant 0 : index
    %462 = vector.load %arg9[%c29, %c0_187] : memref<40x128xf32, #tpu.memory_space<vmem>>, vector<1x32xf32>
    %cst_188 = arith.constant dense<0.000000e+00> : vector<16xf32>
    %463 = vector.multi_reduction <add>, %460, %cst_188 [1] : vector<16x32xf32> to vector<16xf32>
    %464 = vector.shape_cast %463 : vector<16xf32> to vector<16x1xf32>
    %cst_189 = arith.constant 3.200000e+01 : f32
    %465 = vector.broadcast %cst_189 : f32 to vector<16x1xf32>
    %466 = arith.divf %464, %465 : vector<16x1xf32>
    %467 = vector.broadcast %466 : vector<16x1xf32> to vector<16x32xf32>
    %468 = arith.subf %460, %467 : vector<16x32xf32>
    %469 = arith.mulf %468, %468 : vector<16x32xf32>
    %cst_190 = arith.constant dense<0.000000e+00> : vector<16xf32>
    %470 = vector.multi_reduction <add>, %469, %cst_190 [1] : vector<16x32xf32> to vector<16xf32>
    %471 = vector.shape_cast %470 : vector<16xf32> to vector<16x1xf32>
    %cst_191 = arith.constant 3.200000e+01 : f32
    %472 = vector.broadcast %cst_191 : f32 to vector<16x1xf32>
    %473 = arith.divf %471, %472 : vector<16x1xf32>
    %474 = vector.broadcast %466 : vector<16x1xf32> to vector<16x32xf32>
    %475 = arith.subf %460, %474 : vector<16x32xf32>
    %cst_192 = arith.constant 9.99999974E-6 : f32
    %476 = vector.broadcast %cst_192 : f32 to vector<16x1xf32>
    %477 = arith.addf %473, %476 : vector<16x1xf32>
    %478 = math.rsqrt %477 : vector<16x1xf32>
    %479 = vector.broadcast %478 : vector<16x1xf32> to vector<16x32xf32>
    %480 = arith.mulf %475, %479 : vector<16x32xf32>
    %481 = vector.broadcast %461 : vector<1x32xf32> to vector<16x32xf32>
    %482 = arith.mulf %480, %481 : vector<16x32xf32>
    %483 = vector.broadcast %462 : vector<1x32xf32> to vector<16x32xf32>
    %484 = arith.addf %482, %483 : vector<16x32xf32>
    %485 = arith.truncf %484 : vector<16x32xf32> to vector<16x32xbf16>
    %c0_193 = arith.constant 0 : index
    %c3712 = arith.constant 3712 : index
    %486 = vector.load %arg8[%c0_193, %c3712] : memref<32x3840xbf16, #tpu.memory_space<vmem>>, vector<32x128xbf16>
    %cst_194 = arith.constant dense<0.000000e+00> : vector<16x128xf32>
    %487 = tpu.matmul %485, %486, %cst_194 {dimension_numbers = #tpu.dot_dimension_numbers<[1], [0], [0], [1], [0, 0, 1, 1], [], []>} : vector<16x32xbf16>, vector<32x128xbf16>, vector<16x128xf32> -> vector<16x128xf32>
    %c37 = arith.constant 37 : index
    %c0_195 = arith.constant 0 : index
    %488 = vector.load %arg9[%c37, %c0_195] : memref<40x128xf32, #tpu.memory_space<vmem>>, vector<1x128xf32>
    %489 = vector.broadcast %488 : vector<1x128xf32> to vector<16x128xf32>
    %490 = arith.addf %487, %489 : vector<16x128xf32>
    %c0_196 = arith.constant 0 : index
    %c0_197 = arith.constant 0 : index
    %c0_198 = arith.constant 0 : index
    %491 = vector.load %arg12[%c0_196, %c0_197, %c0_198] : memref<1x16x128xf32, #tpu.memory_space<vmem>>, vector<1x16x128xf32>
    %492 = vector.shape_cast %491 : vector<1x16x128xf32> to vector<16x128xf32>
    %493 = vector.shape_cast %490 : vector<16x128xf32> to vector<1x16x128xf32>
    tpu.vector_store %arg12[%c0_196, %c0_197, %c0_198], %493 {strides = array<i32>} : memref<1x16x128xf32, #tpu.memory_space<vmem>>, vector<1x16x128xf32>,
    return
  }
  func.func @transform_0(%arg0: i32) -> (i32, i32, i32) {
    %c0_i32 = arith.constant 0 : i32
    %c0_i32_0 = arith.constant 0 : i32
    %c0_i32_1 = arith.constant 0 : i32
    return %arg0, %c0_i32, %c0_i32_0 : i32, i32, i32
  }
  func.func @transform_1(%arg0: i32) -> (i32, i32, i32) {
    %c0_i32 = arith.constant 0 : i32
    %c0_i32_0 = arith.constant 0 : i32
    %c0_i32_1 = arith.constant 0 : i32
    return %arg0, %c0_i32, %c0_i32_0 : i32, i32, i32
  }
  func.func @transform_2(%arg0: i32) -> (i32, i32, i32) {
    %c0_i32 = arith.constant 0 : i32
    %c0_i32_0 = arith.constant 0 : i32
    %c0_i32_1 = arith.constant 0 : i32
    return %arg0, %c0_i32, %c0_i32_0 : i32, i32, i32
  }
  func.func @transform_3(%arg0: i32) -> (i32, i32, i32) {
    %c0_i32 = arith.constant 0 : i32
    %c0_i32_0 = arith.constant 0 : i32
    %c0_i32_1 = arith.constant 0 : i32
    return %arg0, %c0_i32, %c0_i32_0 : i32, i32, i32
  }
  func.func @transform_4(%arg0: i32) -> (i32, i32, i32) {
    %c0_i32 = arith.constant 0 : i32
    %c0_i32_0 = arith.constant 0 : i32
    %c0_i32_1 = arith.constant 0 : i32
    return %arg0, %c0_i32, %c0_i32_0 : i32, i32, i32
  }
  func.func @transform_5(%arg0: i32) -> (i32, i32, i32) {
    %c0_i32 = arith.constant 0 : i32
    %c0_i32_0 = arith.constant 0 : i32
    %c0_i32_1 = arith.constant 0 : i32
    return %arg0, %c0_i32, %c0_i32_0 : i32, i32, i32
  }
  func.func @transform_6(%arg0: i32) -> (i32, i32) {
    %c0_i32 = arith.constant 0 : i32
    %c0_i32_0 = arith.constant 0 : i32
    %c0_i32_1 = arith.constant 0 : i32
    return %c0_i32, %c0_i32_0 : i32, i32
  }
  func.func @transform_7(%arg0: i32) -> (i32, i32) {
    %c0_i32 = arith.constant 0 : i32
    %c0_i32_0 = arith.constant 0 : i32
    %c0_i32_1 = arith.constant 0 : i32
    return %c0_i32, %c0_i32_0 : i32, i32
  }
  func.func @transform_8(%arg0: i32) -> (i32, i32) {
    %c0_i32 = arith.constant 0 : i32
    %c0_i32_0 = arith.constant 0 : i32
    %c0_i32_1 = arith.constant 0 : i32
    return %c0_i32, %c0_i32_0 : i32, i32
  }
  func.func @transform_9(%arg0: i32) -> (i32, i32, i32) {
    %c0_i32 = arith.constant 0 : i32
    %c0_i32_0 = arith.constant 0 : i32
    %c0_i32_1 = arith.constant 0 : i32
    return %arg0, %c0_i32, %c0_i32_0 : i32, i32, i32
  }
  func.func @transform_10(%arg0: i32) -> (i32, i32, i32) {
    %c0_i32 = arith.constant 0 : i32
    %c0_i32_0 = arith.constant 0 : i32
    %c0_i32_1 = arith.constant 0 : i32
    return %arg0, %c0_i32, %c0_i32_0 : i32, i32, i32
  }
  func.func @transform_11(%arg0: i32) -> (i32, i32, i32) {
    %c0_i32 = arith.constant 0 : i32
    %c0_i32_0 = arith.constant 0 : i32
    %c0_i32_1 = arith.constant 0 : i32
    return %arg0, %c0_i32, %c0_i32_0 : i32, i32, i32
  }
}

</mosaic_0001>

<llo_original>
// kernel: seq2cmdseq_forward.1
$region0: #{seq2cmdseq_forward.1}
  #allocation0 [shape = 'u32[]', space=smem, size = 0x4, offset = 0x4, fixed_abs, tag = 'smem constant byte address 0x4 - core index']
  #allocation1 [shape = 'u32[72,128]{1,0:T(1,128)}', space=vmem, size = 0x9000, scoped, tag = 'internal scratch']
  %s0 = inlined_call_operand.vmem [shape: s32[2,8,1], index: 0, kind: input, shape index: {}]
  %s1 = inlined_call_operand.vmem [shape: f32[2,1,8], index: 1, kind: input, shape index: {}]
  %s2 = inlined_call_operand.vmem [shape: s32[2,8,1], index: 2, kind: input, shape index: {}]
  %s3 = inlined_call_operand.vmem [shape: f32[2,1,8], index: 3, kind: input, shape index: {}]
  %s4 = inlined_call_operand.vmem [shape: s32[2,16,1], index: 4, kind: input, shape index: {}]
  %s5 = inlined_call_operand.vmem [shape: f32[2,1,16], index: 5, kind: input, shape index: {}]
  %s6 = inlined_call_operand.vmem [shape: f32[8,8], index: 6, kind: input, shape index: {}]
  %s7 = inlined_call_operand.hbm [shape: bf16[32,3840], index: 7, kind: input, shape index: {}]
  %s8 = inlined_call_operand.vmem [shape: f32[40,128], index: 8, kind: input, shape index: {}]
  %s9 = inlined_call_operand.hbm [shape: f32[2,8,128], index: 9, kind: output, shape index: {0}]
  %s10 = inlined_call_operand.hbm [shape: f32[2,8,32], index: 10, kind: output, shape index: {1}]
  %s11 = inlined_call_operand.vmem [shape: f32[2,16,128], index: 11, kind: output, shape index: {2}]
  %12 = xla_tuple %s9, %s10, %s11
  %s13 = sld [smem:[#allocation0]]
  $region89: #{seq2cmdseq_forward.1} parent=0
    _
  %s15 = ssub.s32 1, %s13
  %s16 = scalar_select 0, %s15, %s13
  $region1: #{seq2cmdseq_forward.1} parent=0
    #allocation2 [shape = 'u8[245760]{0}', space=vmem, size = 0x3c000, scoped, tag = 'input window, operand 7, single buffered']
    #allocation3 [shape = 's32[2]{0}', space=sflag, size = 0x8, scoped, tag = 'scoped memory for seq2cmdseq_forward.1']
    #allocation4 [shape = 's32[2]{0}', space=sflag, size = 0x8, scoped, tag = 'scoped memory for seq2cmdseq_forward.1']
    #allocation5 [shape = 'u8[8192]{0}', space=vmem, size = 0x2000, scoped, tag = 'output window, operand 0']
    #allocation6 [shape = 'u8[8192]{0}', space=vmem, size = 0x2000, scoped, tag = 'output window, operand 1']
    #allocation7 [shape = 's32[2]{0}', space=sflag, size = 0x8, scoped, tag = 'scoped memory for seq2cmdseq_forward.1']
    %17 = vsyncpa [#allocation3], 0
    %18 = vsyncpa [#allocation4], 0
    %s19 = scalar_lea.sflag [#allocation4], 1
    %20 = vsyncpa %s19, 0
    %21 = vsyncpa [#allocation7], 0
    %s22 = scalar_lea.sflag [#allocation7], 1
    %23 = vsyncpa %s22, 0
    loop: start=0, step=1, limit=4
    $region2: #{seq2cmdseq_forward.1} parent=1 // loop_pre_header
      _
    $region3: #{seq2cmdseq_forward.1} parent=1 // loop_header
      %s25 = sphi 0, %s29
      %p26 = scmp.ge.s32.totalorder %s25, 4
      %s35 = sphi 0, %s37
      %s38 = sphi 0, %s35
      %s39 = sphi 0, %s38
      %s55 = sphi 0, %s39
      %s61 = sphi 0, %s63
      %s64 = sphi 0, %s61
      %s65 = sphi 0, %s64
      %s81 = sphi 0, %s65
      %s87 = sphi 0, %s89
      %s90 = sphi 0, %s87
      %s91 = sphi 0, %s90
      %s107 = sphi 0, %s91
      %s113 = sphi 0, %s115
      %s116 = sphi 0, %s113
      %s117 = sphi 0, %s116
      %s133 = sphi 0, %s117
      %s139 = sphi 0, %s141
      %s142 = sphi 0, %s139
      %s143 = sphi 0, %s142
      %s159 = sphi 0, %s143
      %s165 = sphi 0, %s167
      %s168 = sphi 0, %s165
      %s169 = sphi 0, %s168
      %s185 = sphi 0, %s169
      %s189 = sphi 0, %s189
      %s191 = sphi 0, %s189
      %s192 = sphi 0, %s191
      %s206 = sphi 0, %s192
      %s210 = sphi 0, %s210
      %s212 = sphi 0, %s210
      %s213 = sphi 0, %s212
      %s227 = sphi 0, %s213
      %s231 = sphi 0, %s231
      %s233 = sphi 0, %s231
      %s234 = sphi 0, %s233
      %s248 = sphi 0, %s234
      %s254 = sphi 0, %s256
      %s257 = sphi 0, %s254
      %s258 = sphi 0, %s257
      %s274 = sphi 0, %s258
      %s280 = sphi 0, %s282
      %s283 = sphi 0, %s280
      %s284 = sphi 0, %s283
      %s300 = sphi 0, %s284
      %s306 = sphi 0, %s308
      %s309 = sphi 0, %s306
      %s310 = sphi 0, %s309
      %s326 = sphi 0, %s310
    $region4: #{seq2cmdseq_forward.1} parent=1 // loop_header_branch
      %28 = sbr.rel (%p26) target = $region8
    $region5: #{seq2cmdseq_forward.1} parent=1 // loop_body
      %s30 = ssub.s32 %s25, 1
      %s31 = ssub.s32 %s25, 2
      %s32 = sadd.s32 %s25, 1
      %s33 = ssub.s32 %s25, %s32
      %p34 = scmp.eq.s32.totalorder %s33, 0
      %s36 = sadd.s32 %s35, 1
      %s37 = scalar_select %p34, %s35, %s36
      %p40 = pneg %p34
      %p41 = scmp.eq.s32.totalorder %s25, 1
      %p42 = por %p40, %p41
      %p43 = scmp.ne.s32.totalorder %s35, %s38
      %p44 = scmp.eq.s32.totalorder %s25, 0
      %p45 = por %p43, %p44
      %p46 = scmp.ne.s32.totalorder %s35, %s38
      %p47 = scmp.eq.s32.totalorder %s30, 1
      %p48 = por %p46, %p47
      %p49 = scmp.ne.s32.totalorder %s38, %s39
      %p50 = scmp.eq.s32.totalorder %s30, 0
      %p51 = por %p49, %p50
      %p52 = scmp.ne.s32.totalorder %s38, %s39
      %p53 = scmp.eq.s32.totalorder %s31, 1
      %p54 = por %p52, %p53
      %p56 = scmp.ne.s32.totalorder %s39, %s55
      %p57 = scmp.eq.s32.totalorder %s31, 0
      %p58 = por %p56, %p57
      %s59 = ssub.s32 %s25, %s32
      %p60 = scmp.eq.s32.totalorder %s59, 0
      %s62 = sadd.s32 %s61, 1
      %s63 = scalar_select %p60, %s61, %s62
      %p66 = pneg %p60
      %p67 = scmp.eq.s32.totalorder %s25, 1
      %p68 = por %p66, %p67
      %p69 = scmp.ne.s32.totalorder %s61, %s64
      %p70 = scmp.eq.s32.totalorder %s25, 0
      %p71 = por %p69, %p70
      %p72 = scmp.ne.s32.totalorder %s61, %s64
      %p73 = scmp.eq.s32.totalorder %s30, 1
      %p74 = por %p72, %p73
      %p75 = scmp.ne.s32.totalorder %s64, %s65
      %p76 = scmp.eq.s32.totalorder %s30, 0
      %p77 = por %p75, %p76
      %p78 = scmp.ne.s32.totalorder %s64, %s65
      %p79 = scmp.eq.s32.totalorder %s31, 1
      %p80 = por %p78, %p79
      %p82 = scmp.ne.s32.totalorder %s65, %s81
      %p83 = scmp.eq.s32.totalorder %s31, 0
      %p84 = por %p82, %p83
      %s85 = ssub.s32 %s25, %s32
      %p86 = scmp.eq.s32.totalorder %s85, 0
      %s88 = sadd.s32 %s87, 1
      %s89 = scalar_select %p86, %s87, %s88
      %p92 = pneg %p86
      %p93 = scmp.eq.s32.totalorder %s25, 1
      %p94 = por %p92, %p93
      %p95 = scmp.ne.s32.totalorder %s87, %s90
      %p96 = scmp.eq.s32.totalorder %s25, 0
      %p97 = por %p95, %p96
      %p98 = scmp.ne.s32.totalorder %s87, %s90
      %p99 = scmp.eq.s32.totalorder %s30, 1
      %p100 = por %p98, %p99
      %p101 = scmp.ne.s32.totalorder %s90, %s91
      %p102 = scmp.eq.s32.totalorder %s30, 0
      %p103 = por %p101, %p102
      %p104 = scmp.ne.s32.totalorder %s90, %s91
      %p105 = scmp.eq.s32.totalorder %s31, 1
      %p106 = por %p104, %p105
      %p108 = scmp.ne.s32.totalorder %s91, %s107
      %p109 = scmp.eq.s32.totalorder %s31, 0
      %p110 = por %p108, %p109
      %s111 = ssub.s32 %s25, %s32
      %p112 = scmp.eq.s32.totalorder %s111, 0
      %s114 = sadd.s32 %s113, 1
      %s115 = scalar_select %p112, %s113, %s114
      %p118 = pneg %p112
      %p119 = scmp.eq.s32.totalorder %s25, 1
      %p120 = por %p118, %p119
      %p121 = scmp.ne.s32.totalorder %s113, %s116
      %p122 = scmp.eq.s32.totalorder %s25, 0
      %p123 = por %p121, %p122
      %p124 = scmp.ne.s32.totalorder %s113, %s116
      %p125 = scmp.eq.s32.totalorder %s30, 1
      %p126 = por %p124, %p125
      %p127 = scmp.ne.s32.totalorder %s116, %s117
      %p128 = scmp.eq.s32.totalorder %s30, 0
      %p129 = por %p127, %p128
      %p130 = scmp.ne.s32.totalorder %s116, %s117
      %p131 = scmp.eq.s32.totalorder %s31, 1
      %p132 = por %p130, %p131
      %p134 = scmp.ne.s32.totalorder %s117, %s133
      %p135 = scmp.eq.s32.totalorder %s31, 0
      %p136 = por %p134, %p135
      %s137 = ssub.s32 %s25, %s32
      %p138 = scmp.eq.s32.totalorder %s137, 0
      %s140 = sadd.s32 %s139, 1
      %s141 = scalar_select %p138, %s139, %s140
      %p144 = pneg %p138
      %p145 = scmp.eq.s32.totalorder %s25, 1
      %p146 = por %p144, %p145
      %p147 = scmp.ne.s32.totalorder %s139, %s142
      %p148 = scmp.eq.s32.totalorder %s25, 0
      %p149 = por %p147, %p148
      %p150 = scmp.ne.s32.totalorder %s139, %s142
      %p151 = scmp.eq.s32.totalorder %s30, 1
      %p152 = por %p150, %p151
      %p153 = scmp.ne.s32.totalorder %s142, %s143
      %p154 = scmp.eq.s32.totalorder %s30, 0
      %p155 = por %p153, %p154
      %p156 = scmp.ne.s32.totalorder %s142, %s143
      %p157 = scmp.eq.s32.totalorder %s31, 1
      %p158 = por %p156, %p157
      %p160 = scmp.ne.s32.totalorder %s143, %s159
      %p161 = scmp.eq.s32.totalorder %s31, 0
      %p162 = por %p160, %p161
      %s163 = ssub.s32 %s25, %s32
      %p164 = scmp.eq.s32.totalorder %s163, 0
      %s166 = sadd.s32 %s165, 1
      %s167 = scalar_select %p164, %s165, %s166
      %p170 = pneg %p164
      %p171 = scmp.eq.s32.totalorder %s25, 1
      %p172 = por %p170, %p171
      %p173 = scmp.ne.s32.totalorder %s165, %s168
      %p174 = scmp.eq.s32.totalorder %s25, 0
      %p175 = por %p173, %p174
      %p176 = scmp.ne.s32.totalorder %s165, %s168
      %p177 = scmp.eq.s32.totalorder %s30, 1
      %p178 = por %p176, %p177
      %p179 = scmp.ne.s32.totalorder %s168, %s169
      %p180 = scmp.eq.s32.totalorder %s30, 0
      %p181 = por %p179, %p180
      %p182 = scmp.ne.s32.totalorder %s168, %s169
      %p183 = scmp.eq.s32.totalorder %s31, 1
      %p184 = por %p182, %p183
      %p186 = scmp.ne.s32.totalorder %s169, %s185
      %p187 = scmp.eq.s32.totalorder %s31, 0
      %p188 = por %p186, %p187
      %s190 = sadd.s32 %s189, 1
      %p193 = scmp.eq.s32.totalorder %s25, 1
      %p194 = scmp.ne.s32.totalorder %s189, %s191
      %p195 = scmp.eq.s32.totalorder %s25, 0
      %p196 = por %p194, %p195
      %p197 = scmp.ne.s32.totalorder %s189, %s191
      %p198 = scmp.eq.s32.totalorder %s30, 1
      %p199 = por %p197, %p198
      %p200 = scmp.ne.s32.totalorder %s191, %s192
      %p201 = scmp.eq.s32.totalorder %s30, 0
      %p202 = por %p200, %p201
      %p203 = scmp.ne.s32.totalorder %s191, %s192
      %p204 = scmp.eq.s32.totalorder %s31, 1
      %p205 = por %p203, %p204
      %p207 = scmp.ne.s32.totalorder %s192, %s206
      %p208 = scmp.eq.s32.totalorder %s31, 0
      %p209 = por %p207, %p208
      %s211 = sadd.s32 %s210, 1
      %p214 = scmp.eq.s32.totalorder %s25, 1
      %p215 = scmp.ne.s32.totalorder %s210, %s212
      %p216 = scmp.eq.s32.totalorder %s25, 0
      %p217 = por %p215, %p216
      %p218 = scmp.ne.s32.totalorder %s210, %s212
      %p219 = scmp.eq.s32.totalorder %s30, 1
      %p220 = por %p218, %p219
      %p221 = scmp.ne.s32.totalorder %s212, %s213
      %p222 = scmp.eq.s32.totalorder %s30, 0
      %p223 = por %p221, %p222
      %p224 = scmp.ne.s32.totalorder %s212, %s213
      %p225 = scmp.eq.s32.totalorder %s31, 1
      %p226 = por %p224, %p225
      %p228 = scmp.ne.s32.totalorder %s213, %s227
      %p229 = scmp.eq.s32.totalorder %s31, 0
      %p230 = por %p228, %p229
      %s232 = sadd.s32 %s231, 1
      %p235 = scmp.eq.s32.totalorder %s25, 1
      %p236 = scmp.ne.s32.totalorder %s231, %s233
      %p237 = scmp.eq.s32.totalorder %s25, 0
      %p238 = por %p236, %p237
      %p239 = scmp.ne.s32.totalorder %s231, %s233
      %p240 = scmp.eq.s32.totalorder %s30, 1
      %p241 = por %p239, %p240
      %p242 = scmp.ne.s32.totalorder %s233, %s234
      %p243 = scmp.eq.s32.totalorder %s30, 0
      %p244 = por %p242, %p243
      %p245 = scmp.ne.s32.totalorder %s233, %s234
      %p246 = scmp.eq.s32.totalorder %s31, 1
      %p247 = por %p245, %p246
      %p249 = scmp.ne.s32.totalorder %s234, %s248
      %p250 = scmp.eq.s32.totalorder %s31, 0
      %p251 = por %p249, %p250
      %s252 = ssub.s32 %s25, %s32
      %p253 = scmp.eq.s32.totalorder %s252, 0
      %s255 = sadd.s32 %s254, 1
      %s256 = scalar_select %p253, %s254, %s255
      %p259 = pneg %p253
      %p260 = scmp.eq.s32.totalorder %s25, 1
      %p261 = por %p259, %p260
      %p262 = scmp.ne.s32.totalorder %s254, %s257
      %p263 = scmp.eq.s32.totalorder %s25, 0
      %p264 = por %p262, %p263
      %p265 = scmp.ne.s32.totalorder %s254, %s257
      %p266 = scmp.eq.s32.totalorder %s30, 1
      %p267 = por %p265, %p266
      %p268 = scmp.ne.s32.totalorder %s257, %s258
      %p269 = scmp.eq.s32.totalorder %s30, 0
      %p270 = por %p268, %p269
      %p271 = scmp.ne.s32.totalorder %s257, %s258
      %p272 = scmp.eq.s32.totalorder %s31, 1
      %p273 = por %p271, %p272
      %p275 = scmp.ne.s32.totalorder %s258, %s274
      %p276 = scmp.eq.s32.totalorder %s31, 0
      %p277 = por %p275, %p276
      %s278 = ssub.s32 %s25, %s32
      %p279 = scmp.eq.s32.totalorder %s278, 0
      %s281 = sadd.s32 %s280, 1
      %s282 = scalar_select %p279, %s280, %s281
      %p285 = pneg %p279
      %p286 = scmp.eq.s32.totalorder %s25, 1
      %p287 = por %p285, %p286
      %p288 = scmp.ne.s32.totalorder %s280, %s283
      %p289 = scmp.eq.s32.totalorder %s25, 0
      %p290 = por %p288, %p289
      %p291 = scmp.ne.s32.totalorder %s280, %s283
      %p292 = scmp.eq.s32.totalorder %s30, 1
      %p293 = por %p291, %p292
      %p294 = scmp.ne.s32.totalorder %s283, %s284
      %p295 = scmp.eq.s32.totalorder %s30, 0
      %p296 = por %p294, %p295
      %p297 = scmp.ne.s32.totalorder %s283, %s284
      %p298 = scmp.eq.s32.totalorder %s31, 1
      %p299 = por %p297, %p298
      %p301 = scmp.ne.s32.totalorder %s284, %s300
      %p302 = scmp.eq.s32.totalorder %s31, 0
      %p303 = por %p301, %p302
      %s304 = ssub.s32 %s25, %s32
      %p305 = scmp.eq.s32.totalorder %s304, 0
      %s307 = sadd.s32 %s306, 1
      %s308 = scalar_select %p305, %s306, %s307
      %p311 = pneg %p305
      %p312 = scmp.eq.s32.totalorder %s25, 1
      %p313 = por %p311, %p312
      %p314 = scmp.ne.s32.totalorder %s306, %s309
      %p315 = scmp.eq.s32.totalorder %s25, 0
      %p316 = por %p314, %p315
      %p317 = scmp.ne.s32.totalorder %s306, %s309
      %p318 = scmp.eq.s32.totalorder %s30, 1
      %p319 = por %p317, %p318
      %p320 = scmp.ne.s32.totalorder %s309, %s310
      %p321 = scmp.eq.s32.totalorder %s30, 0
      %p322 = por %p320, %p321
      %p323 = scmp.ne.s32.totalorder %s309, %s310
      %p324 = scmp.eq.s32.totalorder %s31, 1
      %p325 = por %p323, %p324
      %p327 = scmp.ne.s32.totalorder %s310, %s326
      %p328 = scmp.eq.s32.totalorder %s31, 0
      %p329 = por %p327, %p328
      %p330 = scmp.le.s32.totalorder 1, %s25
      %p331 = scmp.lt.s32.totalorder %s25, 3
      %p332 = pnand %p330, %p331
      %p333 = pneg %p332
      // Predicated region
      $region9: #{seq2cmdseq_forward.1} parent=5 // pred_check
        _
      $region10: #{seq2cmdseq_forward.1} parent=5 // pred_check_branch
        %335 = sbr.rel (%p332) target = $region12
      $region11: #{seq2cmdseq_forward.1} parent=5 // pred_region
        %s336 = ssub.s32 %s25, 1
        // Predicated region
        $region13: #{seq2cmdseq_forward.1} parent=11 // pred_check
          %p337 = pneg %p202
        $region14: #{seq2cmdseq_forward.1} parent=11 // pred_check_branch
          %339 = sbr.rel (%p337) target = $region16
        $region15: #{seq2cmdseq_forward.1} parent=11 // pred_region
          _
        $region16: #{seq2cmdseq_forward.1} parent=11 // pred_fallthru
          _
        // Predicated region
        $region17: #{seq2cmdseq_forward.1} parent=11 // pred_check
          %p340 = pneg %p223
        $region18: #{seq2cmdseq_forward.1} parent=11 // pred_check_branch
          %342 = sbr.rel (%p340) target = $region20
        $region19: #{seq2cmdseq_forward.1} parent=11 // pred_region
          %344 = vsyncadd [#allocation3], 0
          %s345 = sshll.u32 %s7, 4
          %s346 = int_to_ptr.hbm [resolvable:$true] %s345
          %s347 = sshll.u32 [#allocation2], 4
          %s348 = int_to_ptr.vmem [resolvable:$true] %s347
          %353 = dma.hbm_to_vmem [thread:$0]  %s346, 7680, %s348, [#allocation3], 1920, 1920, 120
        $region20: #{seq2cmdseq_forward.1} parent=11 // pred_fallthru
          _
        // Predicated region
        $region21: #{seq2cmdseq_forward.1} parent=11 // pred_check
          %p354 = pneg %p244
        $region22: #{seq2cmdseq_forward.1} parent=11 // pred_check_branch
          %356 = sbr.rel (%p354) target = $region24
        $region23: #{seq2cmdseq_forward.1} parent=11 // pred_region
          _
        $region24: #{seq2cmdseq_forward.1} parent=11 // pred_fallthru
          _
      $region12: #{seq2cmdseq_forward.1} parent=5 // pred_fallthru
        _
      %p357 = scmp.lt.s32.totalorder %s25, 2
      // Predicated region
      $region25: #{seq2cmdseq_forward.1} parent=5 // pred_check
        %p358 = pneg %p357
      $region26: #{seq2cmdseq_forward.1} parent=5 // pred_check_branch
        %360 = sbr.rel (%p358) target = $region28
      $region27: #{seq2cmdseq_forward.1} parent=5 // pred_region
        // Predicated region
        $region29: #{seq2cmdseq_forward.1} parent=27 // pred_check
          %p361 = pneg %p45
        $region30: #{seq2cmdseq_forward.1} parent=27 // pred_check_branch
          %363 = sbr.rel (%p361) target = $region32
        $region31: #{seq2cmdseq_forward.1} parent=27 // pred_region
          %p364 = scmp.lt.s32.totalorder %s25, 1
          %s365 = scalar_select %p364, %s25, 1
          %s366 = smul.addr %s365, 8
          %s367 = scalar_lea.vmem %s0, %s366
        $region32: #{seq2cmdseq_forward.1} parent=27 // pred_fallthru
          _
        // Predicated region
        $region33: #{seq2cmdseq_forward.1} parent=27 // pred_check
          %p368 = pneg %p71
        $region34: #{seq2cmdseq_forward.1} parent=27 // pred_check_branch
          %370 = sbr.rel (%p368) target = $region36
        $region35: #{seq2cmdseq_forward.1} parent=27 // pred_region
          %p371 = scmp.lt.s32.totalorder %s25, 1
          %s372 = scalar_select %p371, %s25, 1
          %s373 = scalar_lea.vmem %s1, %s372
        $region36: #{seq2cmdseq_forward.1} parent=27 // pred_fallthru
          _
        // Predicated region
        $region37: #{seq2cmdseq_forward.1} parent=27 // pred_check
          %p374 = pneg %p97
        $region38: #{seq2cmdseq_forward.1} parent=27 // pred_check_branch
          %376 = sbr.rel (%p374) target = $region40
        $region39: #{seq2cmdseq_forward.1} parent=27 // pred_region
          %p377 = scmp.lt.s32.totalorder %s25, 1
          %s378 = scalar_select %p377, %s25, 1
          %s379 = smul.addr %s378, 8
          %s380 = scalar_lea.vmem %s2, %s379
        $region40: #{seq2cmdseq_forward.1} parent=27 // pred_fallthru
          _
        // Predicated region
        $region41: #{seq2cmdseq_forward.1} parent=27 // pred_check
          %p381 = pneg %p123
        $region42: #{seq2cmdseq_forward.1} parent=27 // pred_check_branch
          %383 = sbr.rel (%p381) target = $region44
        $region43: #{seq2cmdseq_forward.1} parent=27 // pred_region
          %p384 = scmp.lt.s32.totalorder %s25, 1
          %s385 = scalar_select %p384, %s25, 1
          %s386 = scalar_lea.vmem %s3, %s385
        $region44: #{seq2cmdseq_forward.1} parent=27 // pred_fallthru
          _
        // Predicated region
        $region45: #{seq2cmdseq_forward.1} parent=27 // pred_check
          %p387 = pneg %p149
        $region46: #{seq2cmdseq_forward.1} parent=27 // pred_check_branch
          %389 = sbr.rel (%p387) target = $region48
        $region47: #{seq2cmdseq_forward.1} parent=27 // pred_region
          %p390 = scmp.lt.s32.totalorder %s25, 1
          %s391 = scalar_select %p390, %s25, 1
          %s392 = smul.addr %s391, 2
          %s393 = smul.addr %s392, 8
          %s394 = scalar_lea.vmem %s4, %s393
        $region48: #{seq2cmdseq_forward.1} parent=27 // pred_fallthru
          _
        // Predicated region
        $region49: #{seq2cmdseq_forward.1} parent=27 // pred_check
          %p395 = pneg %p175
        $region50: #{seq2cmdseq_forward.1} parent=27 // pred_check_branch
          %397 = sbr.rel (%p395) target = $region52
        $region51: #{seq2cmdseq_forward.1} parent=27 // pred_region
          %p398 = scmp.lt.s32.totalorder %s25, 1
          %s399 = scalar_select %p398, %s25, 1
          %s400 = scalar_lea.vmem %s5, %s399
        $region52: #{seq2cmdseq_forward.1} parent=27 // pred_fallthru
          _
      $region28: #{seq2cmdseq_forward.1} parent=5 // pred_fallthru
        _
      %p401 = scmp.le.s32.totalorder 1, %s25
      %p402 = scmp.lt.s32.totalorder %s25, 3
      %p403 = pnand %p401, %p402
      %p404 = pneg %p403
      // Predicated region
      $region53: #{seq2cmdseq_forward.1} parent=5 // pred_check
        _
      $region54: #{seq2cmdseq_forward.1} parent=5 // pred_check_branch
        %406 = sbr.rel (%p403) target = $region56
      $region55: #{seq2cmdseq_forward.1} parent=5 // pred_region
        %s407 = ssub.s32 %s25, 1
        // Predicated region
        $region57: #{seq2cmdseq_forward.1} parent=55 // pred_check
          %p408 = pneg %p223
        $region58: #{seq2cmdseq_forward.1} parent=55 // pred_check_branch
          %410 = sbr.rel (%p408) target = $region60
        $region59: #{seq2cmdseq_forward.1} parent=55 // pred_region
          %412 = dma.done [#allocation3], 7680
        $region60: #{seq2cmdseq_forward.1} parent=55 // pred_fallthru
          _
        %p413 = scmp.lt.s32.totalorder %s30, 1
        %s414 = scalar_select %p413, %s30, 1
        %s415 = smul.addr %s414, 8
        %s416 = scalar_lea.vmem %s0, %s415
        %p417 = pneg %p51
        %p418 = pneg %p48
        %p419 = scmp.lt.s32.totalorder %s30, 1
        %s420 = scalar_select %p419, %s30, 1
        %s421 = scalar_lea.vmem %s1, %s420
        %p422 = pneg %p77
        %p423 = pneg %p74
        %p424 = scmp.lt.s32.totalorder %s30, 1
        %s425 = scalar_select %p424, %s30, 1
        %s426 = smul.addr %s425, 8
        %s427 = scalar_lea.vmem %s2, %s426
        %p428 = pneg %p103
        %p429 = pneg %p100
        %p430 = scmp.lt.s32.totalorder %s30, 1
        %s431 = scalar_select %p430, %s30, 1
        %s432 = scalar_lea.vmem %s3, %s431
        %p433 = pneg %p129
        %p434 = pneg %p126
        %p435 = scmp.lt.s32.totalorder %s30, 1
        %s436 = scalar_select %p435, %s30, 1
        %s437 = smul.addr %s436, 2
        %s438 = smul.addr %s437, 8
        %s439 = scalar_lea.vmem %s4, %s438
        %p440 = pneg %p155
        %p441 = pneg %p152
        %p442 = scmp.lt.s32.totalorder %s30, 1
        %s443 = scalar_select %p442, %s30, 1
        %s444 = scalar_lea.vmem %s5, %s443
        %p445 = pneg %p181
        %p446 = pneg %p178
        %p447 = pneg %p202
        %p448 = pneg %p199
        %p449 = pneg %p223
        %p450 = pneg %p220
        %p451 = pneg %p244
        %p452 = pneg %p241
        %p453 = pneg %p270
        %p454 = pneg %p267
        %s455 = sand.u32 %s257, 1
        %s456 = scalar_lea.sflag [#allocation4], %s455
        %s457 = sand.u32 %s257, 1
        %s458 = smul.addr %s457, 8
        %s459 = scalar_lea.vmem [#allocation5], %s458
        %p460 = pneg %p296
        %p461 = pneg %p293
        %s462 = sand.u32 %s283, 1
        %s463 = scalar_lea.sflag [#allocation7], %s462
        %s464 = sand.u32 %s283, 1
        %s465 = smul.addr %s464, 8
        %s466 = scalar_lea.vmem [#allocation6], %s465
        %p467 = pneg %p322
        %p468 = pneg %p319
        %p469 = scmp.lt.s32.totalorder %s30, 1
        %s470 = scalar_select %p469, %s30, 1
        %s471 = smul.addr %s470, 2
        %s472 = smul.addr %s471, 8
        %s473 = scalar_lea.vmem %s11, %s472
        %p474 = scmp.lt.s32.totalorder %s30, 1
        %s475 = scalar_select %p474, %s30, 1
        %s476 = smul.addr %s475, 8
        %s477 = scalar_lea.vmem %s0, %s476
        %p478 = scmp.lt.s32.totalorder %s30, 1
        %s479 = scalar_select %p478, %s30, 1
        %s480 = scalar_lea.vmem %s1, %s479
        %p481 = scmp.lt.s32.totalorder %s30, 1
        %s482 = scalar_select %p481, %s30, 1
        %s483 = smul.addr %s482, 8
        %s484 = scalar_lea.vmem %s2, %s483
        %p485 = scmp.lt.s32.totalorder %s30, 1
        %s486 = scalar_select %p485, %s30, 1
        %s487 = scalar_lea.vmem %s3, %s486
        %p488 = scmp.lt.s32.totalorder %s30, 1
        %s489 = scalar_select %p488, %s30, 1
        %s490 = smul.addr %s489, 2
        %s491 = smul.addr %s490, 8
        %s492 = scalar_lea.vmem %s4, %s491
        %p493 = scmp.lt.s32.totalorder %s30, 1
        %s494 = scalar_select %p493, %s30, 1
        %s495 = scalar_lea.vmem %s5, %s494
        %p496 = scmp.lt.s32.totalorder %s30, 1
        %s497 = scalar_select %p496, %s30, 1
        %s498 = smul.addr %s497, 2
        %s499 = smul.addr %s498, 8
        %s500 = scalar_lea.vmem %s11, %s499
        %v502 = vld [vmem:[%s480] sm:$0x1]
        %v503 = vsub.f32 1.0, %v502
        %v504 = vmul.f32 %v503, -1e+09
        %v505 = vld [vmem:[%s477] sm:$0xff]
        %v506 = vlaneseq
        %v507 = vand.u32 %v506, 127
        %508 = vset.pattern.permute.xlu0 0
        %509 = vperm.xlu0 %508, %v505
        %v510 = vpop.permute.xlu0 %509
        %vm511 = vcmp.eq.s32.totalorder %v507, %v510
        %v512 = vsel %vm511, 1.0, 0.0
        %v513 = vpack.c.bf16 %v512, %v512
        %v514 = vld [vmem:[#allocation2] sm:$0xf]
        %v515 = vld [vmem:[#allocation2 + $0x78] sm:$0xf]
        %v516 = vld [vmem:[#allocation2 + $0xf0] sm:$0xf]
        %v517 = vld [vmem:[#allocation2 + $0x168] sm:$0xf]
        %v518 = vld [vmem:[#allocation2 + $0x4] sm:$0xf]
        %v519 = vunpack.c.l.bf16 %v518
        %v524 = vunpack.c.l.b16 %v514
        %v525 = vunpack.c.l.b16 %v515
        %v526 = vunpack.c.l.b16 %v516
        %v527 = vunpack.c.l.b16 %v517
        %v528 = vpack.c.b16 %v525, %v524
        %v529 = vpack.c.b16 %v527, %v526
        %vm530 = vcmask 523264
        %v532 = vsel %vm530, %v513, 0
        %v535 = vsel %vm530, %v528, 0
        %v538 = vsel %vm530, %v529, 0
        %540 = vmatpush.bf16.xpose.msra.mxu0 0
        %541 = vmatpush.bf16.xpose.msra.mxu0 0
        %542 = vmatpush.bf16.xpose.msra.mxu0 0
        %543 = vmatpush.bf16.xpose.msra.mxu0 0
        %544 = vmatpush.bf16.xpose.msra.mxu0 0
        %545 = vmatpush.bf16.xpose.msra.mxu0 0
        %546 = vmatpush.bf16.xpose.msra.mxu0 %v538
        %547 = vmatpush.bf16.xpose.msra.mxu0 %v535
        %548 = vmatmul.bf16.gmra.mxu0 %v532
        %v549 = vpop.f32.mrf.mxu0
        %v550 = vadd.f32 %v519, %v549
        %v551 = vpop.f32.mrf.mxu0
        %552 = vdwg.mxu0
        %v553 = vpack.c.bf16 %v550, %v550
        %v554 = vld [vmem:[#allocation2 + $0x8] sm:$0xf]
        %v555 = vld [vmem:[#allocation2 + $0x80] sm:$0xf]
        %v556 = vld [vmem:[#allocation2 + $0xf8] sm:$0xf]
        %v557 = vld [vmem:[#allocation2 + $0x170] sm:$0xf]
        %v558 = vld [vmem:[%s8] sm:$0x1]
        %v559 = vperm.slane %v558, 0
        %v564 = vunpack.c.l.b16 %v554
        %v565 = vunpack.c.l.b16 %v555
        %v566 = vunpack.c.l.b16 %v556
        %v567 = vunpack.c.l.b16 %v557
        %v568 = vpack.c.b16 %v565, %v564
        %v569 = vpack.c.b16 %v567, %v566
        %vm572 = vcmask 261120
        %v574 = vsel %vm572, %v553, 0
        %576 = vmatpush.bf16.msra.mxu0 0
        %577 = vmatpush.bf16.msra.mxu0 0
        %578 = vmatpush.bf16.msra.mxu0 0
        %579 = vmatpush.bf16.msra.mxu0 0
        %580 = vmatpush.bf16.msra.mxu0 0
        %581 = vmatpush.bf16.msra.mxu0 0
        %582 = vmatpush.bf16.msra.mxu0 %v569
        %583 = vmatpush.bf16.msra.mxu0 %v568
        %584 = vmatmul.bf16.gmra.mxu0 %v574
        %v585 = vpop.f32.mrf.mxu0
        %v586 = vadd.f32 %v559, %v585
        %v587 = vpop.f32.mrf.mxu0
        %588 = vdwg.mxu0
        %v589 = vld [vmem:[#allocation2 + $0xc] sm:$0xf]
        %v590 = vld [vmem:[#allocation2 + $0x84] sm:$0xf]
        %v591 = vld [vmem:[#allocation2 + $0xfc] sm:$0xf]
        %v592 = vld [vmem:[#allocation2 + $0x174] sm:$0xf]
        %v593 = vld [vmem:[%s8 + $0x1] sm:$0x1]
        %v594 = vperm.slane %v593, 0
        %v599 = vunpack.c.l.b16 %v589
        %v600 = vunpack.c.l.b16 %v590
        %v601 = vunpack.c.l.b16 %v591
        %v602 = vunpack.c.l.b16 %v592
        %v603 = vpack.c.b16 %v600, %v599
        %v604 = vpack.c.b16 %v602, %v601
        %607 = vmatpush.bf16.msra.mxu0 0
        %608 = vmatpush.bf16.msra.mxu0 0
        %609 = vmatpush.bf16.msra.mxu0 0
        %610 = vmatpush.bf16.msra.mxu0 0
        %611 = vmatpush.bf16.msra.mxu0 0
        %612 = vmatpush.bf16.msra.mxu0 0
        %613 = vmatpush.bf16.msra.mxu0 %v604
        %614 = vmatpush.bf16.msra.mxu0 %v603
        %615 = vmatmul.bf16.gmra.mxu0 %v574
        %v616 = vpop.f32.mrf.mxu0
        %v617 = vadd.f32 %v594, %v616
        %v618 = vpop.f32.mrf.mxu0
        %619 = vdwg.mxu0
        %v620 = vld [vmem:[#allocation2 + $0x10] sm:$0xf]
        %v621 = vld [vmem:[#allocation2 + $0x88] sm:$0xf]
        %v622 = vld [vmem:[#allocation2 + $0x100] sm:$0xf]
        %v623 = vld [vmem:[#allocation2 + $0x178] sm:$0xf]
        %v624 = vld [vmem:[%s8 + $0x2] sm:$0x1]
        %v625 = vperm.slane %v624, 0
        %v630 = vunpack.c.l.b16 %v620
        %v631 = vunpack.c.l.b16 %v621
        %v632 = vunpack.c.l.b16 %v622
        %v633 = vunpack.c.l.b16 %v623
        %v634 = vpack.c.b16 %v631, %v630
        %v635 = vpack.c.b16 %v633, %v632
        %638 = vmatpush.bf16.msra.mxu0 0
        %639 = vmatpush.bf16.msra.mxu0 0
        %640 = vmatpush.bf16.msra.mxu0 0
        %641 = vmatpush.bf16.msra.mxu0 0
        %642 = vmatpush.bf16.msra.mxu0 0
        %643 = vmatpush.bf16.msra.mxu0 0
        %644 = vmatpush.bf16.msra.mxu0 %v635
        %645 = vmatpush.bf16.msra.mxu0 %v634
        %646 = vmatmul.bf16.gmra.mxu0 %v574
        %v647 = vpop.f32.mrf.mxu0
        %v648 = vadd.f32 %v625, %v647
        %v649 = vpop.f32.mrf.mxu0
        %650 = vdwg.mxu0
        %v651 = vpack.c.bf16 %v586, %v586
        %v652 = vpack.c.bf16 %v617, %v617
        %v654 = vperm.slane %v504, 0
        %v657 = vsel %vm572, %v651, 0
        %v660 = vsel %vm572, %v652, 0
        %662 = vmatpush.bf16.xpose.msra.mxu0 0
        %663 = vmatpush.bf16.xpose.msra.mxu0 0
        %664 = vmatpush.bf16.xpose.msra.mxu0 0
        %665 = vmatpush.bf16.xpose.msra.mxu0 0
        %666 = vmatpush.bf16.xpose.msra.mxu0 0
        %667 = vmatpush.bf16.xpose.msra.mxu0 0
        %668 = vmatpush.bf16.xpose.msra.mxu0 0
        %669 = vmatpush.bf16.xpose.msra.mxu0 %v660
        %670 = vmatmul.bf16.gmra.mxu0 %v657
        %v671 = vpop.f32.mrf.mxu0
        %v672 = vadd.f32 %v654, %v671
        %v673 = vpop.f32.mrf.mxu0
        %674 = vdwg.mxu0
        %vm675 = vcmask 64512
        %v676 = vsel %vm675, %v672, -inf
        %677 = vmax.xlane.f32.xlu0 %v676
        %v678 = vpop.xlane.xlu0 %677
        %v679 = vsub.f32 %v672, %v678
        %v680 = vmul.f32 %v679, 1.442695
        %v681 = vpow.pop %v680
        %v682 = vsel %vm675, %v681, 0.0
        %683 = vadd.xlane.f32.xlu0 %v682
        %v684 = vpop.xlane.xlu0 %683
        %v685 = vrcp.pop %v684
        %v686 = vmul.f32 %v681, %v685
        %v687 = vpack.c.bf16 %v686, %v686
        %v688 = vpack.c.bf16 %v648, %v648
        %v690 = vsel %vm675, %v687, 0
        %vm692 = vcmask 1043456
        %v694 = vsel %vm692, %v688, 0
        %696 = vmatpush.bf16.msra.mxu0 0
        %697 = vmatpush.bf16.msra.mxu0 0
        %698 = vmatpush.bf16.msra.mxu0 0
        %699 = vmatpush.bf16.msra.mxu0 0
        %700 = vmatpush.bf16.msra.mxu0 0
        %701 = vmatpush.bf16.msra.mxu0 0
        %702 = vmatpush.bf16.msra.mxu0 0
        %703 = vmatpush.bf16.msra.mxu0 %v694
        %704 = vmatmul.bf16.gmra.mxu0 %v690
        %v705 = vpop.f32.mrf.mxu0
        %v706 = vadd.f32 0.0, %v705
        %v707 = vpop.f32.mrf.mxu0
        %708 = vdwg.mxu0
        %v709 = vpack.c.bf16 %v706, %v706
        %v710 = vld [vmem:[#allocation2 + $0x14] sm:$0xf]
        %v711 = vld [vmem:[#allocation2 + $0x8c] sm:$0xf]
        %v712 = vld [vmem:[#allocation2 + $0x104] sm:$0xf]
        %v713 = vld [vmem:[#allocation2 + $0x17c] sm:$0xf]
        %v714 = vld [vmem:[%s8 + $0x3] sm:$0x1]
        %v715 = vperm.slane %v714, 0
        %v720 = vunpack.c.l.b16 %v710
        %v721 = vunpack.c.l.b16 %v711
        %v722 = vunpack.c.l.b16 %v712
        %v723 = vunpack.c.l.b16 %v713
        %v724 = vpack.c.b16 %v721, %v720
        %v725 = vpack.c.b16 %v723, %v722
        %v729 = vsel %vm572, %v709, 0
        %731 = vmatpush.bf16.msra.mxu0 0
        %732 = vmatpush.bf16.msra.mxu0 0
        %733 = vmatpush.bf16.msra.mxu0 0
        %734 = vmatpush.bf16.msra.mxu0 0
        %735 = vmatpush.bf16.msra.mxu0 0
        %736 = vmatpush.bf16.msra.mxu0 0
        %737 = vmatpush.bf16.msra.mxu0 %v725
        %738 = vmatpush.bf16.msra.mxu0 %v724
        %739 = vmatmul.bf16.gmra.mxu0 %v729
        %v740 = vpop.f32.mrf.mxu0
        %v741 = vadd.f32 %v715, %v740
        %v742 = vpop.f32.mrf.mxu0
        %743 = vdwg.mxu0
        %v744 = vadd.f32 %v550, %v741
        %v745 = vld [vmem:[%s8 + $0x4] sm:$0x1]
        %v746 = vld [vmem:[%s8 + $0x5] sm:$0x1]
        %v747 = vsel %vm572, %v744, 0.0
        %748 = vadd.xlane.f32.xlu0 %v747
        %v749 = vpop.xlane.xlu0 %748
        %v750 = vrcp.pop 32.0
        %v751 = vmul.f32 32.0, %v750
        %v752 = vsub.f32 1.0, %v751
        %v753 = vmul.f32 %v750, %v752
        %v754 = vadd.f32 %v750, %v753
        %vm755 = vweird.f32 %v750
        %v756 = vsel %vm755, %v750, %v754
        %v757 = vmul.f32 %v749, %v756
        %v758 = vsub.f32 %v744, %v757
        %v759 = vmul.f32 %v758, %v758
        %v760 = vsel %vm572, %v759, 0.0
        %761 = vadd.xlane.f32.xlu0 %v760
        %v762 = vpop.xlane.xlu0 %761
        %v763 = vmul.f32 %v762, %v756
        %v764 = vadd.f32 %v763, 1e-05
        %v765 = vrsqrt.pop %v764
        %v766 = vmul.f32 %v765, %v764
        %v767 = vmul.f32 %v766, %v765
        %v768 = vmul.f32 0.5, %v767
        %v769 = vsub.f32 1.5, %v768
        %v770 = vmul.f32 %v765, %v769
        %vm771 = vweird.f32 %v764
        %vm772 = vweird.f32 %v765
        %vm773 = vmor %vm771, %vm772
        %v774 = vsel %vm773, %v765, %v770
        %v775 = vmul.f32 %v758, %v774
        %v776 = vperm.slane %v745, 0
        %v777 = vmul.f32 %v775, %v776
        %v778 = vperm.slane %v746, 0
        %v779 = vadd.f32 %v777, %v778
        %v780 = vpack.c.bf16 %v779, %v779
        %v781 = vld [vmem:[#allocation2 + $0x18] sm:$0xf]
        %v782 = vld [vmem:[#allocation2 + $0x90] sm:$0xf]
        %v783 = vld [vmem:[#allocation2 + $0x108] sm:$0xf]
        %v784 = vld [vmem:[#allocation2 + $0x180] sm:$0xf]
        %v785 = vld [vmem:[%s8 + $0x6] sm:$0x1]
        %v786 = vperm.slane %v785, 0
        %v791 = vunpack.c.l.b16 %v781
        %v792 = vunpack.c.l.b16 %v782
        %v793 = vunpack.c.l.b16 %v783
        %v794 = vunpack.c.l.b16 %v784
        %v795 = vpack.c.b16 %v792, %v791
        %v796 = vpack.c.b16 %v794, %v793
        %v800 = vsel %vm572, %v780, 0
        %802 = vmatpush.bf16.msra.mxu0 0
        %803 = vmatpush.bf16.msra.mxu0 0
        %804 = vmatpush.bf16.msra.mxu0 0
        %805 = vmatpush.bf16.msra.mxu0 0
        %806 = vmatpush.bf16.msra.mxu0 0
        %807 = vmatpush.bf16.msra.mxu0 0
        %808 = vmatpush.bf16.msra.mxu0 %v796
        %809 = vmatpush.bf16.msra.mxu0 %v795
        %810 = vmatmul.bf16.gmra.mxu0 %v800
        %v811 = vpop.f32.mrf.mxu0
        %v812 = vadd.f32 %v786, %v811
        %v813 = vpop.f32.mrf.mxu0
        %814 = vdwg.mxu0
        %v815 = vmul.f32 %v812, %v812
        %v816 = vmul.f32 %v812, %v815
        %v817 = vmul.f32 %v816, 0.044715
        %v818 = vadd.f32 %v812, %v817
        %v819 = vmul.f32 %v818, 0.7978846
        %v820 = vtanh.pop %v819
        %v821 = vadd.f32 %v820, 1.0
        %v822 = vmul.f32 %v821, 0.5
        %v823 = vmul.f32 %v812, %v822
        %v824 = vpack.c.bf16 %v823, %v823
        %v825 = vld [vmem:[#allocation2 + $0x1c] sm:$0xf]
        %v826 = vld [vmem:[#allocation2 + $0x94] sm:$0xf]
        %v827 = vld [vmem:[#allocation2 + $0x10c] sm:$0xf]
        %v828 = vld [vmem:[#allocation2 + $0x184] sm:$0xf]
        %v829 = vld [vmem:[%s8 + $0x7] sm:$0x1]
        %v830 = vperm.slane %v829, 0
        %v835 = vunpack.c.l.b16 %v825
        %v836 = vunpack.c.l.b16 %v826
        %v837 = vunpack.c.l.b16 %v827
        %v838 = vunpack.c.l.b16 %v828
        %v839 = vpack.c.b16 %v836, %v835
        %v840 = vpack.c.b16 %v838, %v837
        %v842 = vsel %vm530, %v824, 0
        %v845 = vsel %vm530, %v839, 0
        %v848 = vsel %vm530, %v840, 0
        %850 = vmatpush.bf16.xpose.msra.mxu0 0
        %851 = vmatpush.bf16.xpose.msra.mxu0 0
        %852 = vmatpush.bf16.xpose.msra.mxu0 0
        %853 = vmatpush.bf16.xpose.msra.mxu0 0
        %854 = vmatpush.bf16.xpose.msra.mxu0 0
        %855 = vmatpush.bf16.xpose.msra.mxu0 0
        %856 = vmatpush.bf16.xpose.msra.mxu0 %v848
        %857 = vmatpush.bf16.xpose.msra.mxu0 %v845
        %858 = vmatmul.bf16.gmra.mxu0 %v842
        %v859 = vpop.f32.mrf.mxu0
        %v860 = vadd.f32 %v830, %v859
        %v861 = vpop.f32.mrf.mxu0
        %862 = vdwg.mxu0
        %v863 = vadd.f32 %v779, %v860
        %v864 = vld [vmem:[%s8 + $0x8] sm:$0x1]
        %v865 = vld [vmem:[%s8 + $0x9] sm:$0x1]
        %v866 = vsel %vm572, %v863, 0.0
        %867 = vadd.xlane.f32.xlu0 %v866
        %v868 = vpop.xlane.xlu0 %867
        %v869 = vmul.f32 %v868, %v756
        %v870 = vsub.f32 %v863, %v869
        %v871 = vmul.f32 %v870, %v870
        %v872 = vsel %vm572, %v871, 0.0
        %873 = vadd.xlane.f32.xlu0 %v872
        %v874 = vpop.xlane.xlu0 %873
        %v875 = vmul.f32 %v874, %v756
        %v876 = vadd.f32 %v875, 1e-05
        %v877 = vrsqrt.pop %v876
        %v878 = vmul.f32 %v877, %v876
        %v879 = vmul.f32 %v878, %v877
        %v880 = vmul.f32 0.5, %v879
        %v881 = vsub.f32 1.5, %v880
        %v882 = vmul.f32 %v877, %v881
        %vm883 = vweird.f32 %v876
        %vm884 = vweird.f32 %v877
        %vm885 = vmor %vm883, %vm884
        %v886 = vsel %vm885, %v877, %v882
        %v887 = vmul.f32 %v870, %v886
        %v888 = vperm.slane %v864, 0
        %v889 = vmul.f32 %v887, %v888
        %v890 = vperm.slane %v865, 0
        %v891 = vadd.f32 %v889, %v890
        %v892 = vld [vmem:[%s487] sm:$0x1]
        %v893 = vsub.f32 1.0, %v892
        %v894 = vmul.f32 %v893, -1e+09
        %v895 = vld [vmem:[%s6] sm:$0xff]
        %v897 = vperm.slane %v894, 0
        %v899 = vadd.f32 %v897, %v895
        %v900 = vld [vmem:[%s484] sm:$0xff]
        %901 = vset.pattern.permute.xlu0 0
        %902 = vperm.xlu0 %901, %v900
        %v903 = vpop.permute.xlu0 %902
        %vm904 = vcmp.eq.s32.totalorder %v507, %v903
        %v905 = vsel %vm904, 1.0, 0.0
        %v906 = vpack.c.bf16 %v905, %v905
        %v907 = vld [vmem:[#allocation2 + $0x20] sm:$0xf]
        %v908 = vld [vmem:[#allocation2 + $0x98] sm:$0xf]
        %v909 = vld [vmem:[#allocation2 + $0x110] sm:$0xf]
        %v910 = vld [vmem:[#allocation2 + $0x188] sm:$0xf]
        %v911 = vld [vmem:[#allocation2 + $0x24] sm:$0xf]
        %v912 = vunpack.c.l.bf16 %v911
        %v917 = vunpack.c.l.b16 %v907
        %v918 = vunpack.c.l.b16 %v908
        %v919 = vunpack.c.l.b16 %v909
        %v920 = vunpack.c.l.b16 %v910
        %v921 = vpack.c.b16 %v918, %v917
        %v922 = vpack.c.b16 %v920, %v919
        %v924 = vsel %vm530, %v906, 0
        %v927 = vsel %vm530, %v921, 0
        %v930 = vsel %vm530, %v922, 0
        %932 = vmatpush.bf16.xpose.msra.mxu0 0
        %933 = vmatpush.bf16.xpose.msra.mxu0 0
        %934 = vmatpush.bf16.xpose.msra.mxu0 0
        %935 = vmatpush.bf16.xpose.msra.mxu0 0
        %936 = vmatpush.bf16.xpose.msra.mxu0 0
        %937 = vmatpush.bf16.xpose.msra.mxu0 0
        %938 = vmatpush.bf16.xpose.msra.mxu0 %v930
        %939 = vmatpush.bf16.xpose.msra.mxu0 %v927
        %940 = vmatmul.bf16.gmra.mxu0 %v924
        %v941 = vpop.f32.mrf.mxu0
        %v942 = vadd.f32 %v912, %v941
        %v943 = vpop.f32.mrf.mxu0
        %944 = vdwg.mxu0
        %v945 = vpack.c.bf16 %v942, %v942
        %v946 = vld [vmem:[#allocation2 + $0x28] sm:$0xf]
        %v947 = vld [vmem:[#allocation2 + $0xa0] sm:$0xf]
        %v948 = vld [vmem:[#allocation2 + $0x118] sm:$0xf]
        %v949 = vld [vmem:[#allocation2 + $0x190] sm:$0xf]
        %v950 = vld [vmem:[%s8 + $0xa] sm:$0x1]
        %v951 = vperm.slane %v950, 0
        %v956 = vunpack.c.l.b16 %v946
        %v957 = vunpack.c.l.b16 %v947
        %v958 = vunpack.c.l.b16 %v948
        %v959 = vunpack.c.l.b16 %v949
        %v960 = vpack.c.b16 %v957, %v956
        %v961 = vpack.c.b16 %v959, %v958
        %v965 = vsel %vm572, %v945, 0
        %967 = vmatpush.bf16.msra.mxu0 0
        %968 = vmatpush.bf16.msra.mxu0 0
        %969 = vmatpush.bf16.msra.mxu0 0
        %970 = vmatpush.bf16.msra.mxu0 0
        %971 = vmatpush.bf16.msra.mxu0 0
        %972 = vmatpush.bf16.msra.mxu0 0
        %973 = vmatpush.bf16.msra.mxu0 %v961
        %974 = vmatpush.bf16.msra.mxu0 %v960
        %975 = vmatmul.bf16.gmra.mxu0 %v965
        %v976 = vpop.f32.mrf.mxu0
        %v977 = vadd.f32 %v951, %v976
        %v978 = vpop.f32.mrf.mxu0
        %979 = vdwg.mxu0
        %v980 = vld [vmem:[#allocation2 + $0x2c] sm:$0xf]
        %v981 = vld [vmem:[#allocation2 + $0xa4] sm:$0xf]
        %v982 = vld [vmem:[#allocation2 + $0x11c] sm:$0xf]
        %v983 = vld [vmem:[#allocation2 + $0x194] sm:$0xf]
        %v984 = vld [vmem:[%s8 + $0xb] sm:$0x1]
        %v985 = vperm.slane %v984, 0
        %v990 = vunpack.c.l.b16 %v980
        %v991 = vunpack.c.l.b16 %v981
        %v992 = vunpack.c.l.b16 %v982
        %v993 = vunpack.c.l.b16 %v983
        %v994 = vpack.c.b16 %v991, %v990
        %v995 = vpack.c.b16 %v993, %v992
        %998 = vmatpush.bf16.msra.mxu0 0
        %999 = vmatpush.bf16.msra.mxu0 0
        %1000 = vmatpush.bf16.msra.mxu0 0
        %1001 = vmatpush.bf16.msra.mxu0 0
        %1002 = vmatpush.bf16.msra.mxu0 0
        %1003 = vmatpush.bf16.msra.mxu0 0
        %1004 = vmatpush.bf16.msra.mxu0 %v995
        %1005 = vmatpush.bf16.msra.mxu0 %v994
        %1006 = vmatmul.bf16.gmra.mxu0 %v965
        %v1007 = vpop.f32.mrf.mxu0
        %v1008 = vadd.f32 %v985, %v1007
        %v1009 = vpop.f32.mrf.mxu0
        %1010 = vdwg.mxu0
        %v1011 = vld [vmem:[#allocation2 + $0x30] sm:$0xf]
        %v1012 = vld [vmem:[#allocation2 + $0xa8] sm:$0xf]
        %v1013 = vld [vmem:[#allocation2 + $0x120] sm:$0xf]
        %v1014 = vld [vmem:[#allocation2 + $0x198] sm:$0xf]
        %v1015 = vld [vmem:[%s8 + $0xc] sm:$0x1]
        %v1016 = vperm.slane %v1015, 0
        %v1021 = vunpack.c.l.b16 %v1011
        %v1022 = vunpack.c.l.b16 %v1012
        %v1023 = vunpack.c.l.b16 %v1013
        %v1024 = vunpack.c.l.b16 %v1014
        %v1025 = vpack.c.b16 %v1022, %v1021
        %v1026 = vpack.c.b16 %v1024, %v1023
        %1029 = vmatpush.bf16.msra.mxu0 0
        %1030 = vmatpush.bf16.msra.mxu0 0
        %1031 = vmatpush.bf16.msra.mxu0 0
        %1032 = vmatpush.bf16.msra.mxu0 0
        %1033 = vmatpush.bf16.msra.mxu0 0
        %1034 = vmatpush.bf16.msra.mxu0 0
        %1035 = vmatpush.bf16.msra.mxu0 %v1026
        %1036 = vmatpush.bf16.msra.mxu0 %v1025
        %1037 = vmatmul.bf16.gmra.mxu0 %v965
        %v1038 = vpop.f32.mrf.mxu0
        %v1039 = vadd.f32 %v1016, %v1038
        %v1040 = vpop.f32.mrf.mxu0
        %1041 = vdwg.mxu0
        %v1042 = vpack.c.bf16 %v977, %v977
        %v1043 = vpack.c.bf16 %v1008, %v1008
        %v1045 = vsel %vm572, %v1042, 0
        %v1048 = vsel %vm572, %v1043, 0
        %1050 = vmatpush.bf16.xpose.msra.mxu0 0
        %1051 = vmatpush.bf16.xpose.msra.mxu0 0
        %1052 = vmatpush.bf16.xpose.msra.mxu0 0
        %1053 = vmatpush.bf16.xpose.msra.mxu0 0
        %1054 = vmatpush.bf16.xpose.msra.mxu0 0
        %1055 = vmatpush.bf16.xpose.msra.mxu0 0
        %1056 = vmatpush.bf16.xpose.msra.mxu0 0
        %1057 = vmatpush.bf16.xpose.msra.mxu0 %v1048
        %1058 = vmatmul.bf16.gmra.mxu0 %v1045
        %v1059 = vpop.f32.mrf.mxu0
        %v1060 = vadd.f32 %v899, %v1059
        %v1061 = vpop.f32.mrf.mxu0
        %1062 = vdwg.mxu0
        %v1063 = vsel %vm675, %v1060, -inf
        %1064 = vmax.xlane.f32.xlu0 %v1063
        %v1065 = vpop.xlane.xlu0 %1064
        %v1066 = vsub.f32 %v1060, %v1065
        %v1067 = vmul.f32 %v1066, 1.442695
        %v1068 = vpow.pop %v1067
        %v1069 = vsel %vm675, %v1068, 0.0
        %1070 = vadd.xlane.f32.xlu0 %v1069
        %v1071 = vpop.xlane.xlu0 %1070
        %v1072 = vrcp.pop %v1071
        %v1073 = vmul.f32 %v1068, %v1072
        %v1074 = vpack.c.bf16 %v1073, %v1073
        %v1075 = vpack.c.bf16 %v1039, %v1039
        %v1077 = vsel %vm675, %v1074, 0
        %v1080 = vsel %vm692, %v1075, 0
        %1082 = vmatpush.bf16.msra.mxu0 0
        %1083 = vmatpush.bf16.msra.mxu0 0
        %1084 = vmatpush.bf16.msra.mxu0 0
        %1085 = vmatpush.bf16.msra.mxu0 0
        %1086 = vmatpush.bf16.msra.mxu0 0
        %1087 = vmatpush.bf16.msra.mxu0 0
        %1088 = vmatpush.bf16.msra.mxu0 0
        %1089 = vmatpush.bf16.msra.mxu0 %v1080
        %1090 = vmatmul.bf16.gmra.mxu0 %v1077
        %v1091 = vpop.f32.mrf.mxu0
        %v1092 = vadd.f32 0.0, %v1091
        %v1093 = vpop.f32.mrf.mxu0
        %1094 = vdwg.mxu0
        %v1095 = vpack.c.bf16 %v1092, %v1092
        %v1096 = vld [vmem:[#allocation2 + $0x34] sm:$0xf]
        %v1097 = vld [vmem:[#allocation2 + $0xac] sm:$0xf]
        %v1098 = vld [vmem:[#allocation2 + $0x124] sm:$0xf]
        %v1099 = vld [vmem:[#allocation2 + $0x19c] sm:$0xf]
        %v1100 = vld [vmem:[%s8 + $0xd] sm:$0x1]
        %v1101 = vperm.slane %v1100, 0
        %v1106 = vunpack.c.l.b16 %v1096
        %v1107 = vunpack.c.l.b16 %v1097
        %v1108 = vunpack.c.l.b16 %v1098
        %v1109 = vunpack.c.l.b16 %v1099
        %v1110 = vpack.c.b16 %v1107, %v1106
        %v1111 = vpack.c.b16 %v1109, %v1108
        %v1115 = vsel %vm572, %v1095, 0
        %1117 = vmatpush.bf16.msra.mxu0 0
        %1118 = vmatpush.bf16.msra.mxu0 0
        %1119 = vmatpush.bf16.msra.mxu0 0
        %1120 = vmatpush.bf16.msra.mxu0 0
        %1121 = vmatpush.bf16.msra.mxu0 0
        %1122 = vmatpush.bf16.msra.mxu0 0
        %1123 = vmatpush.bf16.msra.mxu0 %v1111
        %1124 = vmatpush.bf16.msra.mxu0 %v1110
        %1125 = vmatmul.bf16.gmra.mxu0 %v1115
        %v1126 = vpop.f32.mrf.mxu0
        %v1127 = vadd.f32 %v1101, %v1126
        %v1128 = vpop.f32.mrf.mxu0
        %1129 = vdwg.mxu0
        %v1130 = vadd.f32 %v942, %v1127
        %v1131 = vld [vmem:[%s8 + $0xe] sm:$0x1]
        %v1132 = vld [vmem:[%s8 + $0xf] sm:$0x1]
        %v1133 = vsel %vm572, %v1130, 0.0
        %1134 = vadd.xlane.f32.xlu0 %v1133
        %v1135 = vpop.xlane.xlu0 %1134
        %v1136 = vmul.f32 %v1135, %v756
        %v1137 = vsub.f32 %v1130, %v1136
        %v1138 = vmul.f32 %v1137, %v1137
        %v1139 = vsel %vm572, %v1138, 0.0
        %1140 = vadd.xlane.f32.xlu0 %v1139
        %v1141 = vpop.xlane.xlu0 %1140
        %v1142 = vmul.f32 %v1141, %v756
        %v1143 = vadd.f32 %v1142, 1e-05
        %v1144 = vrsqrt.pop %v1143
        %v1145 = vmul.f32 %v1144, %v1143
        %v1146 = vmul.f32 %v1145, %v1144
        %v1147 = vmul.f32 0.5, %v1146
        %v1148 = vsub.f32 1.5, %v1147
        %v1149 = vmul.f32 %v1144, %v1148
        %vm1150 = vweird.f32 %v1143
        %vm1151 = vweird.f32 %v1144
        %vm1152 = vmor %vm1150, %vm1151
        %v1153 = vsel %vm1152, %v1144, %v1149
        %v1154 = vmul.f32 %v1137, %v1153
        %v1155 = vperm.slane %v1131, 0
        %v1156 = vmul.f32 %v1154, %v1155
        %v1157 = vperm.slane %v1132, 0
        %v1158 = vadd.f32 %v1156, %v1157
        %v1159 = vpack.c.bf16 %v1158, %v1158
        %v1160 = vpack.c.bf16 %v891, %v891
        %v1161 = vld [vmem:[#allocation2 + $0x60] sm:$0xf]
        %v1162 = vld [vmem:[#allocation2 + $0xd8] sm:$0xf]
        %v1163 = vld [vmem:[#allocation2 + $0x150] sm:$0xf]
        %v1164 = vld [vmem:[#allocation2 + $0x1c8] sm:$0xf]
        %v1165 = vld [vmem:[%s8 + $0x1e] sm:$0x1]
        %v1166 = vperm.slane %v1165, 0
        %v1171 = vunpack.c.l.b16 %v1161
        %v1172 = vunpack.c.l.b16 %v1162
        %v1173 = vunpack.c.l.b16 %v1163
        %v1174 = vunpack.c.l.b16 %v1164
        %v1175 = vpack.c.b16 %v1172, %v1171
        %v1176 = vpack.c.b16 %v1174, %v1173
        %v1180 = vsel %vm572, %v1159, 0
        %1182 = vmatpush.bf16.msra.mxu0 0
        %1183 = vmatpush.bf16.msra.mxu0 0
        %1184 = vmatpush.bf16.msra.mxu0 0
        %1185 = vmatpush.bf16.msra.mxu0 0
        %1186 = vmatpush.bf16.msra.mxu0 0
        %1187 = vmatpush.bf16.msra.mxu0 0
        %1188 = vmatpush.bf16.msra.mxu0 %v1176
        %1189 = vmatpush.bf16.msra.mxu0 %v1175
        %1190 = vmatmul.bf16.gmra.mxu0 %v1180
        %v1191 = vpop.f32.mrf.mxu0
        %v1192 = vadd.f32 %v1166, %v1191
        %v1193 = vpop.f32.mrf.mxu0
        %1194 = vdwg.mxu0
        %v1195 = vld [vmem:[#allocation2 + $0x64] sm:$0xf]
        %v1196 = vld [vmem:[#allocation2 + $0xdc] sm:$0xf]
        %v1197 = vld [vmem:[#allocation2 + $0x154] sm:$0xf]
        %v1198 = vld [vmem:[#allocation2 + $0x1cc] sm:$0xf]
        %v1199 = vld [vmem:[%s8 + $0x1f] sm:$0x1]
        %v1200 = vperm.slane %v1199, 0
        %v1205 = vunpack.c.l.b16 %v1195
        %v1206 = vunpack.c.l.b16 %v1196
        %v1207 = vunpack.c.l.b16 %v1197
        %v1208 = vunpack.c.l.b16 %v1198
        %v1209 = vpack.c.b16 %v1206, %v1205
        %v1210 = vpack.c.b16 %v1208, %v1207
        %v1214 = vsel %vm572, %v1160, 0
        %1216 = vmatpush.bf16.msra.mxu0 0
        %1217 = vmatpush.bf16.msra.mxu0 0
        %1218 = vmatpush.bf16.msra.mxu0 0
        %1219 = vmatpush.bf16.msra.mxu0 0
        %1220 = vmatpush.bf16.msra.mxu0 0
        %1221 = vmatpush.bf16.msra.mxu0 0
        %1222 = vmatpush.bf16.msra.mxu0 %v1210
        %1223 = vmatpush.bf16.msra.mxu0 %v1209
        %1224 = vmatmul.bf16.gmra.mxu0 %v1214
        %v1225 = vpop.f32.mrf.mxu0
        %v1226 = vadd.f32 %v1200, %v1225
        %v1227 = vpop.f32.mrf.mxu0
        %1228 = vdwg.mxu0
        %v1229 = vld [vmem:[#allocation2 + $0x68] sm:$0xf]
        %v1230 = vld [vmem:[#allocation2 + $0xe0] sm:$0xf]
        %v1231 = vld [vmem:[#allocation2 + $0x158] sm:$0xf]
        %v1232 = vld [vmem:[#allocation2 + $0x1d0] sm:$0xf]
        %v1233 = vld [vmem:[%s8 + $0x20] sm:$0x1]
        %v1234 = vperm.slane %v1233, 0
        %v1239 = vunpack.c.l.b16 %v1229
        %v1240 = vunpack.c.l.b16 %v1230
        %v1241 = vunpack.c.l.b16 %v1231
        %v1242 = vunpack.c.l.b16 %v1232
        %v1243 = vpack.c.b16 %v1240, %v1239
        %v1244 = vpack.c.b16 %v1242, %v1241
        %1247 = vmatpush.bf16.msra.mxu0 0
        %1248 = vmatpush.bf16.msra.mxu0 0
        %1249 = vmatpush.bf16.msra.mxu0 0
        %1250 = vmatpush.bf16.msra.mxu0 0
        %1251 = vmatpush.bf16.msra.mxu0 0
        %1252 = vmatpush.bf16.msra.mxu0 0
        %1253 = vmatpush.bf16.msra.mxu0 %v1244
        %1254 = vmatpush.bf16.msra.mxu0 %v1243
        %1255 = vmatmul.bf16.gmra.mxu0 %v1214
        %v1256 = vpop.f32.mrf.mxu0
        %v1257 = vadd.f32 %v1234, %v1256
        %v1258 = vpop.f32.mrf.mxu0
        %1259 = vdwg.mxu0
        %v1260 = vpack.c.bf16 %v1192, %v1192
        %v1261 = vpack.c.bf16 %v1226, %v1226
        %v1263 = vsel %vm572, %v1260, 0
        %v1266 = vsel %vm572, %v1261, 0
        %1268 = vmatpush.bf16.xpose.msra.mxu0 0
        %1269 = vmatpush.bf16.xpose.msra.mxu0 0
        %1270 = vmatpush.bf16.xpose.msra.mxu0 0
        %1271 = vmatpush.bf16.xpose.msra.mxu0 0
        %1272 = vmatpush.bf16.xpose.msra.mxu0 0
        %1273 = vmatpush.bf16.xpose.msra.mxu0 0
        %1274 = vmatpush.bf16.xpose.msra.mxu0 0
        %1275 = vmatpush.bf16.xpose.msra.mxu0 %v1266
        %1276 = vmatmul.bf16.gmra.mxu0 %v1263
        %v1277 = vpop.f32.mrf.mxu0
        %v1278 = vadd.f32 %v654, %v1277
        %v1279 = vpop.f32.mrf.mxu0
        %1280 = vdwg.mxu0
        %v1281 = vsel %vm675, %v1278, -inf
        %1282 = vmax.xlane.f32.xlu0 %v1281
        %v1283 = vpop.xlane.xlu0 %1282
        %v1284 = vsub.f32 %v1278, %v1283
        %v1285 = vmul.f32 %v1284, 1.442695
        %v1286 = vpow.pop %v1285
        %v1287 = vsel %vm675, %v1286, 0.0
        %1288 = vadd.xlane.f32.xlu0 %v1287
        %v1289 = vpop.xlane.xlu0 %1288
        %v1290 = vrcp.pop %v1289
        %v1291 = vmul.f32 %v1286, %v1290
        %v1292 = vpack.c.bf16 %v1291, %v1291
        %v1293 = vpack.c.bf16 %v1257, %v1257
        %v1295 = vsel %vm675, %v1292, 0
        %v1298 = vsel %vm692, %v1293, 0
        %1300 = vmatpush.bf16.msra.mxu0 0
        %1301 = vmatpush.bf16.msra.mxu0 0
        %1302 = vmatpush.bf16.msra.mxu0 0
        %1303 = vmatpush.bf16.msra.mxu0 0
        %1304 = vmatpush.bf16.msra.mxu0 0
        %1305 = vmatpush.bf16.msra.mxu0 0
        %1306 = vmatpush.bf16.msra.mxu0 0
        %1307 = vmatpush.bf16.msra.mxu0 %v1298
        %1308 = vmatmul.bf16.gmra.mxu0 %v1295
        %v1309 = vpop.f32.mrf.mxu0
        %v1310 = vadd.f32 0.0, %v1309
        %v1311 = vpop.f32.mrf.mxu0
        %1312 = vdwg.mxu0
        %v1313 = vpack.c.bf16 %v1310, %v1310
        %v1314 = vld [vmem:[#allocation2 + $0x6c] sm:$0xf]
        %v1315 = vld [vmem:[#allocation2 + $0xe4] sm:$0xf]
        %v1316 = vld [vmem:[#allocation2 + $0x15c] sm:$0xf]
        %v1317 = vld [vmem:[#allocation2 + $0x1d4] sm:$0xf]
        %v1318 = vld [vmem:[%s8 + $0x21] sm:$0x1]
        %v1319 = vperm.slane %v1318, 0
        %v1324 = vunpack.c.l.b16 %v1314
        %v1325 = vunpack.c.l.b16 %v1315
        %v1326 = vunpack.c.l.b16 %v1316
        %v1327 = vunpack.c.l.b16 %v1317
        %v1328 = vpack.c.b16 %v1325, %v1324
        %v1329 = vpack.c.b16 %v1327, %v1326
        %v1333 = vsel %vm572, %v1313, 0
        %1335 = vmatpush.bf16.msra.mxu0 0
        %1336 = vmatpush.bf16.msra.mxu0 0
        %1337 = vmatpush.bf16.msra.mxu0 0
        %1338 = vmatpush.bf16.msra.mxu0 0
        %1339 = vmatpush.bf16.msra.mxu0 0
        %1340 = vmatpush.bf16.msra.mxu0 0
        %1341 = vmatpush.bf16.msra.mxu0 %v1329
        %1342 = vmatpush.bf16.msra.mxu0 %v1328
        %1343 = vmatmul.bf16.gmra.mxu0 %v1333
        %v1344 = vpop.f32.mrf.mxu0
        %v1345 = vadd.f32 %v1319, %v1344
        %v1346 = vpop.f32.mrf.mxu0
        %1347 = vdwg.mxu0
        %v1348 = vadd.f32 %v1158, %v1345
        %v1349 = vld [vmem:[%s8 + $0x12] sm:$0x1]
        %v1350 = vld [vmem:[%s8 + $0x13] sm:$0x1]
        %v1351 = vsel %vm572, %v1348, 0.0
        %1352 = vadd.xlane.f32.xlu0 %v1351
        %v1353 = vpop.xlane.xlu0 %1352
        %v1354 = vmul.f32 %v1353, %v756
        %v1355 = vsub.f32 %v1348, %v1354
        %v1356 = vmul.f32 %v1355, %v1355
        %v1357 = vsel %vm572, %v1356, 0.0
        %1358 = vadd.xlane.f32.xlu0 %v1357
        %v1359 = vpop.xlane.xlu0 %1358
        %v1360 = vmul.f32 %v1359, %v756
        %v1361 = vadd.f32 %v1360, 1e-05
        %v1362 = vrsqrt.pop %v1361
        %v1363 = vmul.f32 %v1362, %v1361
        %v1364 = vmul.f32 %v1363, %v1362
        %v1365 = vmul.f32 0.5, %v1364
        %v1366 = vsub.f32 1.5, %v1365
        %v1367 = vmul.f32 %v1362, %v1366
        %vm1368 = vweird.f32 %v1361
        %vm1369 = vweird.f32 %v1362
        %vm1370 = vmor %vm1368, %vm1369
        %v1371 = vsel %vm1370, %v1362, %v1367
        %v1372 = vmul.f32 %v1355, %v1371
        %v1373 = vperm.slane %v1349, 0
        %v1374 = vmul.f32 %v1372, %v1373
        %v1375 = vperm.slane %v1350, 0
        %v1376 = vadd.f32 %v1374, %v1375
        %v1377 = vpack.c.bf16 %v1376, %v1376
        %v1378 = vld [vmem:[#allocation2 + $0x38] sm:$0xf]
        %v1379 = vld [vmem:[#allocation2 + $0xb0] sm:$0xf]
        %v1380 = vld [vmem:[#allocation2 + $0x128] sm:$0xf]
        %v1381 = vld [vmem:[#allocation2 + $0x1a0] sm:$0xf]
        %v1382 = vld [vmem:[%s8 + $0x10] sm:$0x1]
        %v1383 = vperm.slane %v1382, 0
        %v1388 = vunpack.c.l.b16 %v1378
        %v1389 = vunpack.c.l.b16 %v1379
        %v1390 = vunpack.c.l.b16 %v1380
        %v1391 = vunpack.c.l.b16 %v1381
        %v1392 = vpack.c.b16 %v1389, %v1388
        %v1393 = vpack.c.b16 %v1391, %v1390
        %v1397 = vsel %vm572, %v1377, 0
        %1399 = vmatpush.bf16.msra.mxu0 0
        %1400 = vmatpush.bf16.msra.mxu0 0
        %1401 = vmatpush.bf16.msra.mxu0 0
        %1402 = vmatpush.bf16.msra.mxu0 0
        %1403 = vmatpush.bf16.msra.mxu0 0
        %1404 = vmatpush.bf16.msra.mxu0 0
        %1405 = vmatpush.bf16.msra.mxu0 %v1393
        %1406 = vmatpush.bf16.msra.mxu0 %v1392
        %1407 = vmatmul.bf16.gmra.mxu0 %v1397
        %v1408 = vpop.f32.mrf.mxu0
        %v1409 = vadd.f32 %v1383, %v1408
        %v1410 = vpop.f32.mrf.mxu0
        %1411 = vdwg.mxu0
        %v1412 = vmul.f32 %v1409, %v1409
        %v1413 = vmul.f32 %v1409, %v1412
        %v1414 = vmul.f32 %v1413, 0.044715
        %v1415 = vadd.f32 %v1409, %v1414
        %v1416 = vmul.f32 %v1415, 0.7978846
        %v1417 = vtanh.pop %v1416
        %v1418 = vadd.f32 %v1417, 1.0
        %v1419 = vmul.f32 %v1418, 0.5
        %v1420 = vmul.f32 %v1409, %v1419
        %v1421 = vpack.c.bf16 %v1420, %v1420
        %v1422 = vld [vmem:[#allocation2 + $0x3c] sm:$0xf]
        %v1423 = vld [vmem:[#allocation2 + $0xb4] sm:$0xf]
        %v1424 = vld [vmem:[#allocation2 + $0x12c] sm:$0xf]
        %v1425 = vld [vmem:[#allocation2 + $0x1a4] sm:$0xf]
        %v1426 = vld [vmem:[%s8 + $0x11] sm:$0x1]
        %v1427 = vperm.slane %v1426, 0
        %v1432 = vunpack.c.l.b16 %v1422
        %v1433 = vunpack.c.l.b16 %v1423
        %v1434 = vunpack.c.l.b16 %v1424
        %v1435 = vunpack.c.l.b16 %v1425
        %v1436 = vpack.c.b16 %v1433, %v1432
        %v1437 = vpack.c.b16 %v1435, %v1434
        %v1439 = vsel %vm530, %v1421, 0
        %v1442 = vsel %vm530, %v1436, 0
        %v1445 = vsel %vm530, %v1437, 0
        %1447 = vmatpush.bf16.xpose.msra.mxu0 0
        %1448 = vmatpush.bf16.xpose.msra.mxu0 0
        %1449 = vmatpush.bf16.xpose.msra.mxu0 0
        %1450 = vmatpush.bf16.xpose.msra.mxu0 0
        %1451 = vmatpush.bf16.xpose.msra.mxu0 0
        %1452 = vmatpush.bf16.xpose.msra.mxu0 0
        %1453 = vmatpush.bf16.xpose.msra.mxu0 %v1445
        %1454 = vmatpush.bf16.xpose.msra.mxu0 %v1442
        %1455 = vmatmul.bf16.gmra.mxu0 %v1439
        %v1456 = vpop.f32.mrf.mxu0
        %v1457 = vadd.f32 %v1427, %v1456
        %v1458 = vpop.f32.mrf.mxu0
        %1459 = vdwg.mxu0
        %v1460 = vadd.f32 %v1376, %v1457
        %v1461 = vld [vmem:[%s8 + $0x22] sm:$0x1]
        %v1462 = vld [vmem:[%s8 + $0x23] sm:$0x1]
        %v1463 = vsel %vm572, %v1460, 0.0
        %1464 = vadd.xlane.f32.xlu0 %v1463
        %v1465 = vpop.xlane.xlu0 %1464
        %v1466 = vmul.f32 %v1465, %v756
        %v1467 = vsub.f32 %v1460, %v1466
        %v1468 = vmul.f32 %v1467, %v1467
        %v1469 = vsel %vm572, %v1468, 0.0
        %1470 = vadd.xlane.f32.xlu0 %v1469
        %v1471 = vpop.xlane.xlu0 %1470
        %v1472 = vmul.f32 %v1471, %v756
        %v1473 = vadd.f32 %v1472, 1e-05
        %v1474 = vrsqrt.pop %v1473
        %v1475 = vmul.f32 %v1474, %v1473
        %v1476 = vmul.f32 %v1475, %v1474
        %v1477 = vmul.f32 0.5, %v1476
        %v1478 = vsub.f32 1.5, %v1477
        %v1479 = vmul.f32 %v1474, %v1478
        %vm1480 = vweird.f32 %v1473
        %vm1481 = vweird.f32 %v1474
        %vm1482 = vmor %vm1480, %vm1481
        %v1483 = vsel %vm1482, %v1474, %v1479
        %v1484 = vmul.f32 %v1467, %v1483
        %v1485 = vperm.slane %v1461, 0
        %v1486 = vmul.f32 %v1484, %v1485
        %v1487 = vperm.slane %v1462, 0
        %v1488 = vadd.f32 %v1486, %v1487
        %v1489 = vpack.c.bf16 %v1488, %v1488
        %v1490 = vld [vmem:[#allocation2 + $0x70] sm:$0xf]
        %v1491 = vld [vmem:[#allocation2 + $0xe8] sm:$0xf]
        %v1492 = vld [vmem:[#allocation2 + $0x160] sm:$0xf]
        %v1493 = vld [vmem:[#allocation2 + $0x1d8] sm:$0xf]
        %v1494 = vld [vmem:[%s8 + $0x24] sm:$0x1]
        %v1495 = vperm.slane %v1494, 0
        %v1500 = vunpack.c.l.b16 %v1490
        %v1501 = vunpack.c.l.b16 %v1491
        %v1502 = vunpack.c.l.b16 %v1492
        %v1503 = vunpack.c.l.b16 %v1493
        %v1504 = vpack.c.b16 %v1501, %v1500
        %v1505 = vpack.c.b16 %v1503, %v1502
        %v1509 = vsel %vm572, %v1489, 0
        %1511 = vmatpush.bf16.msra.mxu0 0
        %1512 = vmatpush.bf16.msra.mxu0 0
        %1513 = vmatpush.bf16.msra.mxu0 0
        %1514 = vmatpush.bf16.msra.mxu0 0
        %1515 = vmatpush.bf16.msra.mxu0 0
        %1516 = vmatpush.bf16.msra.mxu0 0
        %1517 = vmatpush.bf16.msra.mxu0 %v1505
        %1518 = vmatpush.bf16.msra.mxu0 %v1504
        %1519 = vmatmul.bf16.gmra.mxu0 %v1509
        %v1520 = vpop.f32.mrf.mxu0
        %v1521 = vadd.f32 %v1495, %v1520
        %v1522 = vpop.f32.mrf.mxu0
        %1523 = vdwg.mxu0
        %1524 = vst [vmem:[%s459] sm:$0xff] %v1521
        %1525 = vst.msk [vmem:[%s466] sm:$0xff] %vm572, %v1488
        %v1526 = vld [vmem:[%s495] sm:$0x1]
        %v1527 = vsub.f32 1.0, %v1526
        %v1528 = vmul.f32 %v1527, -1e+09
        %v1529 = vld [vmem:[%s492] sm:$0xff]
        %v1530 = vld [vmem:[%s492 + $0x8] sm:$0xff]
        %1531 = vset.pattern.permute.xlu0 0
        %1532 = vperm.xlu0 %1531, %v1529
        %v1533 = vpop.permute.xlu0 %1532
        %1534 = vset.pattern.permute.xlu0 0
        %1535 = vperm.xlu0 %1534, %v1530
        %v1536 = vpop.permute.xlu0 %1535
        %vm1537 = vcmp.eq.s32.totalorder %v507, %v1533
        %vm1538 = vcmp.eq.s32.totalorder %v507, %v1536
        %v1539 = vsel %vm1537, 1.0, 0.0
        %v1540 = vsel %vm1538, 1.0, 0.0
        %v1541 = vpack.c.bf16 %v1540, %v1539
        %v1542 = vld [vmem:[#allocation2 + $0x40] sm:$0xf]
        %v1543 = vld [vmem:[#allocation2 + $0xb8] sm:$0xf]
        %v1544 = vld [vmem:[#allocation2 + $0x130] sm:$0xf]
        %v1545 = vld [vmem:[#allocation2 + $0x1a8] sm:$0xf]
        %v1546 = vld [vmem:[#allocation2 + $0x44] sm:$0xf]
        %v1547 = vld [vmem:[#allocation2 + $0xbc] sm:$0xf]
        %v1548 = vunpack.c.l.bf16 %v1546
        %v1549 = vunpack.c.l.bf16 %v1547
        %v1554 = vunpack.c.l.b16 %v1542
        %v1555 = vunpack.c.l.b16 %v1543
        %v1556 = vunpack.c.l.b16 %v1544
        %v1557 = vunpack.c.l.b16 %v1545
        %v1558 = vpack.c.b16 %v1555, %v1554
        %v1559 = vpack.c.b16 %v1557, %v1556
        %v1561 = vsel %vm530, %v1541, 0
        %v1564 = vsel %vm530, %v1558, 0
        %v1567 = vsel %vm530, %v1559, 0
        %1569 = vmatpush.bf16.xpose.msra.mxu0 0
        %1570 = vmatpush.bf16.xpose.msra.mxu0 0
        %1571 = vmatpush.bf16.xpose.msra.mxu0 0
        %1572 = vmatpush.bf16.xpose.msra.mxu0 0
        %1573 = vmatpush.bf16.xpose.msra.mxu0 0
        %1574 = vmatpush.bf16.xpose.msra.mxu0 0
        %1575 = vmatpush.bf16.xpose.msra.mxu0 %v1567
        %1576 = vmatpush.bf16.xpose.msra.mxu0 %v1564
        %1577 = vmatmul.bf16.gmra.mxu0 %v1561
        %v1578 = vpop.f32.mrf.mxu0
        %v1579 = vadd.f32 %v1548, %v1578
        %v1580 = vpop.f32.mrf.mxu0
        %v1581 = vadd.f32 %v1549, %v1580
        %1582 = vdwg.mxu0
        %v1583 = vpack.c.bf16 %v1581, %v1579
        %v1584 = vld [vmem:[#allocation2 + $0x48] sm:$0xf]
        %v1585 = vld [vmem:[#allocation2 + $0xc0] sm:$0xf]
        %v1586 = vld [vmem:[#allocation2 + $0x138] sm:$0xf]
        %v1587 = vld [vmem:[#allocation2 + $0x1b0] sm:$0xf]
        %v1588 = vld [vmem:[%s8 + $0x14] sm:$0x1]
        %v1589 = vperm.slane %v1588, 0
        %v1594 = vunpack.c.l.b16 %v1584
        %v1595 = vunpack.c.l.b16 %v1585
        %v1596 = vunpack.c.l.b16 %v1586
        %v1597 = vunpack.c.l.b16 %v1587
        %v1598 = vpack.c.b16 %v1595, %v1594
        %v1599 = vpack.c.b16 %v1597, %v1596
        %v1603 = vsel %vm572, %v1583, 0
        %1605 = vmatpush.bf16.msra.mxu0 0
        %1606 = vmatpush.bf16.msra.mxu0 0
        %1607 = vmatpush.bf16.msra.mxu0 0
        %1608 = vmatpush.bf16.msra.mxu0 0
        %1609 = vmatpush.bf16.msra.mxu0 0
        %1610 = vmatpush.bf16.msra.mxu0 0
        %1611 = vmatpush.bf16.msra.mxu0 %v1599
        %1612 = vmatpush.bf16.msra.mxu0 %v1598
        %1613 = vmatmul.bf16.gmra.mxu0 %v1603
        %v1614 = vpop.f32.mrf.mxu0
        %v1615 = vadd.f32 %v1589, %v1614
        %v1616 = vpop.f32.mrf.mxu0
        %v1617 = vadd.f32 %v1589, %v1616
        %1618 = vdwg.mxu0
        %v1619 = vld [vmem:[#allocation2 + $0x4c] sm:$0xf]
        %v1620 = vld [vmem:[#allocation2 + $0xc4] sm:$0xf]
        %v1621 = vld [vmem:[#allocation2 + $0x13c] sm:$0xf]
        %v1622 = vld [vmem:[#allocation2 + $0x1b4] sm:$0xf]
        %v1623 = vld [vmem:[%s8 + $0x15] sm:$0x1]
        %v1624 = vperm.slane %v1623, 0
        %v1629 = vunpack.c.l.b16 %v1619
        %v1630 = vunpack.c.l.b16 %v1620
        %v1631 = vunpack.c.l.b16 %v1621
        %v1632 = vunpack.c.l.b16 %v1622
        %v1633 = vpack.c.b16 %v1630, %v1629
        %v1634 = vpack.c.b16 %v1632, %v1631
        %1637 = vmatpush.bf16.msra.mxu0 0
        %1638 = vmatpush.bf16.msra.mxu0 0
        %1639 = vmatpush.bf16.msra.mxu0 0
        %1640 = vmatpush.bf16.msra.mxu0 0
        %1641 = vmatpush.bf16.msra.mxu0 0
        %1642 = vmatpush.bf16.msra.mxu0 0
        %1643 = vmatpush.bf16.msra.mxu0 %v1634
        %1644 = vmatpush.bf16.msra.mxu0 %v1633
        %1645 = vmatmul.bf16.gmra.mxu0 %v1603
        %v1646 = vpop.f32.mrf.mxu0
        %v1647 = vadd.f32 %v1624, %v1646
        %v1648 = vpop.f32.mrf.mxu0
        %v1649 = vadd.f32 %v1624, %v1648
        %1650 = vdwg.mxu0
        %v1651 = vld [vmem:[#allocation2 + $0x50] sm:$0xf]
        %v1652 = vld [vmem:[#allocation2 + $0xc8] sm:$0xf]
        %v1653 = vld [vmem:[#allocation2 + $0x140] sm:$0xf]
        %v1654 = vld [vmem:[#allocation2 + $0x1b8] sm:$0xf]
        %v1655 = vld [vmem:[%s8 + $0x16] sm:$0x1]
        %v1656 = vperm.slane %v1655, 0
        %v1661 = vunpack.c.l.b16 %v1651
        %v1662 = vunpack.c.l.b16 %v1652
        %v1663 = vunpack.c.l.b16 %v1653
        %v1664 = vunpack.c.l.b16 %v1654
        %v1665 = vpack.c.b16 %v1662, %v1661
        %v1666 = vpack.c.b16 %v1664, %v1663
        %1669 = vmatpush.bf16.msra.mxu0 0
        %1670 = vmatpush.bf16.msra.mxu0 0
        %1671 = vmatpush.bf16.msra.mxu0 0
        %1672 = vmatpush.bf16.msra.mxu0 0
        %1673 = vmatpush.bf16.msra.mxu0 0
        %1674 = vmatpush.bf16.msra.mxu0 0
        %1675 = vmatpush.bf16.msra.mxu0 %v1666
        %1676 = vmatpush.bf16.msra.mxu0 %v1665
        %1677 = vmatmul.bf16.gmra.mxu0 %v1603
        %v1678 = vpop.f32.mrf.mxu0
        %v1679 = vadd.f32 %v1656, %v1678
        %v1680 = vpop.f32.mrf.mxu0
        %v1681 = vadd.f32 %v1656, %v1680
        %1682 = vdwg.mxu0
        %v1683 = vpack.c.bf16 %v1617, %v1615
        %v1684 = vpack.c.bf16 %v1649, %v1647
        %v1686 = vperm.slane %v1528, 0
        %v1689 = vsel %vm572, %v1683, 0
        %v1692 = vsel %vm572, %v1684, 0
        %1694 = vmatpush.bf16.xpose.msra.mxu0 0
        %1695 = vmatpush.bf16.xpose.msra.mxu0 0
        %1696 = vmatpush.bf16.xpose.msra.mxu0 0
        %1697 = vmatpush.bf16.xpose.msra.mxu0 0
        %1698 = vmatpush.bf16.xpose.msra.mxu0 0
        %1699 = vmatpush.bf16.xpose.msra.mxu0 0
        %1700 = vmatpush.bf16.xpose.msra.mxu0 0
        %1701 = vmatpush.bf16.xpose.msra.mxu0 %v1692
        %1702 = vmatmul.bf16.gmra.mxu0 %v1689
        %v1703 = vpop.f32.mrf.mxu0
        %v1704 = vadd.f32 %v1686, %v1703
        %v1705 = vpop.f32.mrf.mxu0
        %v1706 = vadd.f32 %v1686, %v1705
        %1707 = vdwg.mxu0
        %vm1708 = vcmask 130048
        %v1709 = vsel %vm1708, %v1704, -inf
        %1710 = vmax.xlane.f32.xlu0 %v1709
        %v1711 = vpop.xlane.xlu0 %1710
        %v1712 = vsel %vm1708, %v1706, -inf
        %1713 = vmax.xlane.f32.xlu0 %v1712
        %v1714 = vpop.xlane.xlu0 %1713
        %v1715 = vsub.f32 %v1704, %v1711
        %v1716 = vsub.f32 %v1706, %v1714
        %v1717 = vmul.f32 %v1715, 1.442695
        %v1718 = vpow.pop %v1717
        %v1719 = vmul.f32 %v1716, 1.442695
        %v1720 = vpow.pop %v1719
        %v1721 = vsel %vm1708, %v1718, 0.0
        %1722 = vadd.xlane.f32.xlu0 %v1721
        %v1723 = vpop.xlane.xlu0 %1722
        %v1724 = vsel %vm1708, %v1720, 0.0
        %1725 = vadd.xlane.f32.xlu0 %v1724
        %v1726 = vpop.xlane.xlu0 %1725
        %v1727 = vrcp.pop %v1723
        %v1728 = vrcp.pop %v1726
        %v1729 = vmul.f32 %v1718, %v1727
        %v1730 = vmul.f32 %v1720, %v1728
        %v1731 = vpack.c.bf16 %v1730, %v1729
        %v1732 = vpack.c.bf16 %v1681, %v1679
        %v1734 = vsel %vm1708, %v1731, 0
        %1736 = vmatpush.bf16.msra.mxu0 0
        %1737 = vmatpush.bf16.msra.mxu0 0
        %1738 = vmatpush.bf16.msra.mxu0 0
        %1739 = vmatpush.bf16.msra.mxu0 0
        %1740 = vmatpush.bf16.msra.mxu0 0
        %1741 = vmatpush.bf16.msra.mxu0 0
        %1742 = vmatpush.bf16.msra.mxu0 0
        %1743 = vmatpush.bf16.msra.mxu0 %v1732
        %1744 = vmatmul.bf16.gmra.mxu0 %v1734
        %v1745 = vpop.f32.mrf.mxu0
        %v1746 = vadd.f32 0.0, %v1745
        %v1747 = vpop.f32.mrf.mxu0
        %v1748 = vadd.f32 0.0, %v1747
        %1749 = vdwg.mxu0
        %v1750 = vpack.c.bf16 %v1748, %v1746
        %v1751 = vld [vmem:[#allocation2 + $0x54] sm:$0xf]
        %v1752 = vld [vmem:[#allocation2 + $0xcc] sm:$0xf]
        %v1753 = vld [vmem:[#allocation2 + $0x144] sm:$0xf]
        %v1754 = vld [vmem:[#allocation2 + $0x1bc] sm:$0xf]
        %v1755 = vld [vmem:[%s8 + $0x17] sm:$0x1]
        %v1756 = vperm.slane %v1755, 0
        %v1761 = vunpack.c.l.b16 %v1751
        %v1762 = vunpack.c.l.b16 %v1752
        %v1763 = vunpack.c.l.b16 %v1753
        %v1764 = vunpack.c.l.b16 %v1754
        %v1765 = vpack.c.b16 %v1762, %v1761
        %v1766 = vpack.c.b16 %v1764, %v1763
        %v1770 = vsel %vm572, %v1750, 0
        %1772 = vmatpush.bf16.msra.mxu0 0
        %1773 = vmatpush.bf16.msra.mxu0 0
        %1774 = vmatpush.bf16.msra.mxu0 0
        %1775 = vmatpush.bf16.msra.mxu0 0
        %1776 = vmatpush.bf16.msra.mxu0 0
        %1777 = vmatpush.bf16.msra.mxu0 0
        %1778 = vmatpush.bf16.msra.mxu0 %v1766
        %1779 = vmatpush.bf16.msra.mxu0 %v1765
        %1780 = vmatmul.bf16.gmra.mxu0 %v1770
        %v1781 = vpop.f32.mrf.mxu0
        %v1782 = vadd.f32 %v1756, %v1781
        %v1783 = vpop.f32.mrf.mxu0
        %v1784 = vadd.f32 %v1756, %v1783
        %1785 = vdwg.mxu0
        %v1786 = vadd.f32 %v1579, %v1782
        %v1787 = vadd.f32 %v1581, %v1784
        %v1788 = vld [vmem:[%s8 + $0x18] sm:$0x1]
        %v1789 = vld [vmem:[%s8 + $0x19] sm:$0x1]
        %v1790 = vsel %vm572, %v1786, 0.0
        %1791 = vadd.xlane.f32.xlu0 %v1790
        %v1792 = vpop.xlane.xlu0 %1791
        %v1793 = vsel %vm572, %v1787, 0.0
        %1794 = vadd.xlane.f32.xlu0 %v1793
        %v1795 = vpop.xlane.xlu0 %1794
        %v1796 = vmul.f32 %v1792, %v756
        %v1797 = vmul.f32 %v1795, %v756
        %v1798 = vsub.f32 %v1786, %v1796
        %v1799 = vsub.f32 %v1787, %v1797
        %v1800 = vmul.f32 %v1798, %v1798
        %v1801 = vmul.f32 %v1799, %v1799
        %v1802 = vsel %vm572, %v1800, 0.0
        %1803 = vadd.xlane.f32.xlu0 %v1802
        %v1804 = vpop.xlane.xlu0 %1803
        %v1805 = vsel %vm572, %v1801, 0.0
        %1806 = vadd.xlane.f32.xlu0 %v1805
        %v1807 = vpop.xlane.xlu0 %1806
        %v1808 = vmul.f32 %v1804, %v756
        %v1809 = vmul.f32 %v1807, %v756
        %v1810 = vadd.f32 %v1808, 1e-05
        %v1811 = vadd.f32 %v1809, 1e-05
        %v1812 = vrsqrt.pop %v1810
        %v1813 = vmul.f32 %v1812, %v1810
        %v1814 = vmul.f32 %v1813, %v1812
        %v1815 = vmul.f32 0.5, %v1814
        %v1816 = vsub.f32 1.5, %v1815
        %v1817 = vmul.f32 %v1812, %v1816
        %vm1818 = vweird.f32 %v1810
        %vm1819 = vweird.f32 %v1812
        %vm1820 = vmor %vm1818, %vm1819
        %v1821 = vsel %vm1820, %v1812, %v1817
        %v1822 = vrsqrt.pop %v1811
        %v1823 = vmul.f32 %v1822, %v1811
        %v1824 = vmul.f32 %v1823, %v1822
        %v1825 = vmul.f32 0.5, %v1824
        %v1826 = vsub.f32 1.5, %v1825
        %v1827 = vmul.f32 %v1822, %v1826
        %vm1828 = vweird.f32 %v1811
        %vm1829 = vweird.f32 %v1822
        %vm1830 = vmor %vm1828, %vm1829
        %v1831 = vsel %vm1830, %v1822, %v1827
        %v1832 = vmul.f32 %v1798, %v1821
        %v1833 = vmul.f32 %v1799, %v1831
        %v1834 = vperm.slane %v1788, 0
        %v1835 = vmul.f32 %v1832, %v1834
        %v1836 = vmul.f32 %v1833, %v1834
        %v1837 = vperm.slane %v1789, 0
        %v1838 = vadd.f32 %v1835, %v1837
        %v1839 = vadd.f32 %v1836, %v1837
        %v1840 = vpack.c.bf16 %v1839, %v1838
        %v1841 = vld [vmem:[#allocation2 + $0x58] sm:$0xf]
        %v1842 = vld [vmem:[#allocation2 + $0xd0] sm:$0xf]
        %v1843 = vld [vmem:[#allocation2 + $0x148] sm:$0xf]
        %v1844 = vld [vmem:[#allocation2 + $0x1c0] sm:$0xf]
        %v1845 = vld [vmem:[%s8 + $0x1a] sm:$0x1]
        %v1846 = vperm.slane %v1845, 0
        %v1851 = vunpack.c.l.b16 %v1841
        %v1852 = vunpack.c.l.b16 %v1842
        %v1853 = vunpack.c.l.b16 %v1843
        %v1854 = vunpack.c.l.b16 %v1844
        %v1855 = vpack.c.b16 %v1852, %v1851
        %v1856 = vpack.c.b16 %v1854, %v1853
        %v1860 = vsel %vm572, %v1840, 0
        %1862 = vmatpush.bf16.msra.mxu0 0
        %1863 = vmatpush.bf16.msra.mxu0 0
        %1864 = vmatpush.bf16.msra.mxu0 0
        %1865 = vmatpush.bf16.msra.mxu0 0
        %1866 = vmatpush.bf16.msra.mxu0 0
        %1867 = vmatpush.bf16.msra.mxu0 0
        %1868 = vmatpush.bf16.msra.mxu0 %v1856
        %1869 = vmatpush.bf16.msra.mxu0 %v1855
        %1870 = vmatmul.bf16.gmra.mxu0 %v1860
        %v1871 = vpop.f32.mrf.mxu0
        %v1872 = vadd.f32 %v1846, %v1871
        %v1873 = vpop.f32.mrf.mxu0
        %v1874 = vadd.f32 %v1846, %v1873
        %1875 = vdwg.mxu0
        %v1876 = vmul.f32 %v1872, %v1872
        %v1877 = vmul.f32 %v1874, %v1874
        %v1878 = vmul.f32 %v1872, %v1876
        %v1879 = vmul.f32 %v1874, %v1877
        %v1880 = vmul.f32 %v1878, 0.044715
        %v1881 = vmul.f32 %v1879, 0.044715
        %v1882 = vadd.f32 %v1872, %v1880
        %v1883 = vadd.f32 %v1874, %v1881
        %v1884 = vmul.f32 %v1882, 0.7978846
        %v1885 = vmul.f32 %v1883, 0.7978846
        %v1886 = vtanh.pop %v1884
        %v1887 = vtanh.pop %v1885
        %v1888 = vadd.f32 %v1886, 1.0
        %v1889 = vadd.f32 %v1887, 1.0
        %v1890 = vmul.f32 %v1888, 0.5
        %v1891 = vmul.f32 %v1889, 0.5
        %v1892 = vmul.f32 %v1872, %v1890
        %v1893 = vmul.f32 %v1874, %v1891
        %v1894 = vpack.c.bf16 %v1893, %v1892
        %v1895 = vld [vmem:[#allocation2 + $0x5c] sm:$0xf]
        %v1896 = vld [vmem:[#allocation2 + $0xd4] sm:$0xf]
        %v1897 = vld [vmem:[#allocation2 + $0x14c] sm:$0xf]
        %v1898 = vld [vmem:[#allocation2 + $0x1c4] sm:$0xf]
        %v1899 = vld [vmem:[%s8 + $0x1b] sm:$0x1]
        %v1900 = vperm.slane %v1899, 0
        %v1905 = vunpack.c.l.b16 %v1895
        %v1906 = vunpack.c.l.b16 %v1896
        %v1907 = vunpack.c.l.b16 %v1897
        %v1908 = vunpack.c.l.b16 %v1898
        %v1909 = vpack.c.b16 %v1906, %v1905
        %v1910 = vpack.c.b16 %v1908, %v1907
        %v1912 = vsel %vm530, %v1894, 0
        %v1915 = vsel %vm530, %v1909, 0
        %v1918 = vsel %vm530, %v1910, 0
        %1920 = vmatpush.bf16.xpose.msra.mxu0 0
        %1921 = vmatpush.bf16.xpose.msra.mxu0 0
        %1922 = vmatpush.bf16.xpose.msra.mxu0 0
        %1923 = vmatpush.bf16.xpose.msra.mxu0 0
        %1924 = vmatpush.bf16.xpose.msra.mxu0 0
        %1925 = vmatpush.bf16.xpose.msra.mxu0 0
        %1926 = vmatpush.bf16.xpose.msra.mxu0 %v1918
        %1927 = vmatpush.bf16.xpose.msra.mxu0 %v1915
        %1928 = vmatmul.bf16.gmra.mxu0 %v1912
        %v1929 = vpop.f32.mrf.mxu0
        %v1930 = vadd.f32 %v1900, %v1929
        %v1931 = vpop.f32.mrf.mxu0
        %v1932 = vadd.f32 %v1900, %v1931
        %1933 = vdwg.mxu0
        %v1934 = vadd.f32 %v1838, %v1930
        %v1935 = vadd.f32 %v1839, %v1932
        %v1936 = vld [vmem:[%s8 + $0x1c] sm:$0x1]
        %v1937 = vld [vmem:[%s8 + $0x1d] sm:$0x1]
        %v1938 = vsel %vm572, %v1934, 0.0
        %1939 = vadd.xlane.f32.xlu0 %v1938
        %v1940 = vpop.xlane.xlu0 %1939
        %v1941 = vsel %vm572, %v1935, 0.0
        %1942 = vadd.xlane.f32.xlu0 %v1941
        %v1943 = vpop.xlane.xlu0 %1942
        %v1944 = vmul.f32 %v1940, %v756
        %v1945 = vmul.f32 %v1943, %v756
        %v1946 = vsub.f32 %v1934, %v1944
        %v1947 = vsub.f32 %v1935, %v1945
        %v1948 = vmul.f32 %v1946, %v1946
        %v1949 = vmul.f32 %v1947, %v1947
        %v1950 = vsel %vm572, %v1948, 0.0
        %1951 = vadd.xlane.f32.xlu0 %v1950
        %v1952 = vpop.xlane.xlu0 %1951
        %v1953 = vsel %vm572, %v1949, 0.0
        %1954 = vadd.xlane.f32.xlu0 %v1953
        %v1955 = vpop.xlane.xlu0 %1954
        %v1956 = vmul.f32 %v1952, %v756
        %v1957 = vmul.f32 %v1955, %v756
        %v1958 = vadd.f32 %v1956, 1e-05
        %v1959 = vadd.f32 %v1957, 1e-05
        %v1960 = vrsqrt.pop %v1958
        %v1961 = vmul.f32 %v1960, %v1958
        %v1962 = vmul.f32 %v1961, %v1960
        %v1963 = vmul.f32 0.5, %v1962
        %v1964 = vsub.f32 1.5, %v1963
        %v1965 = vmul.f32 %v1960, %v1964
        %vm1966 = vweird.f32 %v1958
        %vm1967 = vweird.f32 %v1960
        %vm1968 = vmor %vm1966, %vm1967
        %v1969 = vsel %vm1968, %v1960, %v1965
        %v1970 = vrsqrt.pop %v1959
        %v1971 = vmul.f32 %v1970, %v1959
        %v1972 = vmul.f32 %v1971, %v1970
        %v1973 = vmul.f32 0.5, %v1972
        %v1974 = vsub.f32 1.5, %v1973
        %v1975 = vmul.f32 %v1970, %v1974
        %vm1976 = vweird.f32 %v1959
        %vm1977 = vweird.f32 %v1970
        %vm1978 = vmor %vm1976, %vm1977
        %v1979 = vsel %vm1978, %v1970, %v1975
        %v1980 = vmul.f32 %v1946, %v1969
        %v1981 = vmul.f32 %v1947, %v1979
        %v1982 = vperm.slane %v1936, 0
        %v1983 = vmul.f32 %v1980, %v1982
        %v1984 = vmul.f32 %v1981, %v1982
        %v1985 = vperm.slane %v1937, 0
        %v1986 = vadd.f32 %v1983, %v1985
        %v1987 = vadd.f32 %v1984, %v1985
        %v1988 = vpack.c.bf16 %v1987, %v1986
        %v1989 = vld [vmem:[#allocation2 + $0x74] sm:$0xf]
        %v1990 = vld [vmem:[#allocation2 + $0xec] sm:$0xf]
        %v1991 = vld [vmem:[#allocation2 + $0x164] sm:$0xf]
        %v1992 = vld [vmem:[#allocation2 + $0x1dc] sm:$0xf]
        %v1993 = vld [vmem:[%s8 + $0x25] sm:$0x1]
        %v1994 = vperm.slane %v1993, 0
        %v1999 = vunpack.c.l.b16 %v1989
        %v2000 = vunpack.c.l.b16 %v1990
        %v2001 = vunpack.c.l.b16 %v1991
        %v2002 = vunpack.c.l.b16 %v1992
        %v2003 = vpack.c.b16 %v2000, %v1999
        %v2004 = vpack.c.b16 %v2002, %v2001
        %v2008 = vsel %vm572, %v1988, 0
        %2010 = vmatpush.bf16.msra.mxu0 0
        %2011 = vmatpush.bf16.msra.mxu0 0
        %2012 = vmatpush.bf16.msra.mxu0 0
        %2013 = vmatpush.bf16.msra.mxu0 0
        %2014 = vmatpush.bf16.msra.mxu0 0
        %2015 = vmatpush.bf16.msra.mxu0 0
        %2016 = vmatpush.bf16.msra.mxu0 %v2004
        %2017 = vmatpush.bf16.msra.mxu0 %v2003
        %2018 = vmatmul.bf16.gmra.mxu0 %v2008
        %v2019 = vpop.f32.mrf.mxu0
        %v2020 = vadd.f32 %v1994, %v2019
        %v2021 = vpop.f32.mrf.mxu0
        %v2022 = vadd.f32 %v1994, %v2021
        %2023 = vdwg.mxu0
        %2024 = vst [vmem:[%s500] sm:$0xff] %v2020
        %2025 = vst [vmem:[%s500 + $0x8] sm:$0xff] %v2022
        %s2026 = sand.u32 %s257, 1
        %s2027 = scalar_lea.sflag [#allocation4], %s2026
        %s2028 = sand.u32 %s257, 1
        %s2029 = smul.addr %s2028, 8
        %s2030 = scalar_lea.vmem [#allocation5], %s2029
        %s2031 = sand.u32 %s283, 1
        %s2032 = scalar_lea.sflag [#allocation7], %s2031
        %s2033 = sand.u32 %s283, 1
        %s2034 = smul.addr %s2033, 8
        %s2035 = scalar_lea.vmem [#allocation6], %s2034
        %p2036 = scmp.lt.s32.totalorder %s30, 1
        %s2037 = scalar_select %p2036, %s30, 1
        %s2038 = smul.addr %s2037, 2
        %s2039 = smul.addr %s2038, 8
        %s2040 = scalar_lea.vmem %s11, %s2039
        // Predicated region
        $region61: #{seq2cmdseq_forward.1} parent=55 // pred_check
          %p2041 = pneg %p267
        $region62: #{seq2cmdseq_forward.1} parent=55 // pred_check_branch
          %2043 = sbr.rel (%p2041) target = $region64
        $region63: #{seq2cmdseq_forward.1} parent=55 // pred_region
          %2045 = vsyncadd %s2027, 0
          %s2046 = smul.addr %s30, 8
          %s2047 = scalar_lea.hbm %s9, %s2046
          %s2049 = sshll.u32 %s2030, 4
          %s2050 = int_to_ptr.vmem [resolvable:$true] %s2049
          %s2051 = sshll.u32 %s2047, 4
          %s2052 = int_to_ptr.hbm [resolvable:$true] %s2051
          %2054 = dma.vmem_to_hbm [thread:$0]  %s2050, 128, %s2052, %s2027
        $region64: #{seq2cmdseq_forward.1} parent=55 // pred_fallthru
          _
        // Predicated region
        $region65: #{seq2cmdseq_forward.1} parent=55 // pred_check
          %p2055 = pneg %p293
        $region66: #{seq2cmdseq_forward.1} parent=55 // pred_check_branch
          %2057 = sbr.rel (%p2055) target = $region68
        $region67: #{seq2cmdseq_forward.1} parent=55 // pred_region
          %2059 = vsyncadd %s2032, 0
          %s2060 = smul.addr %s30, 8
          %s2061 = scalar_lea.hbm %s10, %s2060
          %s2063 = sshll.u32 %s2035, 4
          %s2064 = int_to_ptr.vmem [resolvable:$true] %s2063
          %s2065 = sshll.u32 %s2061, 4
          %s2066 = int_to_ptr.hbm [resolvable:$true] %s2065
          %2068 = dma.vmem_to_hbm [thread:$0]  %s2064, 128, %s2066, %s2032
        $region68: #{seq2cmdseq_forward.1} parent=55 // pred_fallthru
          _
        // Predicated region
        $region69: #{seq2cmdseq_forward.1} parent=55 // pred_check
          %p2069 = pneg %p319
        $region70: #{seq2cmdseq_forward.1} parent=55 // pred_check_branch
          %2071 = sbr.rel (%p2069) target = $region72
        $region71: #{seq2cmdseq_forward.1} parent=55 // pred_region
          _
        $region72: #{seq2cmdseq_forward.1} parent=55 // pred_fallthru
          _
      $region56: #{seq2cmdseq_forward.1} parent=5 // pred_fallthru
        _
      %p2072 = scmp.le.s32.totalorder 2, %s25
      // Predicated region
      $region73: #{seq2cmdseq_forward.1} parent=5 // pred_check
        %p2073 = pneg %p2072
      $region74: #{seq2cmdseq_forward.1} parent=5 // pred_check_branch
        %2075 = sbr.rel (%p2073) target = $region76
      $region75: #{seq2cmdseq_forward.1} parent=5 // pred_region
        %s2076 = ssub.s32 %s25, 2
        // Predicated region
        $region77: #{seq2cmdseq_forward.1} parent=75 // pred_check
          %p2077 = pneg %p273
        $region78: #{seq2cmdseq_forward.1} parent=75 // pred_check_branch
          %2079 = sbr.rel (%p2077) target = $region80
        $region79: #{seq2cmdseq_forward.1} parent=75 // pred_region
          %s2080 = sand.u32 %s258, 1
          %s2081 = scalar_lea.sflag [#allocation4], %s2080
          %s2082 = sand.u32 %s258, 1
          %s2083 = smul.addr %s2082, 8
          %s2084 = scalar_lea.vmem [#allocation5], %s2083
          %2086 = dma.done %s2081, 128
        $region80: #{seq2cmdseq_forward.1} parent=75 // pred_fallthru
          _
        // Predicated region
        $region81: #{seq2cmdseq_forward.1} parent=75 // pred_check
          %p2087 = pneg %p299
        $region82: #{seq2cmdseq_forward.1} parent=75 // pred_check_branch
          %2089 = sbr.rel (%p2087) target = $region84
        $region83: #{seq2cmdseq_forward.1} parent=75 // pred_region
          %s2090 = sand.u32 %s284, 1
          %s2091 = scalar_lea.sflag [#allocation7], %s2090
          %s2092 = sand.u32 %s284, 1
          %s2093 = smul.addr %s2092, 8
          %s2094 = scalar_lea.vmem [#allocation6], %s2093
          %2096 = dma.done %s2091, 128
        $region84: #{seq2cmdseq_forward.1} parent=75 // pred_fallthru
          _
        // Predicated region
        $region85: #{seq2cmdseq_forward.1} parent=75 // pred_check
          %p2097 = pneg %p325
        $region86: #{seq2cmdseq_forward.1} parent=75 // pred_check_branch
          %2099 = sbr.rel (%p2097) target = $region88
        $region87: #{seq2cmdseq_forward.1} parent=75 // pred_region
          %p2100 = scmp.lt.s32.totalorder %s31, 1
          %s2101 = scalar_select %p2100, %s31, 1
          %s2102 = smul.addr %s2101, 2
          %s2103 = smul.addr %s2102, 8
          %s2104 = scalar_lea.vmem %s11, %s2103
        $region88: #{seq2cmdseq_forward.1} parent=75 // pred_fallthru
          _
      $region76: #{seq2cmdseq_forward.1} parent=5 // pred_fallthru
        _
    $region6: #{seq2cmdseq_forward.1} parent=1 // loop_footer
      %s29 = sadd.s32 1, %s25
    $region7: #{seq2cmdseq_forward.1} parent=1 // loop_footer_branch
      %24 = sbr.rel target = $region3
    $region8: #{seq2cmdseq_forward.1} parent=1 // loop_exit
      _
    %2105 = vsyncpa [#allocation3], 1
    %s2106 = scalar_lea.sflag [#allocation3], 1
    %2107 = vsyncpa %s2106, 1
    %2108 = vsyncpa [#allocation4], 1
    %s2109 = scalar_lea.sflag [#allocation4], 1
    %2110 = vsyncpa %s2109, 1
    %2111 = vsyncpa [#allocation7], 1
    %s2112 = scalar_lea.sflag [#allocation7], 1
    %2113 = vsyncpa %s2112, 1

</llo_original>
